<compile_context>
chip_gen: v7x
topology: tpu7x:2x2x1
jax: 0.10.0
libtpu: 0.0.40
codegen_flags: <defaults>
</compile_context>

<pallas_src>
import functools

import jax
import jax.numpy as jnp
import numpy as np
from jax.experimental import pallas as pl
from jax.experimental.pallas import tpu as pltpu


# ----------------------------------------------------------------------------- kernel


def _actor_critic_kernel(
    x_ref,
    w1_ref, b1_ref,          # fused layer 1: [S, 2*H1], [1, 2*H1]
    w2a_ref, w2c_ref, b2_ref,  # layer 2: [H1, H2] x2, fused bias [1, 2*H2]
    w3_ref, b3_ref,          # fused, lane-padded layer 3: [2*H2, OUT_W], [1, OUT_W]
    out_ref,                 # [tile_b, OUT_W] f32
    *, hid1, n_act, act_dtype,
):
    cdt = w1_ref.dtype  # MXU compute dtype (bf16)

    x = x_ref[...].astype(cdt)

    # ---- fused layer 1 (actor || critic in one MXU pass) ----
    u1 = jnp.dot(x, w1_ref[...], preferred_element_type=jnp.float32) + b1_ref[...]
    hg1 = jnp.tanh(u1.astype(act_dtype))                 # [tile_b, 2*H1]
    h1 = hg1[:, :hid1].astype(cdt)                       # 512-aligned lane slice
    g1 = hg1[:, hid1:].astype(cdt)

    # ---- layer 2 (inputs differ; block-diag fusion would double MXU work) ----
    u2 = jnp.concatenate(
        [jnp.dot(h1, w2a_ref[...], preferred_element_type=jnp.float32),
         jnp.dot(g1, w2c_ref[...], preferred_element_type=jnp.float32)],
        axis=-1,
    ) + b2_ref[...]                                      # [tile_b, 2*H2] f32
    hg2 = jnp.tanh(u2.astype(act_dtype)).astype(cdt)     # one tanh, one cast

    # ---- layer 3: single K=2*H2 dot, both heads land in one lane-dense slab ----
    # z[:, :A] = actor logits, z[:, A] = critic value, z[:, A+1:] = 0
    z = jnp.dot(hg2, w3_ref[...], preferred_element_type=jnp.float32) + b3_ref[...]

    lane = jax.lax.broadcasted_iota(jnp.int32, z.shape, dimension=1)
    is_logit = lane < n_act

    # masked, numerically-stable softmax over lanes [0, A)
    zm = jnp.where(is_logit, z, jnp.float32(-1e30))
    m = jnp.max(zm, axis=-1, keepdims=True)
    e = jnp.exp(zm - m)                                  # masked lanes underflow to 0
    denom = jnp.sum(e, axis=-1, keepdims=True)
    probs = e * pl.reciprocal(denom, approx=False)       # exact: probs feed log/entropy

    out = jnp.where(is_logit, probs, jnp.where(lane == n_act, z, 0.0))
    out_ref[...] = out.astype(out_ref.dtype)


# ----------------------------------------------------------------------------- wrapper


def _round_up(x, m):
    return ((x + m - 1) // m) * m


def _device_plan():
    """(bf16_tanh_ok, two_tensorcores_per_chip) from the local device kind."""
    try:
        kind = jax.devices()[0].device_kind.lower()
    except Exception:
        return False, False
    bf16_tanh = ("v6" in kind) or ("v7" in kind) or ("7x" in kind)
    two_tc = ("v7" in kind) or ("7x" in kind)
    return bf16_tanh, two_tc


def actor_critic_forward(x, packed, *, tile_b=None):
    """Fused actor/critic forward.  x: [B, state_size] f32.

    Returns (probs [B, action_size], value [B, 1]) in float32.
    """
    B, S = x.shape
    H1, H2 = packed["hid1"], packed["hid2"]
    A, OUT_W = packed["n_act"], packed["out_w"]

    bf16_tanh, two_tc = _device_plan()
    act_dtype = jnp.bfloat16 if bf16_tanh else jnp.float32

    # Tiling policy (per perf review):
    #  * single-TC chips (v5e/v6e) or small batches: one grid step (tile_b = B)
    #  * v7x with B >= 512: split the batch into two "parallel" steps so both
    #    TensorCores get work; partial last block handled by Pallas masking.
    if tile_b is None:
        if two_tc and B >= 512:
            tile_b = _round_up(-(-B // 2), 8)
        else:
            tile_b = B
    tile_b = max(1, min(tile_b, B))
    if tile_b < B:
        tile_b = _round_up(tile_b, 8)
    n_steps = int(pl.cdiv(B, tile_b))
    grid = (n_steps,)

    def full(shape):
        nd = len(shape)
        return pl.BlockSpec(shape, lambda i, _n=nd: (0,) * _n)

    in_specs = [
        pl.BlockSpec((tile_b, S), lambda i: (i, 0)),     # x tile over batch
        full((S, 2 * H1)), full((1, 2 * H1)),            # fused layer 1
        full((H1, H2)), full((H1, H2)), full((1, 2 * H2)),  # layer 2 (+ fused bias)
        full((2 * H2, OUT_W)), full((1, OUT_W)),         # fused, padded layer 3
    ]
    out_specs = pl.BlockSpec((tile_b, OUT_W), lambda i: (i, 0))
    out_shape = jax.ShapeDtypeStruct((B, OUT_W), jnp.float32)

    # Advisory cost model for XLA's scheduler.
    flops = 2 * B * (S * 2 * H1 + 2 * H1 * H2 + 2 * H2 * OUT_W)
    transcendentals = B * (2 * H1 + 2 * H2 + OUT_W)
    wbytes = (
        (S * 2 * H1 + 2 * H1 * H2 + 2 * H2 * OUT_W) * 2   # bf16 weights
        + (2 * H1 + 2 * H2 + OUT_W) * 4                   # f32 biases
    )
    bytes_accessed = int(B * S * 4 + wbytes + B * OUT_W * 4)

    kernel = functools.partial(
        _actor_critic_kernel, hid1=H1, n_act=A, act_dtype=act_dtype
    )

    out = pl.pallas_call(
        kernel,
        grid_spec=pltpu.PrefetchScalarGridSpec(
            num_scalar_prefetch=0,
            grid=grid,
            in_specs=in_specs,
            out_specs=out_specs,
        ),
        out_shape=out_shape,
        compiler_params=pltpu.CompilerParams(
            dimension_semantics=("parallel",) if n_steps > 1 else ("arbitrary",),
        ),
        cost_estimate=pl.CostEstimate(
            flops=int(flops),
            transcendentals=int(transcendentals),
            bytes_accessed=bytes_accessed,
        ),
    )(
        x,
        packed["w1"], packed["b1"],
        packed["w2a"], packed["w2c"], packed["b2"],
        packed["w3"], packed["b3"],
    )

    probs = out[:, :A]
    value = out[:, A:A + 1]
    return probs, value


# ----------------------------------------------------------------------------- params


def init_params(key, state_size, action_size, hidsize1=512, hidsize2=256,
                weight_dtype=jnp.bfloat16):
    """nn.Linear-style U(-1/sqrt(fan_in), 1/sqrt(fan_in)) init.

    Weights are stored in bf16 (native MXU dtype on all TPU generations);
    biases stay f32 (added after the f32 accumulation).
    """
    keys = jax.random.split(key, 12)

    def lin(kw, kb, fan_in, fan_out):
        bound = 1.0 / np.sqrt(fan_in)
        w = jax.random.uniform(kw, (fan_in, fan_out), jnp.float32, -bound, bound)
        b = jax.random.uniform(kb, (1, fan_out), jnp.float32, -bound, bound)
        return w.astype(weight_dtype), b

    w1a, b1a = lin(keys[0], keys[1], state_size, hidsize1)
    w2a, b2a = lin(keys[2], keys[3], hidsize1, hidsize2)
    w3a, b3a = lin(keys[4], keys[5], hidsize2, action_size)
    w1c, b1c = lin(keys[6], keys[7], state_size, hidsize1)
    w2c, b2c = lin(keys[8], keys[9], hidsize1, hidsize2)
    w3c, b3c = lin(keys[10], keys[11], hidsize2, 1)
    return dict(
        w1a=w1a, b1a=b1a, w2a=w2a, b2a=b2a, w3a=w3a, b3a=b3a,
        w1c=w1c, b1c=b1c, w2c=w2c, b2c=b2c, w3c=w3c, b3c=b3c,
    )


def pack_params(p):
    """Repack per-layer weights into the fused / lane-padded kernel layout."""
    S, H1 = p["w1a"].shape
    H2 = p["w2a"].shape[1]
    A = p["w3a"].shape[1]
    OUT_W = 128 * ((A + 1 + 127) // 128)   # lane-dense output width (>=128)
    wdt = p["w1a"].dtype

    # layer 1: actor || critic along N
    w1 = jnp.concatenate([p["w1a"], p["w1c"]], axis=1)            # [S, 2*H1]
    b1 = jnp.concatenate([p["b1a"], p["b1c"]], axis=1)            # [1, 2*H1]

    # layer 2: fused bias (dots stay separate; kernel concatenates results)
    b2 = jnp.concatenate([p["b2a"], p["b2c"]], axis=1)            # [1, 2*H2]

    # layer 3: stack along K so the kernel issues a single 2*H2 x OUT_W dot
    w3a_p = jnp.zeros((H2, OUT_W), wdt).at[:, :A].set(p["w3a"])
    w3c_p = jnp.zeros((H2, OUT_W), wdt).at[:, A:A + 1].set(p["w3c"])
    w3 = jnp.concatenate([w3a_p, w3c_p], axis=0)                  # [2*H2, OUT_W]
    b3 = (
        jnp.zeros((1, OUT_W), jnp.float32)
        .at[:, :A].set(p["b3a"])
        .at[:, A:A + 1].set(p["b3c"])
    )

    return dict(
        w1=w1, b1=b1,
        w2a=p["w2a"], w2c=p["w2c"], b2=b2,
        w3=w3, b3=b3,
        state=S, hid1=H1, hid2=H2, n_act=A, out_w=OUT_W,
    )


# ----------------------------------------------------------------------------- reference


def _reference(x, p):
    """Pure-JAX reference using the same (bf16-quantized) weights in f32 math."""
    f32 = lambda a: a.astype(jnp.float32)
    h1 = jnp.tanh(x @ f32(p["w1a"]) + p["b1a"])
    h2 = jnp.tanh(h1 @ f32(p["w2a"]) + p["b2a"])
    probs = jax.nn.softmax(h2 @ f32(p["w3a"]) + p["b3a"], axis=-1)
    g1 = jnp.tanh(x @ f32(p["w1c"]) + p["b1c"])
    g2 = jnp.tanh(g1 @ f32(p["w2c"]) + p["b2c"])
    value = g2 @ f32(p["w3c"]) + p["b3c"]
    return probs, value


# ----------------------------------------------------------------------------- demo


if __name__ == "__main__":
    key = jax.random.PRNGKey(0)
    k_param, k_x = jax.random.split(key)

    # Module-consistent shapes: state_size=16, action_size=5, hidden 512/256.
    STATE, ACTION = 16, 5
    params = init_params(k_param, STATE, ACTION)
    packed = pack_params(params)

    # Batched case: 256 rows -> a single grid step (per-step overhead dominates
    # this microkernel; v7x only splits across its two TensorCores for B>=512).
    x = jax.random.normal(k_x, (256, STATE), dtype=jnp.float32)
    probs, value = actor_critic_forward(x, packed)
    jax.block_until_ready((probs, value))

    ref_probs, ref_value = _reference(x, params)
    # bf16 dot operands (+ bf16 tanh on v6e/v7x) -> relaxed tolerances.
    assert np.allclose(np.asarray(probs), np.asarray(ref_probs), atol=2e-2, rtol=2e-2)
    assert np.allclose(np.asarray(value), np.asarray(ref_value), atol=2e-2, rtol=2e-2)
    assert np.allclose(np.asarray(probs).sum(-1), 1.0, atol=5e-3)

    # Small ragged batch (10 rows): block covers the full (unpadded) batch dim,
    # so no host-side padding copy is needed.
    x_small = jax.random.normal(jax.random.PRNGKey(1), (10, STATE), dtype=jnp.float32)
    probs_s, value_s = actor_critic_forward(x_small, packed)
    jax.block_until_ready((probs_s, value_s))
    ref_probs_s, ref_value_s = _reference(x_small, params)
    assert probs_s.shape == (10, ACTION) and value_s.shape == (10, 1)
    assert np.allclose(np.asarray(probs_s), np.asarray(ref_probs_s), atol=2e-2, rtol=2e-2)
    assert np.allclose(np.asarray(value_s), np.asarray(ref_value_s), atol=2e-2, rtol=2e-2)

    # TODO(synk): Categorical sampling (get_actor_dist) and save/load are
    # host-side and not part of the forward pass; they are not kernelized.
    print("KERNEL_OK")
</pallas_src>

<mosaic_0001>
module attributes {stable_mosaic.version = 11 : i64} {
  func.func @_actor_critic_kernel(%arg0: i32, %arg1: memref<256x16xf32, #tpu.memory_space<vmem>>, %arg2: memref<16x1024xbf16, #tpu.memory_space<vmem>>, %arg3: memref<1x1024xf32, #tpu.memory_space<vmem>>, %arg4: memref<512x256xbf16, #tpu.memory_space<vmem>>, %arg5: memref<512x256xbf16, #tpu.memory_space<vmem>>, %arg6: memref<1x512xf32, #tpu.memory_space<vmem>>, %arg7: memref<512x128xbf16, #tpu.memory_space<vmem>>, %arg8: memref<1x128xf32, #tpu.memory_space<vmem>>, %arg9: memref<256x128xf32, #tpu.memory_space<vmem>>) attributes {dimension_semantics = [#tpu.dimension_semantics<arbitrary>], iteration_bounds = array<i64: 1>, scalar_prefetch = 0 : i64, scratch_operands = 0 : i64, tpu.core_type = #tpu.core_type<tc>, window_params = [{transform_indices = @transform_0, window_bounds = array<i64: 256, 16>}, {pipeline_mode = #tpu.pipeline_mode<synchronous>, transform_indices = @transform_1, window_bounds = array<i64: 16, 1024>}, {pipeline_mode = #tpu.pipeline_mode<synchronous>, transform_indices = @transform_2, window_bounds = array<i64: 1, 1024>}, {pipeline_mode = #tpu.pipeline_mode<synchronous>, transform_indices = @transform_3, window_bounds = array<i64: 512, 256>}, {pipeline_mode = #tpu.pipeline_mode<synchronous>, transform_indices = @transform_4, window_bounds = array<i64: 512, 256>}, {pipeline_mode = #tpu.pipeline_mode<synchronous>, transform_indices = @transform_5, window_bounds = array<i64: 1, 512>}, {pipeline_mode = #tpu.pipeline_mode<synchronous>, transform_indices = @transform_6, window_bounds = array<i64: 512, 128>}, {pipeline_mode = #tpu.pipeline_mode<synchronous>, transform_indices = @transform_7, window_bounds = array<i64: 1, 128>}, {transform_indices = @transform_8, window_bounds = array<i64: 256, 128>}]} {
    %c0 = arith.constant 0 : index
    %c0_0 = arith.constant 0 : index
    %0 = vector.load %arg1[%c0, %c0_0] : memref<256x16xf32, #tpu.memory_space<vmem>>, vector<256x16xf32>
    %1 = arith.truncf %0 : vector<256x16xf32> to vector<256x16xbf16>
    %c0_1 = arith.constant 0 : index
    %c0_2 = arith.constant 0 : index
    %2 = vector.load %arg2[%c0_1, %c0_2] : memref<16x1024xbf16, #tpu.memory_space<vmem>>, vector<16x1024xbf16>
    %cst = arith.constant dense<0.000000e+00> : vector<256x1024xf32>
    %3 = tpu.matmul %1, %2, %cst {dimension_numbers = #tpu.dot_dimension_numbers<[1], [0], [0], [1], [0, 0, 1, 1], [], []>} : vector<256x16xbf16>, vector<16x1024xbf16>, vector<256x1024xf32> -> vector<256x1024xf32>
    %c0_3 = arith.constant 0 : index
    %c0_4 = arith.constant 0 : index
    %4 = vector.load %arg3[%c0_3, %c0_4] : memref<1x1024xf32, #tpu.memory_space<vmem>>, vector<1x1024xf32>
    %5 = vector.broadcast %4 : vector<1x1024xf32> to vector<256x1024xf32>
    %6 = arith.addf %3, %5 : vector<256x1024xf32>
    %7 = math.tanh %6 : vector<256x1024xf32>
    %8 = vector.extract_strided_slice %7 {offsets = [0, 0], sizes = [256, 512], strides = [1, 1]} : vector<256x1024xf32> to vector<256x512xf32>
    %9 = arith.truncf %8 : vector<256x512xf32> to vector<256x512xbf16>
    %10 = vector.extract_strided_slice %7 {offsets = [0, 512], sizes = [256, 512], strides = [1, 1]} : vector<256x1024xf32> to vector<256x512xf32>
    %11 = arith.truncf %10 : vector<256x512xf32> to vector<256x512xbf16>
    %c0_5 = arith.constant 0 : index
    %c0_6 = arith.constant 0 : index
    %12 = vector.load %arg4[%c0_5, %c0_6] : memref<512x256xbf16, #tpu.memory_space<vmem>>, vector<512x256xbf16>
    %cst_7 = arith.constant dense<0.000000e+00> : vector<256x256xf32>
    %13 = tpu.matmul %9, %12, %cst_7 {dimension_numbers = #tpu.dot_dimension_numbers<[1], [0], [0], [1], [0, 0, 1, 1], [], []>} : vector<256x512xbf16>, vector<512x256xbf16>, vector<256x256xf32> -> vector<256x256xf32>
    %c0_8 = arith.constant 0 : index
    %c0_9 = arith.constant 0 : index
    %14 = vector.load %arg5[%c0_8, %c0_9] : memref<512x256xbf16, #tpu.memory_space<vmem>>, vector<512x256xbf16>
    %cst_10 = arith.constant dense<0.000000e+00> : vector<256x256xf32>
    %15 = tpu.matmul %11, %14, %cst_10 {dimension_numbers = #tpu.dot_dimension_numbers<[1], [0], [0], [1], [0, 0, 1, 1], [], []>} : vector<256x512xbf16>, vector<512x256xbf16>, vector<256x256xf32> -> vector<256x256xf32>
    %16 = tpu.concatenate %13, %15 in 1 : vector<256x256xf32>, vector<256x256xf32> -> vector<256x512xf32>
    %c0_11 = arith.constant 0 : index
    %c0_12 = arith.constant 0 : index
    %17 = vector.load %arg6[%c0_11, %c0_12] : memref<1x512xf32, #tpu.memory_space<vmem>>, vector<1x512xf32>
    %18 = vector.broadcast %17 : vector<1x512xf32> to vector<256x512xf32>
    %19 = arith.addf %16, %18 : vector<256x512xf32>
    %20 = math.tanh %19 : vector<256x512xf32>
    %21 = arith.truncf %20 : vector<256x512xf32> to vector<256x512xbf16>
    %c0_13 = arith.constant 0 : index
    %c0_14 = arith.constant 0 : index
    %22 = vector.load %arg7[%c0_13, %c0_14] : memref<512x128xbf16, #tpu.memory_space<vmem>>, vector<512x128xbf16>
    %cst_15 = arith.constant dense<0.000000e+00> : vector<256x128xf32>
    %23 = tpu.matmul %21, %22, %cst_15 {dimension_numbers = #tpu.dot_dimension_numbers<[1], [0], [0], [1], [0, 0, 1, 1], [], []>} : vector<256x512xbf16>, vector<512x128xbf16>, vector<256x128xf32> -> vector<256x128xf32>
    %c0_16 = arith.constant 0 : index
    %c0_17 = arith.constant 0 : index
    %24 = vector.load %arg8[%c0_16, %c0_17] : memref<1x128xf32, #tpu.memory_space<vmem>>, vector<1x128xf32>
    %25 = vector.broadcast %24 : vector<1x128xf32> to vector<256x128xf32>
    %26 = arith.addf %23, %25 : vector<256x128xf32>
    %27 = tpu.iota {dimensions = array<i32: 1>} : vector<256x128xi32>
    %c5_i32 = arith.constant 5 : i32
    %28 = vector.broadcast %c5_i32 : i32 to vector<256x128xi32>
    %29 = arith.cmpi slt, %27, %28 : vector<256x128xi32>
    %cst_18 = arith.constant -1.000000e+30 : f32
    %30 = vector.broadcast %cst_18 : f32 to vector<256x128xf32>
    %31 = arith.select %29, %26, %30 : vector<256x128xi1>, vector<256x128xf32>
    %cst_19 = arith.constant dense<0xFF800000> : vector<256xf32>
    %32 = vector.multi_reduction <maximumf>, %31, %cst_19 [1] : vector<256x128xf32> to vector<256xf32>
    %33 = vector.shape_cast %32 : vector<256xf32> to vector<256x1xf32>
    %34 = vector.broadcast %33 : vector<256x1xf32> to vector<256x128xf32>
    %35 = arith.subf %31, %34 : vector<256x128xf32>
    %36 = math.exp %35 : vector<256x128xf32>
    %cst_20 = arith.constant dense<0.000000e+00> : vector<256xf32>
    %37 = vector.multi_reduction <add>, %36, %cst_20 [1] : vector<256x128xf32> to vector<256xf32>
    %38 = vector.shape_cast %37 : vector<256xf32> to vector<256x1xf32>
    %39 = tpu.reciprocal %38 : vector<256x1xf32> -> vector<256x1xf32>
    %40 = vector.broadcast %39 : vector<256x1xf32> to vector<256x128xf32>
    %41 = arith.mulf %36, %40 : vector<256x128xf32>
    %c5_i32_21 = arith.constant 5 : i32
    %42 = vector.broadcast %c5_i32_21 : i32 to vector<256x128xi32>
    %43 = arith.cmpi eq, %27, %42 : vector<256x128xi32>
    %cst_22 = arith.constant 0.000000e+00 : f32
    %44 = vector.broadcast %cst_22 : f32 to vector<256x128xf32>
    %45 = arith.select %43, %26, %44 : vector<256x128xi1>, vector<256x128xf32>
    %46 = arith.select %29, %41, %45 : vector<256x128xi1>, vector<256x128xf32>
    %c0_23 = arith.constant 0 : index
    %c0_24 = arith.constant 0 : index
    %47 = vector.load %arg9[%c0_23, %c0_24] : memref<256x128xf32, #tpu.memory_space<vmem>>, vector<256x128xf32>
    tpu.vector_store %arg9[%c0_23, %c0_24], %46 {strides = array<i32>} : memref<256x128xf32, #tpu.memory_space<vmem>>, vector<256x128xf32>,
    return
  }
  func.func @transform_0(%arg0: i32) -> (i32, i32) {
    %c0_i32 = arith.constant 0 : i32
    %c0_i32_0 = arith.constant 0 : i32
    return %arg0, %c0_i32 : i32, i32
  }
  func.func @transform_1(%arg0: i32) -> (i32, i32) {
    %c0_i32 = arith.constant 0 : i32
    %c0_i32_0 = arith.constant 0 : i32
    %c0_i32_1 = arith.constant 0 : i32
    return %c0_i32, %c0_i32_0 : i32, i32
  }
  func.func @transform_2(%arg0: i32) -> (i32, i32) {
    %c0_i32 = arith.constant 0 : i32
    %c0_i32_0 = arith.constant 0 : i32
    %c0_i32_1 = arith.constant 0 : i32
    return %c0_i32, %c0_i32_0 : i32, i32
  }
  func.func @transform_3(%arg0: i32) -> (i32, i32) {
    %c0_i32 = arith.constant 0 : i32
    %c0_i32_0 = arith.constant 0 : i32
    %c0_i32_1 = arith.constant 0 : i32
    return %c0_i32, %c0_i32_0 : i32, i32
  }
  func.func @transform_4(%arg0: i32) -> (i32, i32) {
    %c0_i32 = arith.constant 0 : i32
    %c0_i32_0 = arith.constant 0 : i32
    %c0_i32_1 = arith.constant 0 : i32
    return %c0_i32, %c0_i32_0 : i32, i32
  }
  func.func @transform_5(%arg0: i32) -> (i32, i32) {
    %c0_i32 = arith.constant 0 : i32
    %c0_i32_0 = arith.constant 0 : i32
    %c0_i32_1 = arith.constant 0 : i32
    return %c0_i32, %c0_i32_0 : i32, i32
  }
  func.func @transform_6(%arg0: i32) -> (i32, i32) {
    %c0_i32 = arith.constant 0 : i32
    %c0_i32_0 = arith.constant 0 : i32
    %c0_i32_1 = arith.constant 0 : i32
    return %c0_i32, %c0_i32_0 : i32, i32
  }
  func.func @transform_7(%arg0: i32) -> (i32, i32) {
    %c0_i32 = arith.constant 0 : i32
    %c0_i32_0 = arith.constant 0 : i32
    %c0_i32_1 = arith.constant 0 : i32
    return %c0_i32, %c0_i32_0 : i32, i32
  }
  func.func @transform_8(%arg0: i32) -> (i32, i32) {
    %c0_i32 = arith.constant 0 : i32
    %c0_i32_0 = arith.constant 0 : i32
    return %arg0, %c0_i32 : i32, i32
  }
}

</mosaic_0001>

<llo_original>
// kernel: tpu_custom_call.1
$region0: #{tpu_custom_call.1}
  #allocation0 [shape = 'u32[]', space=smem, size = 0x4, offset = 0x4, fixed_abs, tag = 'smem constant byte address 0x4 - core index']
  #allocation1 [shape = 'u32[144,128]{1,0:T(1,128)}', space=vmem, size = 0x12000, scoped, tag = 'internal scratch']
  %s0 = inlined_call_operand.vmem [shape: f32[256,16], index: 0, kind: input, shape index: {}]
  %s1 = inlined_call_operand.hbm [shape: bf16[16,1024], index: 1, kind: input, shape index: {}]
  %s2 = inlined_call_operand.vmem [shape: f32[1,1024], index: 2, kind: input, shape index: {}]
  %s3 = inlined_call_operand.hbm [shape: bf16[512,256], index: 3, kind: input, shape index: {}]
  %s4 = inlined_call_operand.hbm [shape: bf16[512,256], index: 4, kind: input, shape index: {}]
  %s5 = inlined_call_operand.vmem [shape: f32[1,512], index: 5, kind: input, shape index: {}]
  %s6 = inlined_call_operand.vmem [shape: bf16[512,128], index: 6, kind: input, shape index: {}]
  %s7 = inlined_call_operand.vmem [shape: f32[1,128], index: 7, kind: input, shape index: {}]
  %s8 = inlined_call_operand.hbm [shape: f32[256,128], index: 8, kind: output, shape index: {}]
  %s9 = sld [smem:[#allocation0]]
  $region54: #{tpu_custom_call.1} parent=0
    _
  %s11 = ssub.s32 1, %s9
  %s12 = scalar_select 0, %s11, %s9
  $region1: #{tpu_custom_call.1} parent=0
    #allocation2 [shape = 'u8[32768]{0}', space=vmem, size = 0x8000, scoped, tag = 'input window, operand 1, single buffered']
    #allocation3 [shape = 's32[1]{0}', space=sflag, size = 0x4, scoped, tag = 'scoped memory for tpu_custom_call.1']
    #allocation4 [shape = 's32[1]{0}', space=sflag, size = 0x4, scoped, tag = 'scoped memory for tpu_custom_call.1']
    #allocation5 [shape = 'u8[262144]{0}', space=vmem, size = 0x40000, scoped, tag = 'input window, operand 3, single buffered']
    #allocation6 [shape = 's32[1]{0}', space=sflag, size = 0x4, scoped, tag = 'scoped memory for tpu_custom_call.1']
    #allocation7 [shape = 'u8[262144]{0}', space=vmem, size = 0x40000, scoped, tag = 'input window, operand 4, single buffered']
    #allocation8 [shape = 'u8[131072]{0}', space=vmem, size = 0x20000, scoped, tag = 'output window, operand 0, single buffered']
    %13 = vsyncpa [#allocation3], 0
    %14 = vsyncpa [#allocation6], 0
    %15 = vsyncpa [#allocation4], 0
    // Predicated region
    $region2: #{tpu_custom_call.1} parent=1 // pred_check
      _
    $region3: #{tpu_custom_call.1} parent=1 // pred_check_branch
      %17 = sbr.rel (0) target = $region5
    $region4: #{tpu_custom_call.1} parent=1 // pred_region
      _
    $region5: #{tpu_custom_call.1} parent=1 // pred_fallthru
      _
    // Predicated region
    $region6: #{tpu_custom_call.1} parent=1 // pred_check
      _
    $region7: #{tpu_custom_call.1} parent=1 // pred_check_branch
      %19 = sbr.rel (0) target = $region9
    $region8: #{tpu_custom_call.1} parent=1 // pred_region
      %s21 = ssub.s32 1024, 1024
      %22 = vsyncadd [#allocation3], %s21
      %s23 = sshll.u32 [#allocation2], 4
      %s24 = int_to_ptr.vmem [resolvable:$true] %s23
      %29 = dma.hbm_to_vmem [thread:$0]  %s1, 1024, %s24, [#allocation3], 512, 512, 32
    $region9: #{tpu_custom_call.1} parent=1 // pred_fallthru
      _
    // Predicated region
    $region10: #{tpu_custom_call.1} parent=1 // pred_check
      _
    $region11: #{tpu_custom_call.1} parent=1 // pred_check_branch
      %31 = sbr.rel (0) target = $region13
    $region12: #{tpu_custom_call.1} parent=1 // pred_region
      _
    $region13: #{tpu_custom_call.1} parent=1 // pred_fallthru
      _
    // Predicated region
    $region14: #{tpu_custom_call.1} parent=1 // pred_check
      _
    $region15: #{tpu_custom_call.1} parent=1 // pred_check_branch
      %33 = sbr.rel (0) target = $region17
    $region16: #{tpu_custom_call.1} parent=1 // pred_region
      %s35 = ssub.s32 8192, 8192
      %36 = vsyncadd [#allocation6], %s35
      %s37 = sshll.u32 [#allocation5], 4
      %s38 = int_to_ptr.vmem [resolvable:$true] %s37
      %43 = dma.hbm_to_vmem [thread:$0]  %s3, 8192, %s38, [#allocation6], 128, 128, 8
    $region17: #{tpu_custom_call.1} parent=1 // pred_fallthru
      _
    // Predicated region
    $region18: #{tpu_custom_call.1} parent=1 // pred_check
      _
    $region19: #{tpu_custom_call.1} parent=1 // pred_check_branch
      %45 = sbr.rel (0) target = $region21
    $region20: #{tpu_custom_call.1} parent=1 // pred_region
      %s47 = ssub.s32 8192, 8192
      %48 = vsyncadd [#allocation6], %s47
      %s49 = sshll.u32 [#allocation7], 4
      %s50 = int_to_ptr.vmem [resolvable:$true] %s49
      %55 = dma.hbm_to_vmem [thread:$0]  %s4, 8192, %s50, [#allocation6], 128, 128, 8
    $region21: #{tpu_custom_call.1} parent=1 // pred_fallthru
      _
    // Predicated region
    $region22: #{tpu_custom_call.1} parent=1 // pred_check
      _
    $region23: #{tpu_custom_call.1} parent=1 // pred_check_branch
      %57 = sbr.rel (0) target = $region25
    $region24: #{tpu_custom_call.1} parent=1 // pred_region
      _
    $region25: #{tpu_custom_call.1} parent=1 // pred_fallthru
      _
    // Predicated region
    $region26: #{tpu_custom_call.1} parent=1 // pred_check
      _
    $region27: #{tpu_custom_call.1} parent=1 // pred_check_branch
      %59 = sbr.rel (0) target = $region29
    $region28: #{tpu_custom_call.1} parent=1 // pred_region
      _
    $region29: #{tpu_custom_call.1} parent=1 // pred_fallthru
      _
    // Predicated region
    $region30: #{tpu_custom_call.1} parent=1 // pred_check
      _
    $region31: #{tpu_custom_call.1} parent=1 // pred_check_branch
      %61 = sbr.rel (0) target = $region33
    $region32: #{tpu_custom_call.1} parent=1 // pred_region
      _
    $region33: #{tpu_custom_call.1} parent=1 // pred_fallthru
      _
    // Predicated region
    $region34: #{tpu_custom_call.1} parent=1 // pred_check
      _
    $region35: #{tpu_custom_call.1} parent=1 // pred_check_branch
      %63 = sbr.rel (0) target = $region37
    $region36: #{tpu_custom_call.1} parent=1 // pred_region
      %64 = dma.done [#allocation3], 1024
    $region37: #{tpu_custom_call.1} parent=1 // pred_fallthru
      _
    // Predicated region
    $region38: #{tpu_custom_call.1} parent=1 // pred_check
      _
    $region39: #{tpu_custom_call.1} parent=1 // pred_check_branch
      %66 = sbr.rel (0) target = $region41
    $region40: #{tpu_custom_call.1} parent=1 // pred_region
      %67 = dma.done [#allocation6], 8192
    $region41: #{tpu_custom_call.1} parent=1 // pred_fallthru
      _
    // Predicated region
    $region42: #{tpu_custom_call.1} parent=1 // pred_check
      _
    $region43: #{tpu_custom_call.1} parent=1 // pred_check_branch
      %69 = sbr.rel (0) target = $region45
    $region44: #{tpu_custom_call.1} parent=1 // pred_region
      %70 = dma.done [#allocation6], 8192
    $region45: #{tpu_custom_call.1} parent=1 // pred_fallthru
      _
    %v72 = vld [vmem:[%s0] sm:$0xff]
    %v73 = vld [vmem:[%s0 + $0x8] sm:$0xff]
    %v74 = vld [vmem:[%s0 + $0x10] sm:$0xff]
    %v75 = vld [vmem:[%s0 + $0x18] sm:$0xff]
    %v76 = vld [vmem:[%s0 + $0x20] sm:$0xff]
    %v77 = vld [vmem:[%s0 + $0x28] sm:$0xff]
    %v78 = vld [vmem:[%s0 + $0x30] sm:$0xff]
    %v79 = vld [vmem:[%s0 + $0x38] sm:$0xff]
    %v80 = vld [vmem:[%s0 + $0x40] sm:$0xff]
    %v81 = vld [vmem:[%s0 + $0x48] sm:$0xff]
    %v82 = vld [vmem:[%s0 + $0x50] sm:$0xff]
    %v83 = vld [vmem:[%s0 + $0x58] sm:$0xff]
    %v84 = vld [vmem:[%s0 + $0x60] sm:$0xff]
    %v85 = vld [vmem:[%s0 + $0x68] sm:$0xff]
    %v86 = vld [vmem:[%s0 + $0x70] sm:$0xff]
    %v87 = vld [vmem:[%s0 + $0x78] sm:$0xff]
    %v88 = vld [vmem:[%s0 + $0x80] sm:$0xff]
    %v89 = vld [vmem:[%s0 + $0x88] sm:$0xff]
    %v90 = vld [vmem:[%s0 + $0x90] sm:$0xff]
    %v91 = vld [vmem:[%s0 + $0x98] sm:$0xff]
    %v92 = vld [vmem:[%s0 + $0xa0] sm:$0xff]
    %v93 = vld [vmem:[%s0 + $0xa8] sm:$0xff]
    %v94 = vld [vmem:[%s0 + $0xb0] sm:$0xff]
    %v95 = vld [vmem:[%s0 + $0xb8] sm:$0xff]
    %v96 = vld [vmem:[%s0 + $0xc0] sm:$0xff]
    %v97 = vld [vmem:[%s0 + $0xc8] sm:$0xff]
    %v98 = vld [vmem:[%s0 + $0xd0] sm:$0xff]
    %v99 = vld [vmem:[%s0 + $0xd8] sm:$0xff]
    %v100 = vld [vmem:[%s0 + $0xe0] sm:$0xff]
    %v101 = vld [vmem:[%s0 + $0xe8] sm:$0xff]
    %v102 = vld [vmem:[%s0 + $0xf0] sm:$0xff]
    %v103 = vld [vmem:[%s0 + $0xf8] sm:$0xff]
    %v104 = vpack.c.bf16 %v73, %v72
    %v105 = vpack.c.bf16 %v75, %v74
    %v106 = vpack.c.bf16 %v77, %v76
    %v107 = vpack.c.bf16 %v79, %v78
    %v108 = vpack.c.bf16 %v81, %v80
    %v109 = vpack.c.bf16 %v83, %v82
    %v110 = vpack.c.bf16 %v85, %v84
    %v111 = vpack.c.bf16 %v87, %v86
    %v112 = vpack.c.bf16 %v89, %v88
    %v113 = vpack.c.bf16 %v91, %v90
    %v114 = vpack.c.bf16 %v93, %v92
    %v115 = vpack.c.bf16 %v95, %v94
    %v116 = vpack.c.bf16 %v97, %v96
    %v117 = vpack.c.bf16 %v99, %v98
    %v118 = vpack.c.bf16 %v101, %v100
    %v119 = vpack.c.bf16 %v103, %v102
    %v120 = vld [vmem:[#allocation2] sm:$0xff]
    %v121 = vld [vmem:[#allocation2 + $0x8] sm:$0xff]
    %v122 = vld [vmem:[#allocation2 + $0x10] sm:$0xff]
    %v123 = vld [vmem:[#allocation2 + $0x18] sm:$0xff]
    %v124 = vld [vmem:[#allocation2 + $0x20] sm:$0xff]
    %v125 = vld [vmem:[#allocation2 + $0x28] sm:$0xff]
    %v126 = vld [vmem:[#allocation2 + $0x30] sm:$0xff]
    %v127 = vld [vmem:[#allocation2 + $0x38] sm:$0xff]
    %v128 = vld [vmem:[%s2] sm:$0xff]
    %v130 = vlaneseq
    %v131 = vshrl.u32 %v130, 7
    %v132 = vsub.s32 0, %v131
    %v133 = vrot.slane %v128, %v132
    %v134 = vlaneseq
    %v135 = vshrl.u32 %v134, 7
    %v136 = vsub.s32 1, %v135
    %v137 = vrot.slane %v128, %v136
    %v138 = vlaneseq
    %v139 = vshrl.u32 %v138, 7
    %v140 = vsub.s32 2, %v139
    %v141 = vrot.slane %v128, %v140
    %v142 = vlaneseq
    %v143 = vshrl.u32 %v142, 7
    %v144 = vsub.s32 3, %v143
    %v145 = vrot.slane %v128, %v144
    %v146 = vlaneseq
    %v147 = vshrl.u32 %v146, 7
    %v148 = vsub.s32 4, %v147
    %v149 = vrot.slane %v128, %v148
    %v150 = vlaneseq
    %v151 = vshrl.u32 %v150, 7
    %v152 = vsub.s32 5, %v151
    %v153 = vrot.slane %v128, %v152
    %v154 = vlaneseq
    %v155 = vshrl.u32 %v154, 7
    %v156 = vsub.s32 6, %v155
    %v157 = vrot.slane %v128, %v156
    %v158 = vlaneseq
    %v159 = vshrl.u32 %v158, 7
    %v160 = vsub.s32 7, %v159
    %v161 = vrot.slane %v128, %v160
    %v178 = vunpack.c.l.b16 %v120
    %v179 = vunpack.c.h.b16 %v120
    %v180 = vunpack.c.l.b16 %v121
    %v181 = vunpack.c.h.b16 %v121
    %v182 = vunpack.c.l.b16 %v122
    %v183 = vunpack.c.h.b16 %v122
    %v184 = vunpack.c.l.b16 %v123
    %v185 = vunpack.c.h.b16 %v123
    %v186 = vunpack.c.l.b16 %v124
    %v187 = vunpack.c.h.b16 %v124
    %v188 = vunpack.c.l.b16 %v125
    %v189 = vunpack.c.h.b16 %v125
    %v190 = vunpack.c.l.b16 %v126
    %v191 = vunpack.c.h.b16 %v126
    %v192 = vunpack.c.l.b16 %v127
    %v193 = vunpack.c.h.b16 %v127
    %v194 = vpack.c.b16 %v186, %v178
    %v195 = vpack.c.b16 %v187, %v179
    %v196 = vpack.c.b16 %v188, %v180
    %v197 = vpack.c.b16 %v189, %v181
    %v198 = vpack.c.b16 %v190, %v182
    %v199 = vpack.c.b16 %v191, %v183
    %v200 = vpack.c.b16 %v192, %v184
    %v201 = vpack.c.b16 %v193, %v185
    %vm210 = vcmask 130048
    %v212 = vsel %vm210, %v104, 0
    %v215 = vsel %vm210, %v105, 0
    %v218 = vsel %vm210, %v106, 0
    %v221 = vsel %vm210, %v107, 0
    %v224 = vsel %vm210, %v108, 0
    %v227 = vsel %vm210, %v109, 0
    %v230 = vsel %vm210, %v110, 0
    %v233 = vsel %vm210, %v111, 0
    %v236 = vsel %vm210, %v112, 0
    %v239 = vsel %vm210, %v113, 0
    %v242 = vsel %vm210, %v114, 0
    %v245 = vsel %vm210, %v115, 0
    %v248 = vsel %vm210, %v116, 0
    %v251 = vsel %vm210, %v117, 0
    %v254 = vsel %vm210, %v118, 0
    %v257 = vsel %vm210, %v119, 0
    %259 = vmatprep.subr.bf16.mxu0 %v195
    %260 = vmatpush1.bf16.msra.mxu0 %v194
    %261 = vmatprep.subr.bf16.mxu0 0
    %262 = vmatpush1.bf16.msra.mxu0 0
    %263 = vmatprep.subr.bf16.mxu0 0
    %264 = vmatpush1.bf16.msra.mxu0 0
    %265 = vmatprep.subr.bf16.mxu0 0
    %266 = vmatpush1.bf16.msra.mxu0 0
    %267 = vmatprep.subr.bf16.mxu0 0
    %268 = vmatpush1.bf16.msra.mxu0 0
    %269 = vmatprep.subr.bf16.mxu0 0
    %270 = vmatpush1.bf16.msra.mxu0 0
    %271 = vmatprep.subr.bf16.mxu0 0
    %272 = vmatpush1.bf16.msra.mxu0 0
    %273 = vmatprep.subr.bf16.mxu0 0
    %274 = vmatpush1.bf16.msra.mxu0 0
    %275 = vmatprep.subr.bf16.mxu0 0
    %276 = vmatpush1.bf16.msra.mxu0 0
    %277 = vmatprep.subr.bf16.mxu0 0
    %278 = vmatpush1.bf16.msra.mxu0 0
    %279 = vmatprep.subr.bf16.mxu0 0
    %280 = vmatpush1.bf16.msra.mxu0 0
    %281 = vmatprep.subr.bf16.mxu0 0
    %282 = vmatpush1.bf16.msra.mxu0 0
    %283 = vmatprep.subr.bf16.mxu0 0
    %284 = vmatpush1.bf16.msra.mxu0 0
    %285 = vmatprep.subr.bf16.mxu0 0
    %286 = vmatpush1.bf16.msra.mxu0 0
    %287 = vmatprep.subr.bf16.mxu0 0
    %288 = vmatpush1.bf16.msra.mxu0 0
    %289 = vmatprep.subr.bf16.mxu0 0
    %290 = vmatpush1.bf16.msra.mxu0 0
    %291 = vmatprep.mubr.bf16.mxu0 0
    %292 = vmatmul.mubr.bf16.gmra.mrb[0].mxu0 %v212
    %v293 = vpop.f32.mrb[0].mxu0
    %v294 = vadd.f32 %v133, %v293
    %v295 = vpop.f32.mrb[0].mxu0
    %v296 = vadd.f32 %v137, %v295
    %v297 = vpop.f32.mrb[0].mxu0
    %v298 = vadd.f32 %v133, %v297
    %v299 = vpop.f32.mrb[0].mxu0
    %v300 = vadd.f32 %v137, %v299
    %301 = vmatprep.mubr.bf16.mxu0 0
    %302 = vmatmul.mubr.bf16.gmra.mrb[0].mxu0 %v215
    %v303 = vpop.f32.mrb[0].mxu0
    %v304 = vadd.f32 %v133, %v303
    %v305 = vpop.f32.mrb[0].mxu0
    %v306 = vadd.f32 %v137, %v305
    %v307 = vpop.f32.mrb[0].mxu0
    %v308 = vadd.f32 %v133, %v307
    %v309 = vpop.f32.mrb[0].mxu0
    %v310 = vadd.f32 %v137, %v309
    %311 = vmatprep.mubr.bf16.mxu0 0
    %312 = vmatmul.mubr.bf16.gmra.mrb[0].mxu0 %v218
    %v313 = vpop.f32.mrb[0].mxu0
    %v314 = vadd.f32 %v133, %v313
    %v315 = vpop.f32.mrb[0].mxu0
    %v316 = vadd.f32 %v137, %v315
    %v317 = vpop.f32.mrb[0].mxu0
    %v318 = vadd.f32 %v133, %v317
    %v319 = vpop.f32.mrb[0].mxu0
    %v320 = vadd.f32 %v137, %v319
    %321 = vmatprep.mubr.bf16.mxu0 0
    %322 = vmatmul.mubr.bf16.gmra.mrb[0].mxu0 %v221
    %v323 = vpop.f32.mrb[0].mxu0
    %v324 = vadd.f32 %v133, %v323
    %v325 = vpop.f32.mrb[0].mxu0
    %v326 = vadd.f32 %v137, %v325
    %v327 = vpop.f32.mrb[0].mxu0
    %v328 = vadd.f32 %v133, %v327
    %v329 = vpop.f32.mrb[0].mxu0
    %v330 = vadd.f32 %v137, %v329
    %331 = vmatprep.mubr.bf16.mxu0 0
    %332 = vmatmul.mubr.bf16.gmra.mrb[0].mxu0 %v224
    %v333 = vpop.f32.mrb[0].mxu0
    %v334 = vadd.f32 %v133, %v333
    %v335 = vpop.f32.mrb[0].mxu0
    %v336 = vadd.f32 %v137, %v335
    %v337 = vpop.f32.mrb[0].mxu0
    %v338 = vadd.f32 %v133, %v337
    %v339 = vpop.f32.mrb[0].mxu0
    %v340 = vadd.f32 %v137, %v339
    %341 = vmatprep.mubr.bf16.mxu0 0
    %342 = vmatmul.mubr.bf16.gmra.mrb[0].mxu0 %v227
    %v343 = vpop.f32.mrb[0].mxu0
    %v344 = vadd.f32 %v133, %v343
    %v345 = vpop.f32.mrb[0].mxu0
    %v346 = vadd.f32 %v137, %v345
    %v347 = vpop.f32.mrb[0].mxu0
    %v348 = vadd.f32 %v133, %v347
    %v349 = vpop.f32.mrb[0].mxu0
    %v350 = vadd.f32 %v137, %v349
    %351 = vmatprep.mubr.bf16.mxu0 0
    %352 = vmatmul.mubr.bf16.gmra.mrb[0].mxu0 %v230
    %v353 = vpop.f32.mrb[0].mxu0
    %v354 = vadd.f32 %v133, %v353
    %v355 = vpop.f32.mrb[0].mxu0
    %v356 = vadd.f32 %v137, %v355
    %v357 = vpop.f32.mrb[0].mxu0
    %v358 = vadd.f32 %v133, %v357
    %v359 = vpop.f32.mrb[0].mxu0
    %v360 = vadd.f32 %v137, %v359
    %361 = vmatprep.mubr.bf16.mxu0 0
    %362 = vmatmul.mubr.bf16.gmra.mrb[0].mxu0 %v233
    %v363 = vpop.f32.mrb[0].mxu0
    %v364 = vadd.f32 %v133, %v363
    %v365 = vpop.f32.mrb[0].mxu0
    %v366 = vadd.f32 %v137, %v365
    %v367 = vpop.f32.mrb[0].mxu0
    %v368 = vadd.f32 %v133, %v367
    %v369 = vpop.f32.mrb[0].mxu0
    %v370 = vadd.f32 %v137, %v369
    %371 = vmatprep.mubr.bf16.mxu0 0
    %372 = vmatmul.mubr.bf16.gmra.mrb[0].mxu0 %v236
    %v373 = vpop.f32.mrb[0].mxu0
    %v374 = vadd.f32 %v133, %v373
    %v375 = vpop.f32.mrb[0].mxu0
    %v376 = vadd.f32 %v137, %v375
    %v377 = vpop.f32.mrb[0].mxu0
    %v378 = vadd.f32 %v133, %v377
    %v379 = vpop.f32.mrb[0].mxu0
    %v380 = vadd.f32 %v137, %v379
    %381 = vmatprep.mubr.bf16.mxu0 0
    %382 = vmatmul.mubr.bf16.gmra.mrb[0].mxu0 %v239
    %v383 = vpop.f32.mrb[0].mxu0
    %v384 = vadd.f32 %v133, %v383
    %v385 = vpop.f32.mrb[0].mxu0
    %v386 = vadd.f32 %v137, %v385
    %v387 = vpop.f32.mrb[0].mxu0
    %v388 = vadd.f32 %v133, %v387
    %v389 = vpop.f32.mrb[0].mxu0
    %v390 = vadd.f32 %v137, %v389
    %391 = vmatprep.mubr.bf16.mxu0 0
    %392 = vmatmul.mubr.bf16.gmra.mrb[0].mxu0 %v242
    %v393 = vpop.f32.mrb[0].mxu0
    %v394 = vadd.f32 %v133, %v393
    %v395 = vpop.f32.mrb[0].mxu0
    %v396 = vadd.f32 %v137, %v395
    %v397 = vpop.f32.mrb[0].mxu0
    %v398 = vadd.f32 %v133, %v397
    %v399 = vpop.f32.mrb[0].mxu0
    %v400 = vadd.f32 %v137, %v399
    %401 = vmatprep.mubr.bf16.mxu0 0
    %402 = vmatmul.mubr.bf16.gmra.mrb[0].mxu0 %v245
    %v403 = vpop.f32.mrb[0].mxu0
    %v404 = vadd.f32 %v133, %v403
    %v405 = vpop.f32.mrb[0].mxu0
    %v406 = vadd.f32 %v137, %v405
    %v407 = vpop.f32.mrb[0].mxu0
    %v408 = vadd.f32 %v133, %v407
    %v409 = vpop.f32.mrb[0].mxu0
    %v410 = vadd.f32 %v137, %v409
    %411 = vmatprep.mubr.bf16.mxu0 0
    %412 = vmatmul.mubr.bf16.gmra.mrb[0].mxu0 %v248
    %v413 = vpop.f32.mrb[0].mxu0
    %v414 = vadd.f32 %v133, %v413
    %v415 = vpop.f32.mrb[0].mxu0
    %v416 = vadd.f32 %v137, %v415
    %v417 = vpop.f32.mrb[0].mxu0
    %v418 = vadd.f32 %v133, %v417
    %v419 = vpop.f32.mrb[0].mxu0
    %v420 = vadd.f32 %v137, %v419
    %421 = vmatprep.mubr.bf16.mxu0 0
    %422 = vmatmul.mubr.bf16.gmra.mrb[0].mxu0 %v251
    %v423 = vpop.f32.mrb[0].mxu0
    %v424 = vadd.f32 %v133, %v423
    %v425 = vpop.f32.mrb[0].mxu0
    %v426 = vadd.f32 %v137, %v425
    %v427 = vpop.f32.mrb[0].mxu0
    %v428 = vadd.f32 %v133, %v427
    %v429 = vpop.f32.mrb[0].mxu0
    %v430 = vadd.f32 %v137, %v429
    %431 = vmatprep.mubr.bf16.mxu0 0
    %432 = vmatmul.mubr.bf16.gmra.mrb[0].mxu0 %v254
    %v433 = vpop.f32.mrb[0].mxu0
    %v434 = vadd.f32 %v133, %v433
    %v435 = vpop.f32.mrb[0].mxu0
    %v436 = vadd.f32 %v137, %v435
    %v437 = vpop.f32.mrb[0].mxu0
    %v438 = vadd.f32 %v133, %v437
    %v439 = vpop.f32.mrb[0].mxu0
    %v440 = vadd.f32 %v137, %v439
    %441 = vmatprep.mubr.bf16.mxu0 0
    %442 = vmatmul.mubr.bf16.gmra.mrb[0].mxu0 %v257
    %v443 = vpop.f32.mrb[0].mxu0
    %v444 = vadd.f32 %v133, %v443
    %v445 = vpop.f32.mrb[0].mxu0
    %v446 = vadd.f32 %v137, %v445
    %v447 = vpop.f32.mrb[0].mxu0
    %v448 = vadd.f32 %v133, %v447
    %v449 = vpop.f32.mrb[0].mxu0
    %v450 = vadd.f32 %v137, %v449
    %451 = vdwg.mxu0
    %452 = vmatprep.subr.bf16.mxu0 %v197
    %453 = vmatpush1.bf16.msra.mxu0 %v196
    %454 = vmatprep.subr.bf16.mxu0 0
    %455 = vmatpush1.bf16.msra.mxu0 0
    %456 = vmatprep.subr.bf16.mxu0 0
    %457 = vmatpush1.bf16.msra.mxu0 0
    %458 = vmatprep.subr.bf16.mxu0 0
    %459 = vmatpush1.bf16.msra.mxu0 0
    %460 = vmatprep.subr.bf16.mxu0 0
    %461 = vmatpush1.bf16.msra.mxu0 0
    %462 = vmatprep.subr.bf16.mxu0 0
    %463 = vmatpush1.bf16.msra.mxu0 0
    %464 = vmatprep.subr.bf16.mxu0 0
    %465 = vmatpush1.bf16.msra.mxu0 0
    %466 = vmatprep.subr.bf16.mxu0 0
    %467 = vmatpush1.bf16.msra.mxu0 0
    %468 = vmatprep.subr.bf16.mxu0 0
    %469 = vmatpush1.bf16.msra.mxu0 0
    %470 = vmatprep.subr.bf16.mxu0 0
    %471 = vmatpush1.bf16.msra.mxu0 0
    %472 = vmatprep.subr.bf16.mxu0 0
    %473 = vmatpush1.bf16.msra.mxu0 0
    %474 = vmatprep.subr.bf16.mxu0 0
    %475 = vmatpush1.bf16.msra.mxu0 0
    %476 = vmatprep.subr.bf16.mxu0 0
    %477 = vmatpush1.bf16.msra.mxu0 0
    %478 = vmatprep.subr.bf16.mxu0 0
    %479 = vmatpush1.bf16.msra.mxu0 0
    %480 = vmatprep.subr.bf16.mxu0 0
    %481 = vmatpush1.bf16.msra.mxu0 0
    %482 = vmatprep.subr.bf16.mxu0 0
    %483 = vmatpush1.bf16.msra.mxu0 0
    %484 = vmatprep.mubr.bf16.mxu0 0
    %485 = vmatmul.mubr.bf16.gmra.mrb[0].mxu0 %v212
    %v486 = vpop.f32.mrb[0].mxu0
    %v487 = vadd.f32 %v141, %v486
    %v488 = vpop.f32.mrb[0].mxu0
    %v489 = vadd.f32 %v145, %v488
    %v490 = vpop.f32.mrb[0].mxu0
    %v491 = vadd.f32 %v141, %v490
    %v492 = vpop.f32.mrb[0].mxu0
    %v493 = vadd.f32 %v145, %v492
    %494 = vmatprep.mubr.bf16.mxu0 0
    %495 = vmatmul.mubr.bf16.gmra.mrb[0].mxu0 %v215
    %v496 = vpop.f32.mrb[0].mxu0
    %v497 = vadd.f32 %v141, %v496
    %v498 = vpop.f32.mrb[0].mxu0
    %v499 = vadd.f32 %v145, %v498
    %v500 = vpop.f32.mrb[0].mxu0
    %v501 = vadd.f32 %v141, %v500
    %v502 = vpop.f32.mrb[0].mxu0
    %v503 = vadd.f32 %v145, %v502
    %504 = vmatprep.mubr.bf16.mxu0 0
    %505 = vmatmul.mubr.bf16.gmra.mrb[0].mxu0 %v218
    %v506 = vpop.f32.mrb[0].mxu0
    %v507 = vadd.f32 %v141, %v506
    %v508 = vpop.f32.mrb[0].mxu0
    %v509 = vadd.f32 %v145, %v508
    %v510 = vpop.f32.mrb[0].mxu0
    %v511 = vadd.f32 %v141, %v510
    %v512 = vpop.f32.mrb[0].mxu0
    %v513 = vadd.f32 %v145, %v512
    %514 = vmatprep.mubr.bf16.mxu0 0
    %515 = vmatmul.mubr.bf16.gmra.mrb[0].mxu0 %v221
    %v516 = vpop.f32.mrb[0].mxu0
    %v517 = vadd.f32 %v141, %v516
    %v518 = vpop.f32.mrb[0].mxu0
    %v519 = vadd.f32 %v145, %v518
    %v520 = vpop.f32.mrb[0].mxu0
    %v521 = vadd.f32 %v141, %v520
    %v522 = vpop.f32.mrb[0].mxu0
    %v523 = vadd.f32 %v145, %v522
    %524 = vmatprep.mubr.bf16.mxu0 0
    %525 = vmatmul.mubr.bf16.gmra.mrb[0].mxu0 %v224
    %v526 = vpop.f32.mrb[0].mxu0
    %v527 = vadd.f32 %v141, %v526
    %v528 = vpop.f32.mrb[0].mxu0
    %v529 = vadd.f32 %v145, %v528
    %v530 = vpop.f32.mrb[0].mxu0
    %v531 = vadd.f32 %v141, %v530
    %v532 = vpop.f32.mrb[0].mxu0
    %v533 = vadd.f32 %v145, %v532
    %534 = vmatprep.mubr.bf16.mxu0 0
    %535 = vmatmul.mubr.bf16.gmra.mrb[0].mxu0 %v227
    %v536 = vpop.f32.mrb[0].mxu0
    %v537 = vadd.f32 %v141, %v536
    %v538 = vpop.f32.mrb[0].mxu0
    %v539 = vadd.f32 %v145, %v538
    %v540 = vpop.f32.mrb[0].mxu0
    %v541 = vadd.f32 %v141, %v540
    %v542 = vpop.f32.mrb[0].mxu0
    %v543 = vadd.f32 %v145, %v542
    %544 = vmatprep.mubr.bf16.mxu0 0
    %545 = vmatmul.mubr.bf16.gmra.mrb[0].mxu0 %v230
    %v546 = vpop.f32.mrb[0].mxu0
    %v547 = vadd.f32 %v141, %v546
    %v548 = vpop.f32.mrb[0].mxu0
    %v549 = vadd.f32 %v145, %v548
    %v550 = vpop.f32.mrb[0].mxu0
    %v551 = vadd.f32 %v141, %v550
    %v552 = vpop.f32.mrb[0].mxu0
    %v553 = vadd.f32 %v145, %v552
    %554 = vmatprep.mubr.bf16.mxu0 0
    %555 = vmatmul.mubr.bf16.gmra.mrb[0].mxu0 %v233
    %v556 = vpop.f32.mrb[0].mxu0
    %v557 = vadd.f32 %v141, %v556
    %v558 = vpop.f32.mrb[0].mxu0
    %v559 = vadd.f32 %v145, %v558
    %v560 = vpop.f32.mrb[0].mxu0
    %v561 = vadd.f32 %v141, %v560
    %v562 = vpop.f32.mrb[0].mxu0
    %v563 = vadd.f32 %v145, %v562
    %564 = vmatprep.mubr.bf16.mxu0 0
    %565 = vmatmul.mubr.bf16.gmra.mrb[0].mxu0 %v236
    %v566 = vpop.f32.mrb[0].mxu0
    %v567 = vadd.f32 %v141, %v566
    %v568 = vpop.f32.mrb[0].mxu0
    %v569 = vadd.f32 %v145, %v568
    %v570 = vpop.f32.mrb[0].mxu0
    %v571 = vadd.f32 %v141, %v570
    %v572 = vpop.f32.mrb[0].mxu0
    %v573 = vadd.f32 %v145, %v572
    %574 = vmatprep.mubr.bf16.mxu0 0
    %575 = vmatmul.mubr.bf16.gmra.mrb[0].mxu0 %v239
    %v576 = vpop.f32.mrb[0].mxu0
    %v577 = vadd.f32 %v141, %v576
    %v578 = vpop.f32.mrb[0].mxu0
    %v579 = vadd.f32 %v145, %v578
    %v580 = vpop.f32.mrb[0].mxu0
    %v581 = vadd.f32 %v141, %v580
    %v582 = vpop.f32.mrb[0].mxu0
    %v583 = vadd.f32 %v145, %v582
    %584 = vmatprep.mubr.bf16.mxu0 0
    %585 = vmatmul.mubr.bf16.gmra.mrb[0].mxu0 %v242
    %v586 = vpop.f32.mrb[0].mxu0
    %v587 = vadd.f32 %v141, %v586
    %v588 = vpop.f32.mrb[0].mxu0
    %v589 = vadd.f32 %v145, %v588
    %v590 = vpop.f32.mrb[0].mxu0
    %v591 = vadd.f32 %v141, %v590
    %v592 = vpop.f32.mrb[0].mxu0
    %v593 = vadd.f32 %v145, %v592
    %594 = vmatprep.mubr.bf16.mxu0 0
    %595 = vmatmul.mubr.bf16.gmra.mrb[0].mxu0 %v245
    %v596 = vpop.f32.mrb[0].mxu0
    %v597 = vadd.f32 %v141, %v596
    %v598 = vpop.f32.mrb[0].mxu0
    %v599 = vadd.f32 %v145, %v598
    %v600 = vpop.f32.mrb[0].mxu0
    %v601 = vadd.f32 %v141, %v600
    %v602 = vpop.f32.mrb[0].mxu0
    %v603 = vadd.f32 %v145, %v602
    %604 = vmatprep.mubr.bf16.mxu0 0
    %605 = vmatmul.mubr.bf16.gmra.mrb[0].mxu0 %v248
    %v606 = vpop.f32.mrb[0].mxu0
    %v607 = vadd.f32 %v141, %v606
    %v608 = vpop.f32.mrb[0].mxu0
    %v609 = vadd.f32 %v145, %v608
    %v610 = vpop.f32.mrb[0].mxu0
    %v611 = vadd.f32 %v141, %v610
    %v612 = vpop.f32.mrb[0].mxu0
    %v613 = vadd.f32 %v145, %v612
    %614 = vmatprep.mubr.bf16.mxu0 0
    %615 = vmatmul.mubr.bf16.gmra.mrb[0].mxu0 %v251
    %v616 = vpop.f32.mrb[0].mxu0
    %v617 = vadd.f32 %v141, %v616
    %v618 = vpop.f32.mrb[0].mxu0
    %v619 = vadd.f32 %v145, %v618
    %v620 = vpop.f32.mrb[0].mxu0
    %v621 = vadd.f32 %v141, %v620
    %v622 = vpop.f32.mrb[0].mxu0
    %v623 = vadd.f32 %v145, %v622
    %624 = vmatprep.mubr.bf16.mxu0 0
    %625 = vmatmul.mubr.bf16.gmra.mrb[0].mxu0 %v254
    %v626 = vpop.f32.mrb[0].mxu0
    %v627 = vadd.f32 %v141, %v626
    %v628 = vpop.f32.mrb[0].mxu0
    %v629 = vadd.f32 %v145, %v628
    %v630 = vpop.f32.mrb[0].mxu0
    %v631 = vadd.f32 %v141, %v630
    %v632 = vpop.f32.mrb[0].mxu0
    %v633 = vadd.f32 %v145, %v632
    %634 = vmatprep.mubr.bf16.mxu0 0
    %635 = vmatmul.mubr.bf16.gmra.mrb[0].mxu0 %v257
    %v636 = vpop.f32.mrb[0].mxu0
    %v637 = vadd.f32 %v141, %v636
    %v638 = vpop.f32.mrb[0].mxu0
    %v639 = vadd.f32 %v145, %v638
    %v640 = vpop.f32.mrb[0].mxu0
    %v641 = vadd.f32 %v141, %v640
    %v642 = vpop.f32.mrb[0].mxu0
    %v643 = vadd.f32 %v145, %v642
    %644 = vdwg.mxu0
    %645 = vmatprep.subr.bf16.mxu0 %v199
    %646 = vmatpush1.bf16.msra.mxu0 %v198
    %647 = vmatprep.subr.bf16.mxu0 0
    %648 = vmatpush1.bf16.msra.mxu0 0
    %649 = vmatprep.subr.bf16.mxu0 0
    %650 = vmatpush1.bf16.msra.mxu0 0
    %651 = vmatprep.subr.bf16.mxu0 0
    %652 = vmatpush1.bf16.msra.mxu0 0
    %653 = vmatprep.subr.bf16.mxu0 0
    %654 = vmatpush1.bf16.msra.mxu0 0
    %655 = vmatprep.subr.bf16.mxu0 0
    %656 = vmatpush1.bf16.msra.mxu0 0
    %657 = vmatprep.subr.bf16.mxu0 0
    %658 = vmatpush1.bf16.msra.mxu0 0
    %659 = vmatprep.subr.bf16.mxu0 0
    %660 = vmatpush1.bf16.msra.mxu0 0
    %661 = vmatprep.subr.bf16.mxu0 0
    %662 = vmatpush1.bf16.msra.mxu0 0
    %663 = vmatprep.subr.bf16.mxu0 0
    %664 = vmatpush1.bf16.msra.mxu0 0
    %665 = vmatprep.subr.bf16.mxu0 0
    %666 = vmatpush1.bf16.msra.mxu0 0
    %667 = vmatprep.subr.bf16.mxu0 0
    %668 = vmatpush1.bf16.msra.mxu0 0
    %669 = vmatprep.subr.bf16.mxu0 0
    %670 = vmatpush1.bf16.msra.mxu0 0
    %671 = vmatprep.subr.bf16.mxu0 0
    %672 = vmatpush1.bf16.msra.mxu0 0
    %673 = vmatprep.subr.bf16.mxu0 0
    %674 = vmatpush1.bf16.msra.mxu0 0
    %675 = vmatprep.subr.bf16.mxu0 0
    %676 = vmatpush1.bf16.msra.mxu0 0
    %677 = vmatprep.mubr.bf16.mxu0 0
    %678 = vmatmul.mubr.bf16.gmra.mrb[0].mxu0 %v212
    %v679 = vpop.f32.mrb[0].mxu0
    %v680 = vadd.f32 %v149, %v679
    %v681 = vpop.f32.mrb[0].mxu0
    %v682 = vadd.f32 %v153, %v681
    %v683 = vpop.f32.mrb[0].mxu0
    %v684 = vadd.f32 %v149, %v683
    %v685 = vpop.f32.mrb[0].mxu0
    %v686 = vadd.f32 %v153, %v685
    %687 = vmatprep.mubr.bf16.mxu0 0
    %688 = vmatmul.mubr.bf16.gmra.mrb[0].mxu0 %v215
    %v689 = vpop.f32.mrb[0].mxu0
    %v690 = vadd.f32 %v149, %v689
    %v691 = vpop.f32.mrb[0].mxu0
    %v692 = vadd.f32 %v153, %v691
    %v693 = vpop.f32.mrb[0].mxu0
    %v694 = vadd.f32 %v149, %v693
    %v695 = vpop.f32.mrb[0].mxu0
    %v696 = vadd.f32 %v153, %v695
    %697 = vmatprep.mubr.bf16.mxu0 0
    %698 = vmatmul.mubr.bf16.gmra.mrb[0].mxu0 %v218
    %v699 = vpop.f32.mrb[0].mxu0
    %v700 = vadd.f32 %v149, %v699
    %v701 = vpop.f32.mrb[0].mxu0
    %v702 = vadd.f32 %v153, %v701
    %v703 = vpop.f32.mrb[0].mxu0
    %v704 = vadd.f32 %v149, %v703
    %v705 = vpop.f32.mrb[0].mxu0
    %v706 = vadd.f32 %v153, %v705
    %707 = vmatprep.mubr.bf16.mxu0 0
    %708 = vmatmul.mubr.bf16.gmra.mrb[0].mxu0 %v221
    %v709 = vpop.f32.mrb[0].mxu0
    %v710 = vadd.f32 %v149, %v709
    %v711 = vpop.f32.mrb[0].mxu0
    %v712 = vadd.f32 %v153, %v711
    %v713 = vpop.f32.mrb[0].mxu0
    %v714 = vadd.f32 %v149, %v713
    %v715 = vpop.f32.mrb[0].mxu0
    %v716 = vadd.f32 %v153, %v715
    %717 = vmatprep.mubr.bf16.mxu0 0
    %718 = vmatmul.mubr.bf16.gmra.mrb[0].mxu0 %v224
    %v719 = vpop.f32.mrb[0].mxu0
    %v720 = vadd.f32 %v149, %v719
    %v721 = vpop.f32.mrb[0].mxu0
    %v722 = vadd.f32 %v153, %v721
    %v723 = vpop.f32.mrb[0].mxu0
    %v724 = vadd.f32 %v149, %v723
    %v725 = vpop.f32.mrb[0].mxu0
    %v726 = vadd.f32 %v153, %v725
    %727 = vmatprep.mubr.bf16.mxu0 0
    %728 = vmatmul.mubr.bf16.gmra.mrb[0].mxu0 %v227
    %v729 = vpop.f32.mrb[0].mxu0
    %v730 = vadd.f32 %v149, %v729
    %v731 = vpop.f32.mrb[0].mxu0
    %v732 = vadd.f32 %v153, %v731
    %v733 = vpop.f32.mrb[0].mxu0
    %v734 = vadd.f32 %v149, %v733
    %v735 = vpop.f32.mrb[0].mxu0
    %v736 = vadd.f32 %v153, %v735
    %737 = vmatprep.mubr.bf16.mxu0 0
    %738 = vmatmul.mubr.bf16.gmra.mrb[0].mxu0 %v230
    %v739 = vpop.f32.mrb[0].mxu0
    %v740 = vadd.f32 %v149, %v739
    %v741 = vpop.f32.mrb[0].mxu0
    %v742 = vadd.f32 %v153, %v741
    %v743 = vpop.f32.mrb[0].mxu0
    %v744 = vadd.f32 %v149, %v743
    %v745 = vpop.f32.mrb[0].mxu0
    %v746 = vadd.f32 %v153, %v745
    %747 = vmatprep.mubr.bf16.mxu0 0
    %748 = vmatmul.mubr.bf16.gmra.mrb[0].mxu0 %v233
    %v749 = vpop.f32.mrb[0].mxu0
    %v750 = vadd.f32 %v149, %v749
    %v751 = vpop.f32.mrb[0].mxu0
    %v752 = vadd.f32 %v153, %v751
    %v753 = vpop.f32.mrb[0].mxu0
    %v754 = vadd.f32 %v149, %v753
    %v755 = vpop.f32.mrb[0].mxu0
    %v756 = vadd.f32 %v153, %v755
    %757 = vmatprep.mubr.bf16.mxu0 0
    %758 = vmatmul.mubr.bf16.gmra.mrb[0].mxu0 %v236
    %v759 = vpop.f32.mrb[0].mxu0
    %v760 = vadd.f32 %v149, %v759
    %v761 = vpop.f32.mrb[0].mxu0
    %v762 = vadd.f32 %v153, %v761
    %v763 = vpop.f32.mrb[0].mxu0
    %v764 = vadd.f32 %v149, %v763
    %v765 = vpop.f32.mrb[0].mxu0
    %v766 = vadd.f32 %v153, %v765
    %767 = vmatprep.mubr.bf16.mxu0 0
    %768 = vmatmul.mubr.bf16.gmra.mrb[0].mxu0 %v239
    %v769 = vpop.f32.mrb[0].mxu0
    %v770 = vadd.f32 %v149, %v769
    %v771 = vpop.f32.mrb[0].mxu0
    %v772 = vadd.f32 %v153, %v771
    %v773 = vpop.f32.mrb[0].mxu0
    %v774 = vadd.f32 %v149, %v773
    %v775 = vpop.f32.mrb[0].mxu0
    %v776 = vadd.f32 %v153, %v775
    %777 = vmatprep.mubr.bf16.mxu0 0
    %778 = vmatmul.mubr.bf16.gmra.mrb[0].mxu0 %v242
    %v779 = vpop.f32.mrb[0].mxu0
    %v780 = vadd.f32 %v149, %v779
    %v781 = vpop.f32.mrb[0].mxu0
    %v782 = vadd.f32 %v153, %v781
    %v783 = vpop.f32.mrb[0].mxu0
    %v784 = vadd.f32 %v149, %v783
    %v785 = vpop.f32.mrb[0].mxu0
    %v786 = vadd.f32 %v153, %v785
    %787 = vmatprep.mubr.bf16.mxu0 0
    %788 = vmatmul.mubr.bf16.gmra.mrb[0].mxu0 %v245
    %v789 = vpop.f32.mrb[0].mxu0
    %v790 = vadd.f32 %v149, %v789
    %v791 = vpop.f32.mrb[0].mxu0
    %v792 = vadd.f32 %v153, %v791
    %v793 = vpop.f32.mrb[0].mxu0
    %v794 = vadd.f32 %v149, %v793
    %v795 = vpop.f32.mrb[0].mxu0
    %v796 = vadd.f32 %v153, %v795
    %797 = vmatprep.mubr.bf16.mxu0 0
    %798 = vmatmul.mubr.bf16.gmra.mrb[0].mxu0 %v248
    %v799 = vpop.f32.mrb[0].mxu0
    %v800 = vadd.f32 %v149, %v799
    %v801 = vpop.f32.mrb[0].mxu0
    %v802 = vadd.f32 %v153, %v801
    %v803 = vpop.f32.mrb[0].mxu0
    %v804 = vadd.f32 %v149, %v803
    %v805 = vpop.f32.mrb[0].mxu0
    %v806 = vadd.f32 %v153, %v805
    %807 = vmatprep.mubr.bf16.mxu0 0
    %808 = vmatmul.mubr.bf16.gmra.mrb[0].mxu0 %v251
    %v809 = vpop.f32.mrb[0].mxu0
    %v810 = vadd.f32 %v149, %v809
    %v811 = vpop.f32.mrb[0].mxu0
    %v812 = vadd.f32 %v153, %v811
    %v813 = vpop.f32.mrb[0].mxu0
    %v814 = vadd.f32 %v149, %v813
    %v815 = vpop.f32.mrb[0].mxu0
    %v816 = vadd.f32 %v153, %v815
    %817 = vmatprep.mubr.bf16.mxu0 0
    %818 = vmatmul.mubr.bf16.gmra.mrb[0].mxu0 %v254
    %v819 = vpop.f32.mrb[0].mxu0
    %v820 = vadd.f32 %v149, %v819
    %v821 = vpop.f32.mrb[0].mxu0
    %v822 = vadd.f32 %v153, %v821
    %v823 = vpop.f32.mrb[0].mxu0
    %v824 = vadd.f32 %v149, %v823
    %v825 = vpop.f32.mrb[0].mxu0
    %v826 = vadd.f32 %v153, %v825
    %827 = vmatprep.mubr.bf16.mxu0 0
    %828 = vmatmul.mubr.bf16.gmra.mrb[0].mxu0 %v257
    %v829 = vpop.f32.mrb[0].mxu0
    %v830 = vadd.f32 %v149, %v829
    %v831 = vpop.f32.mrb[0].mxu0
    %v832 = vadd.f32 %v153, %v831
    %v833 = vpop.f32.mrb[0].mxu0
    %v834 = vadd.f32 %v149, %v833
    %v835 = vpop.f32.mrb[0].mxu0
    %v836 = vadd.f32 %v153, %v835
    %837 = vdwg.mxu0
    %838 = vmatprep.subr.bf16.mxu0 %v201
    %839 = vmatpush1.bf16.msra.mxu0 %v200
    %840 = vmatprep.subr.bf16.mxu0 0
    %841 = vmatpush1.bf16.msra.mxu0 0
    %842 = vmatprep.subr.bf16.mxu0 0
    %843 = vmatpush1.bf16.msra.mxu0 0
    %844 = vmatprep.subr.bf16.mxu0 0
    %845 = vmatpush1.bf16.msra.mxu0 0
    %846 = vmatprep.subr.bf16.mxu0 0
    %847 = vmatpush1.bf16.msra.mxu0 0
    %848 = vmatprep.subr.bf16.mxu0 0
    %849 = vmatpush1.bf16.msra.mxu0 0
    %850 = vmatprep.subr.bf16.mxu0 0
    %851 = vmatpush1.bf16.msra.mxu0 0
    %852 = vmatprep.subr.bf16.mxu0 0
    %853 = vmatpush1.bf16.msra.mxu0 0
    %854 = vmatprep.subr.bf16.mxu0 0
    %855 = vmatpush1.bf16.msra.mxu0 0
    %856 = vmatprep.subr.bf16.mxu0 0
    %857 = vmatpush1.bf16.msra.mxu0 0
    %858 = vmatprep.subr.bf16.mxu0 0
    %859 = vmatpush1.bf16.msra.mxu0 0
    %860 = vmatprep.subr.bf16.mxu0 0
    %861 = vmatpush1.bf16.msra.mxu0 0
    %862 = vmatprep.subr.bf16.mxu0 0
    %863 = vmatpush1.bf16.msra.mxu0 0
    %864 = vmatprep.subr.bf16.mxu0 0
    %865 = vmatpush1.bf16.msra.mxu0 0
    %866 = vmatprep.subr.bf16.mxu0 0
    %867 = vmatpush1.bf16.msra.mxu0 0
    %868 = vmatprep.subr.bf16.mxu0 0
    %869 = vmatpush1.bf16.msra.mxu0 0
    %870 = vmatprep.mubr.bf16.mxu0 0
    %871 = vmatmul.mubr.bf16.gmra.mrb[0].mxu0 %v212
    %v872 = vpop.f32.mrb[0].mxu0
    %v873 = vadd.f32 %v157, %v872
    %v874 = vpop.f32.mrb[0].mxu0
    %v875 = vadd.f32 %v161, %v874
    %v876 = vpop.f32.mrb[0].mxu0
    %v877 = vadd.f32 %v157, %v876
    %v878 = vpop.f32.mrb[0].mxu0
    %v879 = vadd.f32 %v161, %v878
    %880 = vmatprep.mubr.bf16.mxu0 0
    %881 = vmatmul.mubr.bf16.gmra.mrb[0].mxu0 %v215
    %v882 = vpop.f32.mrb[0].mxu0
    %v883 = vadd.f32 %v157, %v882
    %v884 = vpop.f32.mrb[0].mxu0
    %v885 = vadd.f32 %v161, %v884
    %v886 = vpop.f32.mrb[0].mxu0
    %v887 = vadd.f32 %v157, %v886
    %v888 = vpop.f32.mrb[0].mxu0
    %v889 = vadd.f32 %v161, %v888
    %890 = vmatprep.mubr.bf16.mxu0 0
    %891 = vmatmul.mubr.bf16.gmra.mrb[0].mxu0 %v218
    %v892 = vpop.f32.mrb[0].mxu0
    %v893 = vadd.f32 %v157, %v892
    %v894 = vpop.f32.mrb[0].mxu0
    %v895 = vadd.f32 %v161, %v894
    %v896 = vpop.f32.mrb[0].mxu0
    %v897 = vadd.f32 %v157, %v896
    %v898 = vpop.f32.mrb[0].mxu0
    %v899 = vadd.f32 %v161, %v898
    %900 = vmatprep.mubr.bf16.mxu0 0
    %901 = vmatmul.mubr.bf16.gmra.mrb[0].mxu0 %v221
    %v902 = vpop.f32.mrb[0].mxu0
    %v903 = vadd.f32 %v157, %v902
    %v904 = vpop.f32.mrb[0].mxu0
    %v905 = vadd.f32 %v161, %v904
    %v906 = vpop.f32.mrb[0].mxu0
    %v907 = vadd.f32 %v157, %v906
    %v908 = vpop.f32.mrb[0].mxu0
    %v909 = vadd.f32 %v161, %v908
    %910 = vmatprep.mubr.bf16.mxu0 0
    %911 = vmatmul.mubr.bf16.gmra.mrb[0].mxu0 %v224
    %v912 = vpop.f32.mrb[0].mxu0
    %v913 = vadd.f32 %v157, %v912
    %v914 = vpop.f32.mrb[0].mxu0
    %v915 = vadd.f32 %v161, %v914
    %v916 = vpop.f32.mrb[0].mxu0
    %v917 = vadd.f32 %v157, %v916
    %v918 = vpop.f32.mrb[0].mxu0
    %v919 = vadd.f32 %v161, %v918
    %920 = vmatprep.mubr.bf16.mxu0 0
    %921 = vmatmul.mubr.bf16.gmra.mrb[0].mxu0 %v227
    %v922 = vpop.f32.mrb[0].mxu0
    %v923 = vadd.f32 %v157, %v922
    %v924 = vpop.f32.mrb[0].mxu0
    %v925 = vadd.f32 %v161, %v924
    %v926 = vpop.f32.mrb[0].mxu0
    %v927 = vadd.f32 %v157, %v926
    %v928 = vpop.f32.mrb[0].mxu0
    %v929 = vadd.f32 %v161, %v928
    %930 = vmatprep.mubr.bf16.mxu0 0
    %931 = vmatmul.mubr.bf16.gmra.mrb[0].mxu0 %v230
    %v932 = vpop.f32.mrb[0].mxu0
    %v933 = vadd.f32 %v157, %v932
    %v934 = vpop.f32.mrb[0].mxu0
    %v935 = vadd.f32 %v161, %v934
    %v936 = vpop.f32.mrb[0].mxu0
    %v937 = vadd.f32 %v157, %v936
    %v938 = vpop.f32.mrb[0].mxu0
    %v939 = vadd.f32 %v161, %v938
    %940 = vmatprep.mubr.bf16.mxu0 0
    %941 = vmatmul.mubr.bf16.gmra.mrb[0].mxu0 %v233
    %v942 = vpop.f32.mrb[0].mxu0
    %v943 = vadd.f32 %v157, %v942
    %v944 = vpop.f32.mrb[0].mxu0
    %v945 = vadd.f32 %v161, %v944
    %v946 = vpop.f32.mrb[0].mxu0
    %v947 = vadd.f32 %v157, %v946
    %v948 = vpop.f32.mrb[0].mxu0
    %v949 = vadd.f32 %v161, %v948
    %950 = vmatprep.mubr.bf16.mxu0 0
    %951 = vmatmul.mubr.bf16.gmra.mrb[0].mxu0 %v236
    %v952 = vpop.f32.mrb[0].mxu0
    %v953 = vadd.f32 %v157, %v952
    %v954 = vpop.f32.mrb[0].mxu0
    %v955 = vadd.f32 %v161, %v954
    %v956 = vpop.f32.mrb[0].mxu0
    %v957 = vadd.f32 %v157, %v956
    %v958 = vpop.f32.mrb[0].mxu0
    %v959 = vadd.f32 %v161, %v958
    %960 = vmatprep.mubr.bf16.mxu0 0
    %961 = vmatmul.mubr.bf16.gmra.mrb[0].mxu0 %v239
    %v962 = vpop.f32.mrb[0].mxu0
    %v963 = vadd.f32 %v157, %v962
    %v964 = vpop.f32.mrb[0].mxu0
    %v965 = vadd.f32 %v161, %v964
    %v966 = vpop.f32.mrb[0].mxu0
    %v967 = vadd.f32 %v157, %v966
    %v968 = vpop.f32.mrb[0].mxu0
    %v969 = vadd.f32 %v161, %v968
    %970 = vmatprep.mubr.bf16.mxu0 0
    %971 = vmatmul.mubr.bf16.gmra.mrb[0].mxu0 %v242
    %v972 = vpop.f32.mrb[0].mxu0
    %v973 = vadd.f32 %v157, %v972
    %v974 = vpop.f32.mrb[0].mxu0
    %v975 = vadd.f32 %v161, %v974
    %v976 = vpop.f32.mrb[0].mxu0
    %v977 = vadd.f32 %v157, %v976
    %v978 = vpop.f32.mrb[0].mxu0
    %v979 = vadd.f32 %v161, %v978
    %980 = vmatprep.mubr.bf16.mxu0 0
    %981 = vmatmul.mubr.bf16.gmra.mrb[0].mxu0 %v245
    %v982 = vpop.f32.mrb[0].mxu0
    %v983 = vadd.f32 %v157, %v982
    %v984 = vpop.f32.mrb[0].mxu0
    %v985 = vadd.f32 %v161, %v984
    %v986 = vpop.f32.mrb[0].mxu0
    %v987 = vadd.f32 %v157, %v986
    %v988 = vpop.f32.mrb[0].mxu0
    %v989 = vadd.f32 %v161, %v988
    %990 = vmatprep.mubr.bf16.mxu0 0
    %991 = vmatmul.mubr.bf16.gmra.mrb[0].mxu0 %v248
    %v992 = vpop.f32.mrb[0].mxu0
    %v993 = vadd.f32 %v157, %v992
    %v994 = vpop.f32.mrb[0].mxu0
    %v995 = vadd.f32 %v161, %v994
    %v996 = vpop.f32.mrb[0].mxu0
    %v997 = vadd.f32 %v157, %v996
    %v998 = vpop.f32.mrb[0].mxu0
    %v999 = vadd.f32 %v161, %v998
    %1000 = vmatprep.mubr.bf16.mxu0 0
    %1001 = vmatmul.mubr.bf16.gmra.mrb[0].mxu0 %v251
    %v1002 = vpop.f32.mrb[0].mxu0
    %v1003 = vadd.f32 %v157, %v1002
    %v1004 = vpop.f32.mrb[0].mxu0
    %v1005 = vadd.f32 %v161, %v1004
    %v1006 = vpop.f32.mrb[0].mxu0
    %v1007 = vadd.f32 %v157, %v1006
    %v1008 = vpop.f32.mrb[0].mxu0
    %v1009 = vadd.f32 %v161, %v1008
    %1010 = vmatprep.mubr.bf16.mxu0 0
    %1011 = vmatmul.mubr.bf16.gmra.mrb[0].mxu0 %v254
    %v1012 = vpop.f32.mrb[0].mxu0
    %v1013 = vadd.f32 %v157, %v1012
    %v1014 = vpop.f32.mrb[0].mxu0
    %v1015 = vadd.f32 %v161, %v1014
    %v1016 = vpop.f32.mrb[0].mxu0
    %v1017 = vadd.f32 %v157, %v1016
    %v1018 = vpop.f32.mrb[0].mxu0
    %v1019 = vadd.f32 %v161, %v1018
    %1020 = vmatprep.mubr.bf16.mxu0 0
    %1021 = vmatmul.mubr.bf16.gmra.mrb[0].mxu0 %v257
    %v1022 = vpop.f32.mrb[0].mxu0
    %v1023 = vadd.f32 %v157, %v1022
    %v1024 = vpop.f32.mrb[0].mxu0
    %v1025 = vadd.f32 %v161, %v1024
    %v1026 = vpop.f32.mrb[0].mxu0
    %v1027 = vadd.f32 %v157, %v1026
    %v1028 = vpop.f32.mrb[0].mxu0
    %v1029 = vadd.f32 %v161, %v1028
    %1030 = vdwg.mxu0
    %v1031 = vtanh.pop %v294
    %v1032 = vtanh.pop %v296
    %v1033 = vtanh.pop %v487
    %v1034 = vtanh.pop %v489
    %v1035 = vtanh.pop %v680
    %v1036 = vtanh.pop %v682
    %v1037 = vtanh.pop %v873
    %v1038 = vtanh.pop %v875
    %v1039 = vtanh.pop %v298
    %v1040 = vtanh.pop %v300
    %v1041 = vtanh.pop %v491
    %v1042 = vtanh.pop %v493
    %v1043 = vtanh.pop %v684
    %v1044 = vtanh.pop %v686
    %v1045 = vtanh.pop %v877
    %v1046 = vtanh.pop %v879
    %v1047 = vtanh.pop %v304
    %v1048 = vtanh.pop %v306
    %v1049 = vtanh.pop %v497
    %v1050 = vtanh.pop %v499
    %v1051 = vtanh.pop %v690
    %v1052 = vtanh.pop %v692
    %v1053 = vtanh.pop %v883
    %v1054 = vtanh.pop %v885
    %v1055 = vtanh.pop %v308
    %v1056 = vtanh.pop %v310
    %v1057 = vtanh.pop %v501
    %v1058 = vtanh.pop %v503
    %v1059 = vtanh.pop %v694
    %v1060 = vtanh.pop %v696
    %v1061 = vtanh.pop %v887
    %v1062 = vtanh.pop %v889
    %v1063 = vtanh.pop %v314
    %v1064 = vtanh.pop %v316
    %v1065 = vtanh.pop %v507
    %v1066 = vtanh.pop %v509
    %v1067 = vtanh.pop %v700
    %v1068 = vtanh.pop %v702
    %v1069 = vtanh.pop %v893
    %v1070 = vtanh.pop %v895
    %v1071 = vtanh.pop %v318
    %v1072 = vtanh.pop %v320
    %v1073 = vtanh.pop %v511
    %v1074 = vtanh.pop %v513
    %v1075 = vtanh.pop %v704
    %v1076 = vtanh.pop %v706
    %v1077 = vtanh.pop %v897
    %v1078 = vtanh.pop %v899
    %v1079 = vtanh.pop %v324
    %v1080 = vtanh.pop %v326
    %v1081 = vtanh.pop %v517
    %v1082 = vtanh.pop %v519
    %v1083 = vtanh.pop %v710
    %v1084 = vtanh.pop %v712
    %v1085 = vtanh.pop %v903
    %v1086 = vtanh.pop %v905
    %v1087 = vtanh.pop %v328
    %v1088 = vtanh.pop %v330
    %v1089 = vtanh.pop %v521
    %v1090 = vtanh.pop %v523
    %v1091 = vtanh.pop %v714
    %v1092 = vtanh.pop %v716
    %v1093 = vtanh.pop %v907
    %v1094 = vtanh.pop %v909
    %v1095 = vtanh.pop %v334
    %v1096 = vtanh.pop %v336
    %v1097 = vtanh.pop %v527
    %v1098 = vtanh.pop %v529
    %v1099 = vtanh.pop %v720
    %v1100 = vtanh.pop %v722
    %v1101 = vtanh.pop %v913
    %v1102 = vtanh.pop %v915
    %v1103 = vtanh.pop %v338
    %v1104 = vtanh.pop %v340
    %v1105 = vtanh.pop %v531
    %v1106 = vtanh.pop %v533
    %v1107 = vtanh.pop %v724
    %v1108 = vtanh.pop %v726
    %v1109 = vtanh.pop %v917
    %v1110 = vtanh.pop %v919
    %v1111 = vtanh.pop %v344
    %v1112 = vtanh.pop %v346
    %v1113 = vtanh.pop %v537
    %v1114 = vtanh.pop %v539
    %v1115 = vtanh.pop %v730
    %v1116 = vtanh.pop %v732
    %v1117 = vtanh.pop %v923
    %v1118 = vtanh.pop %v925
    %v1119 = vtanh.pop %v348
    %v1120 = vtanh.pop %v350
    %v1121 = vtanh.pop %v541
    %v1122 = vtanh.pop %v543
    %v1123 = vtanh.pop %v734
    %v1124 = vtanh.pop %v736
    %v1125 = vtanh.pop %v927
    %v1126 = vtanh.pop %v929
    %v1127 = vtanh.pop %v354
    %v1128 = vtanh.pop %v356
    %v1129 = vtanh.pop %v547
    %v1130 = vtanh.pop %v549
    %v1131 = vtanh.pop %v740
    %v1132 = vtanh.pop %v742
    %v1133 = vtanh.pop %v933
    %v1134 = vtanh.pop %v935
    %v1135 = vtanh.pop %v358
    %v1136 = vtanh.pop %v360
    %v1137 = vtanh.pop %v551
    %v1138 = vtanh.pop %v553
    %v1139 = vtanh.pop %v744
    %v1140 = vtanh.pop %v746
    %v1141 = vtanh.pop %v937
    %v1142 = vtanh.pop %v939
    %v1143 = vtanh.pop %v364
    %v1144 = vtanh.pop %v366
    %v1145 = vtanh.pop %v557
    %v1146 = vtanh.pop %v559
    %v1147 = vtanh.pop %v750
    %v1148 = vtanh.pop %v752
    %v1149 = vtanh.pop %v943
    %v1150 = vtanh.pop %v945
    %v1151 = vtanh.pop %v368
    %v1152 = vtanh.pop %v370
    %v1153 = vtanh.pop %v561
    %v1154 = vtanh.pop %v563
    %v1155 = vtanh.pop %v754
    %v1156 = vtanh.pop %v756
    %v1157 = vtanh.pop %v947
    %v1158 = vtanh.pop %v949
    %v1159 = vtanh.pop %v374
    %v1160 = vtanh.pop %v376
    %v1161 = vtanh.pop %v567
    %v1162 = vtanh.pop %v569
    %v1163 = vtanh.pop %v760
    %v1164 = vtanh.pop %v762
    %v1165 = vtanh.pop %v953
    %v1166 = vtanh.pop %v955
    %v1167 = vtanh.pop %v378
    %v1168 = vtanh.pop %v380
    %v1169 = vtanh.pop %v571
    %v1170 = vtanh.pop %v573
    %v1171 = vtanh.pop %v764
    %v1172 = vtanh.pop %v766
    %v1173 = vtanh.pop %v957
    %v1174 = vtanh.pop %v959
    %v1175 = vtanh.pop %v384
    %v1176 = vtanh.pop %v386
    %v1177 = vtanh.pop %v577
    %v1178 = vtanh.pop %v579
    %v1179 = vtanh.pop %v770
    %v1180 = vtanh.pop %v772
    %v1181 = vtanh.pop %v963
    %v1182 = vtanh.pop %v965
    %v1183 = vtanh.pop %v388
    %v1184 = vtanh.pop %v390
    %v1185 = vtanh.pop %v581
    %v1186 = vtanh.pop %v583
    %v1187 = vtanh.pop %v774
    %v1188 = vtanh.pop %v776
    %v1189 = vtanh.pop %v967
    %v1190 = vtanh.pop %v969
    %v1191 = vtanh.pop %v394
    %v1192 = vtanh.pop %v396
    %v1193 = vtanh.pop %v587
    %v1194 = vtanh.pop %v589
    %v1195 = vtanh.pop %v780
    %v1196 = vtanh.pop %v782
    %v1197 = vtanh.pop %v973
    %v1198 = vtanh.pop %v975
    %v1199 = vtanh.pop %v398
    %v1200 = vtanh.pop %v400
    %v1201 = vtanh.pop %v591
    %v1202 = vtanh.pop %v593
    %v1203 = vtanh.pop %v784
    %v1204 = vtanh.pop %v786
    %v1205 = vtanh.pop %v977
    %v1206 = vtanh.pop %v979
    %v1207 = vtanh.pop %v404
    %v1208 = vtanh.pop %v406
    %v1209 = vtanh.pop %v597
    %v1210 = vtanh.pop %v599
    %v1211 = vtanh.pop %v790
    %v1212 = vtanh.pop %v792
    %v1213 = vtanh.pop %v983
    %v1214 = vtanh.pop %v985
    %v1215 = vtanh.pop %v408
    %v1216 = vtanh.pop %v410
    %v1217 = vtanh.pop %v601
    %v1218 = vtanh.pop %v603
    %v1219 = vtanh.pop %v794
    %v1220 = vtanh.pop %v796
    %v1221 = vtanh.pop %v987
    %v1222 = vtanh.pop %v989
    %v1223 = vtanh.pop %v414
    %v1224 = vtanh.pop %v416
    %v1225 = vtanh.pop %v607
    %v1226 = vtanh.pop %v609
    %v1227 = vtanh.pop %v800
    %v1228 = vtanh.pop %v802
    %v1229 = vtanh.pop %v993
    %v1230 = vtanh.pop %v995
    %v1231 = vtanh.pop %v418
    %v1232 = vtanh.pop %v420
    %v1233 = vtanh.pop %v611
    %v1234 = vtanh.pop %v613
    %v1235 = vtanh.pop %v804
    %v1236 = vtanh.pop %v806
    %v1237 = vtanh.pop %v997
    %v1238 = vtanh.pop %v999
    %v1239 = vtanh.pop %v424
    %v1240 = vtanh.pop %v426
    %v1241 = vtanh.pop %v617
    %v1242 = vtanh.pop %v619
    %v1243 = vtanh.pop %v810
    %v1244 = vtanh.pop %v812
    %v1245 = vtanh.pop %v1003
    %v1246 = vtanh.pop %v1005
    %v1247 = vtanh.pop %v428
    %v1248 = vtanh.pop %v430
    %v1249 = vtanh.pop %v621
    %v1250 = vtanh.pop %v623
    %v1251 = vtanh.pop %v814
    %v1252 = vtanh.pop %v816
    %v1253 = vtanh.pop %v1007
    %v1254 = vtanh.pop %v1009
    %v1255 = vtanh.pop %v434
    %v1256 = vtanh.pop %v436
    %v1257 = vtanh.pop %v627
    %v1258 = vtanh.pop %v629
    %v1259 = vtanh.pop %v820
    %v1260 = vtanh.pop %v822
    %v1261 = vtanh.pop %v1013
    %v1262 = vtanh.pop %v1015
    %v1263 = vtanh.pop %v438
    %v1264 = vtanh.pop %v440
    %v1265 = vtanh.pop %v631
    %v1266 = vtanh.pop %v633
    %v1267 = vtanh.pop %v824
    %v1268 = vtanh.pop %v826
    %v1269 = vtanh.pop %v1017
    %v1270 = vtanh.pop %v1019
    %v1271 = vtanh.pop %v444
    %v1272 = vtanh.pop %v446
    %v1273 = vtanh.pop %v637
    %v1274 = vtanh.pop %v639
    %v1275 = vtanh.pop %v830
    %v1276 = vtanh.pop %v832
    %v1277 = vtanh.pop %v1023
    %v1278 = vtanh.pop %v1025
    %v1279 = vtanh.pop %v448
    %v1280 = vtanh.pop %v450
    %v1281 = vtanh.pop %v641
    %v1282 = vtanh.pop %v643
    %v1283 = vtanh.pop %v834
    %v1284 = vtanh.pop %v836
    %v1285 = vtanh.pop %v1027
    %v1286 = vtanh.pop %v1029
    %v1287 = vpack.c.bf16 %v1039, %v1031
    %v1288 = vpack.c.bf16 %v1040, %v1032
    %v1289 = vpack.c.bf16 %v1041, %v1033
    %v1290 = vpack.c.bf16 %v1042, %v1034
    %v1291 = vpack.c.bf16 %v1055, %v1047
    %v1292 = vpack.c.bf16 %v1056, %v1048
    %v1293 = vpack.c.bf16 %v1057, %v1049
    %v1294 = vpack.c.bf16 %v1058, %v1050
    %v1295 = vpack.c.bf16 %v1071, %v1063
    %v1296 = vpack.c.bf16 %v1072, %v1064
    %v1297 = vpack.c.bf16 %v1073, %v1065
    %v1298 = vpack.c.bf16 %v1074, %v1066
    %v1299 = vpack.c.bf16 %v1087, %v1079
    %v1300 = vpack.c.bf16 %v1088, %v1080
    %v1301 = vpack.c.bf16 %v1089, %v1081
    %v1302 = vpack.c.bf16 %v1090, %v1082
    %v1303 = vpack.c.bf16 %v1103, %v1095
    %v1304 = vpack.c.bf16 %v1104, %v1096
    %v1305 = vpack.c.bf16 %v1105, %v1097
    %v1306 = vpack.c.bf16 %v1106, %v1098
    %v1307 = vpack.c.bf16 %v1119, %v1111
    %v1308 = vpack.c.bf16 %v1120, %v1112
    %v1309 = vpack.c.bf16 %v1121, %v1113
    %v1310 = vpack.c.bf16 %v1122, %v1114
    %v1311 = vpack.c.bf16 %v1135, %v1127
    %v1312 = vpack.c.bf16 %v1136, %v1128
    %v1313 = vpack.c.bf16 %v1137, %v1129
    %v1314 = vpack.c.bf16 %v1138, %v1130
    %v1315 = vpack.c.bf16 %v1151, %v1143
    %v1316 = vpack.c.bf16 %v1152, %v1144
    %v1317 = vpack.c.bf16 %v1153, %v1145
    %v1318 = vpack.c.bf16 %v1154, %v1146
    %v1319 = vpack.c.bf16 %v1167, %v1159
    %v1320 = vpack.c.bf16 %v1168, %v1160
    %v1321 = vpack.c.bf16 %v1169, %v1161
    %v1322 = vpack.c.bf16 %v1170, %v1162
    %v1323 = vpack.c.bf16 %v1183, %v1175
    %v1324 = vpack.c.bf16 %v1184, %v1176
    %v1325 = vpack.c.bf16 %v1185, %v1177
    %v1326 = vpack.c.bf16 %v1186, %v1178
    %v1327 = vpack.c.bf16 %v1199, %v1191
    %v1328 = vpack.c.bf16 %v1200, %v1192
    %v1329 = vpack.c.bf16 %v1201, %v1193
    %v1330 = vpack.c.bf16 %v1202, %v1194
    %v1331 = vpack.c.bf16 %v1215, %v1207
    %v1332 = vpack.c.bf16 %v1216, %v1208
    %v1333 = vpack.c.bf16 %v1217, %v1209
    %v1334 = vpack.c.bf16 %v1218, %v1210
    %v1335 = vpack.c.bf16 %v1231, %v1223
    %v1336 = vpack.c.bf16 %v1232, %v1224
    %v1337 = vpack.c.bf16 %v1233, %v1225
    %v1338 = vpack.c.bf16 %v1234, %v1226
    %v1339 = vpack.c.bf16 %v1247, %v1239
    %v1340 = vpack.c.bf16 %v1248, %v1240
    %v1341 = vpack.c.bf16 %v1249, %v1241
    %v1342 = vpack.c.bf16 %v1250, %v1242
    %v1343 = vpack.c.bf16 %v1263, %v1255
    %v1344 = vpack.c.bf16 %v1264, %v1256
    %v1345 = vpack.c.bf16 %v1265, %v1257
    %v1346 = vpack.c.bf16 %v1266, %v1258
    %v1347 = vpack.c.bf16 %v1279, %v1271
    %v1348 = vpack.c.bf16 %v1280, %v1272
    %v1349 = vpack.c.bf16 %v1281, %v1273
    %v1350 = vpack.c.bf16 %v1282, %v1274
    %v1351 = vpack.c.bf16 %v1043, %v1035
    %v1352 = vpack.c.bf16 %v1044, %v1036
    %v1353 = vpack.c.bf16 %v1045, %v1037
    %v1354 = vpack.c.bf16 %v1046, %v1038
    %v1355 = vpack.c.bf16 %v1059, %v1051
    %v1356 = vpack.c.bf16 %v1060, %v1052
    %v1357 = vpack.c.bf16 %v1061, %v1053
    %v1358 = vpack.c.bf16 %v1062, %v1054
    %v1359 = vpack.c.bf16 %v1075, %v1067
    %v1360 = vpack.c.bf16 %v1076, %v1068
    %v1361 = vpack.c.bf16 %v1077, %v1069
    %v1362 = vpack.c.bf16 %v1078, %v1070
    %v1363 = vpack.c.bf16 %v1091, %v1083
    %v1364 = vpack.c.bf16 %v1092, %v1084
    %v1365 = vpack.c.bf16 %v1093, %v1085
    %v1366 = vpack.c.bf16 %v1094, %v1086
    %v1367 = vpack.c.bf16 %v1107, %v1099
    %v1368 = vpack.c.bf16 %v1108, %v1100
    %v1369 = vpack.c.bf16 %v1109, %v1101
    %v1370 = vpack.c.bf16 %v1110, %v1102
    %v1371 = vpack.c.bf16 %v1123, %v1115
    %v1372 = vpack.c.bf16 %v1124, %v1116
    %v1373 = vpack.c.bf16 %v1125, %v1117
    %v1374 = vpack.c.bf16 %v1126, %v1118
    %v1375 = vpack.c.bf16 %v1139, %v1131
    %v1376 = vpack.c.bf16 %v1140, %v1132
    %v1377 = vpack.c.bf16 %v1141, %v1133
    %v1378 = vpack.c.bf16 %v1142, %v1134
    %v1379 = vpack.c.bf16 %v1155, %v1147
    %v1380 = vpack.c.bf16 %v1156, %v1148
    %v1381 = vpack.c.bf16 %v1157, %v1149
    %v1382 = vpack.c.bf16 %v1158, %v1150
    %v1383 = vpack.c.bf16 %v1171, %v1163
    %v1384 = vpack.c.bf16 %v1172, %v1164
    %v1385 = vpack.c.bf16 %v1173, %v1165
    %v1386 = vpack.c.bf16 %v1174, %v1166
    %v1387 = vpack.c.bf16 %v1187, %v1179
    %v1388 = vpack.c.bf16 %v1188, %v1180
    %v1389 = vpack.c.bf16 %v1189, %v1181
    %v1390 = vpack.c.bf16 %v1190, %v1182
    %v1391 = vpack.c.bf16 %v1203, %v1195
    %v1392 = vpack.c.bf16 %v1204, %v1196
    %v1393 = vpack.c.bf16 %v1205, %v1197
    %v1394 = vpack.c.bf16 %v1206, %v1198
    %v1395 = vpack.c.bf16 %v1219, %v1211
    %v1396 = vpack.c.bf16 %v1220, %v1212
    %v1397 = vpack.c.bf16 %v1221, %v1213
    %v1398 = vpack.c.bf16 %v1222, %v1214
    %v1399 = vpack.c.bf16 %v1235, %v1227
    %v1400 = vpack.c.bf16 %v1236, %v1228
    %v1401 = vpack.c.bf16 %v1237, %v1229
    %v1402 = vpack.c.bf16 %v1238, %v1230
    %v1403 = vpack.c.bf16 %v1251, %v1243
    %v1404 = vpack.c.bf16 %v1252, %v1244
    %v1405 = vpack.c.bf16 %v1253, %v1245
    %v1406 = vpack.c.bf16 %v1254, %v1246
    %v1407 = vpack.c.bf16 %v1267, %v1259
    %v1408 = vpack.c.bf16 %v1268, %v1260
    %v1409 = vpack.c.bf16 %v1269, %v1261
    %v1410 = vpack.c.bf16 %v1270, %v1262
    %v1411 = vpack.c.bf16 %v1283, %v1275
    %v1412 = vpack.c.bf16 %v1284, %v1276
    %v1413 = vpack.c.bf16 %v1285, %v1277
    %v1414 = vpack.c.bf16 %v1286, %v1278
    %v1415 = vld [vmem:[#allocation5] sm:$0xff]
    %v1416 = vld [vmem:[#allocation5 + $0x8] sm:$0xff]
    %v1417 = vld [vmem:[#allocation5 + $0x10] sm:$0xff]
    %v1418 = vld [vmem:[#allocation5 + $0x18] sm:$0xff]
    %v1419 = vld [vmem:[#allocation5 + $0x20] sm:$0xff]
    %v1420 = vld [vmem:[#allocation5 + $0x28] sm:$0xff]
    %v1421 = vld [vmem:[#allocation5 + $0x30] sm:$0xff]
    %v1422 = vld [vmem:[#allocation5 + $0x38] sm:$0xff]
    %v1423 = vld [vmem:[#allocation5 + $0x40] sm:$0xff]
    %v1424 = vld [vmem:[#allocation5 + $0x48] sm:$0xff]
    %v1425 = vld [vmem:[#allocation5 + $0x50] sm:$0xff]
    %v1426 = vld [vmem:[#allocation5 + $0x58] sm:$0xff]
    %v1427 = vld [vmem:[#allocation5 + $0x60] sm:$0xff]
    %v1428 = vld [vmem:[#allocation5 + $0x68] sm:$0xff]
    %v1429 = vld [vmem:[#allocation5 + $0x70] sm:$0xff]
    %v1430 = vld [vmem:[#allocation5 + $0x78] sm:$0xff]
    %v1431 = vld [vmem:[#allocation5 + $0x80] sm:$0xff]
    %v1432 = vld [vmem:[#allocation5 + $0x88] sm:$0xff]
    %v1433 = vld [vmem:[#allocation5 + $0x90] sm:$0xff]
    %v1434 = vld [vmem:[#allocation5 + $0x98] sm:$0xff]
    %v1435 = vld [vmem:[#allocation5 + $0xa0] sm:$0xff]
    %v1436 = vld [vmem:[#allocation5 + $0xa8] sm:$0xff]
    %v1437 = vld [vmem:[#allocation5 + $0xb0] sm:$0xff]
    %v1438 = vld [vmem:[#allocation5 + $0xb8] sm:$0xff]
    %v1439 = vld [vmem:[#allocation5 + $0xc0] sm:$0xff]
    %v1440 = vld [vmem:[#allocation5 + $0xc8] sm:$0xff]
    %v1441 = vld [vmem:[#allocation5 + $0xd0] sm:$0xff]
    %v1442 = vld [vmem:[#allocation5 + $0xd8] sm:$0xff]
    %v1443 = vld [vmem:[#allocation5 + $0xe0] sm:$0xff]
    %v1444 = vld [vmem:[#allocation5 + $0xe8] sm:$0xff]
    %v1445 = vld [vmem:[#allocation5 + $0xf0] sm:$0xff]
    %v1446 = vld [vmem:[#allocation5 + $0xf8] sm:$0xff]
    %v1447 = vld [vmem:[#allocation5 + $0x100] sm:$0xff]
    %v1448 = vld [vmem:[#allocation5 + $0x108] sm:$0xff]
    %v1449 = vld [vmem:[#allocation5 + $0x110] sm:$0xff]
    %v1450 = vld [vmem:[#allocation5 + $0x118] sm:$0xff]
    %v1451 = vld [vmem:[#allocation5 + $0x120] sm:$0xff]
    %v1452 = vld [vmem:[#allocation5 + $0x128] sm:$0xff]
    %v1453 = vld [vmem:[#allocation5 + $0x130] sm:$0xff]
    %v1454 = vld [vmem:[#allocation5 + $0x138] sm:$0xff]
    %v1455 = vld [vmem:[#allocation5 + $0x140] sm:$0xff]
    %v1456 = vld [vmem:[#allocation5 + $0x148] sm:$0xff]
    %v1457 = vld [vmem:[#allocation5 + $0x150] sm:$0xff]
    %v1458 = vld [vmem:[#allocation5 + $0x158] sm:$0xff]
    %v1459 = vld [vmem:[#allocation5 + $0x160] sm:$0xff]
    %v1460 = vld [vmem:[#allocation5 + $0x168] sm:$0xff]
    %v1461 = vld [vmem:[#allocation5 + $0x170] sm:$0xff]
    %v1462 = vld [vmem:[#allocation5 + $0x178] sm:$0xff]
    %v1463 = vld [vmem:[#allocation5 + $0x180] sm:$0xff]
    %v1464 = vld [vmem:[#allocation5 + $0x188] sm:$0xff]
    %v1465 = vld [vmem:[#allocation5 + $0x190] sm:$0xff]
    %v1466 = vld [vmem:[#allocation5 + $0x198] sm:$0xff]
    %v1467 = vld [vmem:[#allocation5 + $0x1a0] sm:$0xff]
    %v1468 = vld [vmem:[#allocation5 + $0x1a8] sm:$0xff]
    %v1469 = vld [vmem:[#allocation5 + $0x1b0] sm:$0xff]
    %v1470 = vld [vmem:[#allocation5 + $0x1b8] sm:$0xff]
    %v1471 = vld [vmem:[#allocation5 + $0x1c0] sm:$0xff]
    %v1472 = vld [vmem:[#allocation5 + $0x1c8] sm:$0xff]
    %v1473 = vld [vmem:[#allocation5 + $0x1d0] sm:$0xff]
    %v1474 = vld [vmem:[#allocation5 + $0x1d8] sm:$0xff]
    %v1475 = vld [vmem:[#allocation5 + $0x1e0] sm:$0xff]
    %v1476 = vld [vmem:[#allocation5 + $0x1e8] sm:$0xff]
    %v1477 = vld [vmem:[#allocation5 + $0x1f0] sm:$0xff]
    %v1478 = vld [vmem:[#allocation5 + $0x1f8] sm:$0xff]
    %v1543 = vunpack.c.l.b16 %v1415
    %v1544 = vunpack.c.h.b16 %v1415
    %v1545 = vunpack.c.l.b16 %v1416
    %v1546 = vunpack.c.h.b16 %v1416
    %v1547 = vunpack.c.l.b16 %v1417
    %v1548 = vunpack.c.h.b16 %v1417
    %v1549 = vunpack.c.l.b16 %v1418
    %v1550 = vunpack.c.h.b16 %v1418
    %v1551 = vunpack.c.l.b16 %v1419
    %v1552 = vunpack.c.h.b16 %v1419
    %v1553 = vunpack.c.l.b16 %v1420
    %v1554 = vunpack.c.h.b16 %v1420
    %v1555 = vunpack.c.l.b16 %v1421
    %v1556 = vunpack.c.h.b16 %v1421
    %v1557 = vunpack.c.l.b16 %v1422
    %v1558 = vunpack.c.h.b16 %v1422
    %v1559 = vunpack.c.l.b16 %v1423
    %v1560 = vunpack.c.h.b16 %v1423
    %v1561 = vunpack.c.l.b16 %v1424
    %v1562 = vunpack.c.h.b16 %v1424
    %v1563 = vunpack.c.l.b16 %v1425
    %v1564 = vunpack.c.h.b16 %v1425
    %v1565 = vunpack.c.l.b16 %v1426
    %v1566 = vunpack.c.h.b16 %v1426
    %v1567 = vunpack.c.l.b16 %v1427
    %v1568 = vunpack.c.h.b16 %v1427
    %v1569 = vunpack.c.l.b16 %v1428
    %v1570 = vunpack.c.h.b16 %v1428
    %v1571 = vunpack.c.l.b16 %v1429
    %v1572 = vunpack.c.h.b16 %v1429
    %v1573 = vunpack.c.l.b16 %v1430
    %v1574 = vunpack.c.h.b16 %v1430
    %v1575 = vunpack.c.l.b16 %v1431
    %v1576 = vunpack.c.h.b16 %v1431
    %v1577 = vunpack.c.l.b16 %v1432
    %v1578 = vunpack.c.h.b16 %v1432
    %v1579 = vunpack.c.l.b16 %v1433
    %v1580 = vunpack.c.h.b16 %v1433
    %v1581 = vunpack.c.l.b16 %v1434
    %v1582 = vunpack.c.h.b16 %v1434
    %v1583 = vunpack.c.l.b16 %v1435
    %v1584 = vunpack.c.h.b16 %v1435
    %v1585 = vunpack.c.l.b16 %v1436
    %v1586 = vunpack.c.h.b16 %v1436
    %v1587 = vunpack.c.l.b16 %v1437
    %v1588 = vunpack.c.h.b16 %v1437
    %v1589 = vunpack.c.l.b16 %v1438
    %v1590 = vunpack.c.h.b16 %v1438
    %v1591 = vunpack.c.l.b16 %v1439
    %v1592 = vunpack.c.h.b16 %v1439
    %v1593 = vunpack.c.l.b16 %v1440
    %v1594 = vunpack.c.h.b16 %v1440
    %v1595 = vunpack.c.l.b16 %v1441
    %v1596 = vunpack.c.h.b16 %v1441
    %v1597 = vunpack.c.l.b16 %v1442
    %v1598 = vunpack.c.h.b16 %v1442
    %v1599 = vunpack.c.l.b16 %v1443
    %v1600 = vunpack.c.h.b16 %v1443
    %v1601 = vunpack.c.l.b16 %v1444
    %v1602 = vunpack.c.h.b16 %v1444
    %v1603 = vunpack.c.l.b16 %v1445
    %v1604 = vunpack.c.h.b16 %v1445
    %v1605 = vunpack.c.l.b16 %v1446
    %v1606 = vunpack.c.h.b16 %v1446
    %v1607 = vunpack.c.l.b16 %v1447
    %v1608 = vunpack.c.h.b16 %v1447
    %v1609 = vunpack.c.l.b16 %v1448
    %v1610 = vunpack.c.h.b16 %v1448
    %v1611 = vunpack.c.l.b16 %v1449
    %v1612 = vunpack.c.h.b16 %v1449
    %v1613 = vunpack.c.l.b16 %v1450
    %v1614 = vunpack.c.h.b16 %v1450
    %v1615 = vunpack.c.l.b16 %v1451
    %v1616 = vunpack.c.h.b16 %v1451
    %v1617 = vunpack.c.l.b16 %v1452
    %v1618 = vunpack.c.h.b16 %v1452
    %v1619 = vunpack.c.l.b16 %v1453
    %v1620 = vunpack.c.h.b16 %v1453
    %v1621 = vunpack.c.l.b16 %v1454
    %v1622 = vunpack.c.h.b16 %v1454
    %v1623 = vunpack.c.l.b16 %v1455
    %v1624 = vunpack.c.h.b16 %v1455
    %v1625 = vunpack.c.l.b16 %v1456
    %v1626 = vunpack.c.h.b16 %v1456
    %v1627 = vunpack.c.l.b16 %v1457
    %v1628 = vunpack.c.h.b16 %v1457
    %v1629 = vunpack.c.l.b16 %v1458
    %v1630 = vunpack.c.h.b16 %v1458
    %v1631 = vunpack.c.l.b16 %v1459
    %v1632 = vunpack.c.h.b16 %v1459
    %v1633 = vunpack.c.l.b16 %v1460
    %v1634 = vunpack.c.h.b16 %v1460
    %v1635 = vunpack.c.l.b16 %v1461
    %v1636 = vunpack.c.h.b16 %v1461
    %v1637 = vunpack.c.l.b16 %v1462
    %v1638 = vunpack.c.h.b16 %v1462
    %v1639 = vunpack.c.l.b16 %v1463
    %v1640 = vunpack.c.h.b16 %v1463
    %v1641 = vunpack.c.l.b16 %v1464
    %v1642 = vunpack.c.h.b16 %v1464
    %v1643 = vunpack.c.l.b16 %v1465
    %v1644 = vunpack.c.h.b16 %v1465
    %v1645 = vunpack.c.l.b16 %v1466
    %v1646 = vunpack.c.h.b16 %v1466
    %v1647 = vunpack.c.l.b16 %v1467
    %v1648 = vunpack.c.h.b16 %v1467
    %v1649 = vunpack.c.l.b16 %v1468
    %v1650 = vunpack.c.h.b16 %v1468
    %v1651 = vunpack.c.l.b16 %v1469
    %v1652 = vunpack.c.h.b16 %v1469
    %v1653 = vunpack.c.l.b16 %v1470
    %v1654 = vunpack.c.h.b16 %v1470
    %v1655 = vunpack.c.l.b16 %v1471
    %v1656 = vunpack.c.h.b16 %v1471
    %v1657 = vunpack.c.l.b16 %v1472
    %v1658 = vunpack.c.h.b16 %v1472
    %v1659 = vunpack.c.l.b16 %v1473
    %v1660 = vunpack.c.h.b16 %v1473
    %v1661 = vunpack.c.l.b16 %v1474
    %v1662 = vunpack.c.h.b16 %v1474
    %v1663 = vunpack.c.l.b16 %v1475
    %v1664 = vunpack.c.h.b16 %v1475
    %v1665 = vunpack.c.l.b16 %v1476
    %v1666 = vunpack.c.h.b16 %v1476
    %v1667 = vunpack.c.l.b16 %v1477
    %v1668 = vunpack.c.h.b16 %v1477
    %v1669 = vunpack.c.l.b16 %v1478
    %v1670 = vunpack.c.h.b16 %v1478
    %v1671 = vpack.c.b16 %v1545, %v1543
    %v1672 = vpack.c.b16 %v1546, %v1544
    %v1673 = vpack.c.b16 %v1549, %v1547
    %v1674 = vpack.c.b16 %v1550, %v1548
    %v1675 = vpack.c.b16 %v1553, %v1551
    %v1676 = vpack.c.b16 %v1554, %v1552
    %v1677 = vpack.c.b16 %v1557, %v1555
    %v1678 = vpack.c.b16 %v1558, %v1556
    %v1679 = vpack.c.b16 %v1561, %v1559
    %v1680 = vpack.c.b16 %v1562, %v1560
    %v1681 = vpack.c.b16 %v1565, %v1563
    %v1682 = vpack.c.b16 %v1566, %v1564
    %v1683 = vpack.c.b16 %v1569, %v1567
    %v1684 = vpack.c.b16 %v1570, %v1568
    %v1685 = vpack.c.b16 %v1573, %v1571
    %v1686 = vpack.c.b16 %v1574, %v1572
    %v1687 = vpack.c.b16 %v1577, %v1575
    %v1688 = vpack.c.b16 %v1578, %v1576
    %v1689 = vpack.c.b16 %v1581, %v1579
    %v1690 = vpack.c.b16 %v1582, %v1580
    %v1691 = vpack.c.b16 %v1585, %v1583
    %v1692 = vpack.c.b16 %v1586, %v1584
    %v1693 = vpack.c.b16 %v1589, %v1587
    %v1694 = vpack.c.b16 %v1590, %v1588
    %v1695 = vpack.c.b16 %v1593, %v1591
    %v1696 = vpack.c.b16 %v1594, %v1592
    %v1697 = vpack.c.b16 %v1597, %v1595
    %v1698 = vpack.c.b16 %v1598, %v1596
    %v1699 = vpack.c.b16 %v1601, %v1599
    %v1700 = vpack.c.b16 %v1602, %v1600
    %v1701 = vpack.c.b16 %v1605, %v1603
    %v1702 = vpack.c.b16 %v1606, %v1604
    %v1703 = vpack.c.b16 %v1609, %v1607
    %v1704 = vpack.c.b16 %v1610, %v1608
    %v1705 = vpack.c.b16 %v1613, %v1611
    %v1706 = vpack.c.b16 %v1614, %v1612
    %v1707 = vpack.c.b16 %v1617, %v1615
    %v1708 = vpack.c.b16 %v1618, %v1616
    %v1709 = vpack.c.b16 %v1621, %v1619
    %v1710 = vpack.c.b16 %v1622, %v1620
    %v1711 = vpack.c.b16 %v1625, %v1623
    %v1712 = vpack.c.b16 %v1626, %v1624
    %v1713 = vpack.c.b16 %v1629, %v1627
    %v1714 = vpack.c.b16 %v1630, %v1628
    %v1715 = vpack.c.b16 %v1633, %v1631
    %v1716 = vpack.c.b16 %v1634, %v1632
    %v1717 = vpack.c.b16 %v1637, %v1635
    %v1718 = vpack.c.b16 %v1638, %v1636
    %v1719 = vpack.c.b16 %v1641, %v1639
    %v1720 = vpack.c.b16 %v1642, %v1640
    %v1721 = vpack.c.b16 %v1645, %v1643
    %v1722 = vpack.c.b16 %v1646, %v1644
    %v1723 = vpack.c.b16 %v1649, %v1647
    %v1724 = vpack.c.b16 %v1650, %v1648
    %v1725 = vpack.c.b16 %v1653, %v1651
    %v1726 = vpack.c.b16 %v1654, %v1652
    %v1727 = vpack.c.b16 %v1657, %v1655
    %v1728 = vpack.c.b16 %v1658, %v1656
    %v1729 = vpack.c.b16 %v1661, %v1659
    %v1730 = vpack.c.b16 %v1662, %v1660
    %v1731 = vpack.c.b16 %v1665, %v1663
    %v1732 = vpack.c.b16 %v1666, %v1664
    %v1733 = vpack.c.b16 %v1669, %v1667
    %v1734 = vpack.c.b16 %v1670, %v1668
    %1799 = vmatprep.subr.bf16.mxu0 %v1672
    %1800 = vmatpush1.bf16.msra.mxu0 %v1671
    %1801 = vmatprep.subr.bf16.mxu0 %v1674
    %1802 = vmatpush1.bf16.msra.mxu0 %v1673
    %1803 = vmatprep.subr.bf16.mxu0 %v1676
    %1804 = vmatpush1.bf16.msra.mxu0 %v1675
    %1805 = vmatprep.subr.bf16.mxu0 %v1678
    %1806 = vmatpush1.bf16.msra.mxu0 %v1677
    %1807 = vmatprep.subr.bf16.mxu0 %v1680
    %1808 = vmatpush1.bf16.msra.mxu0 %v1679
    %1809 = vmatprep.subr.bf16.mxu0 %v1682
    %1810 = vmatpush1.bf16.msra.mxu0 %v1681
    %1811 = vmatprep.subr.bf16.mxu0 %v1684
    %1812 = vmatpush1.bf16.msra.mxu0 %v1683
    %1813 = vmatprep.subr.bf16.mxu0 %v1686
    %1814 = vmatpush1.bf16.msra.mxu0 %v1685
    %1815 = vmatprep.subr.bf16.mxu0 %v1688
    %1816 = vmatpush1.bf16.msra.mxu0 %v1687
    %1817 = vmatprep.subr.bf16.mxu0 %v1690
    %1818 = vmatpush1.bf16.msra.mxu0 %v1689
    %1819 = vmatprep.subr.bf16.mxu0 %v1692
    %1820 = vmatpush1.bf16.msra.mxu0 %v1691
    %1821 = vmatprep.subr.bf16.mxu0 %v1694
    %1822 = vmatpush1.bf16.msra.mxu0 %v1693
    %1823 = vmatprep.subr.bf16.mxu0 %v1696
    %1824 = vmatpush1.bf16.msra.mxu0 %v1695
    %1825 = vmatprep.subr.bf16.mxu0 %v1698
    %1826 = vmatpush1.bf16.msra.mxu0 %v1697
    %1827 = vmatprep.subr.bf16.mxu0 %v1700
    %1828 = vmatpush1.bf16.msra.mxu0 %v1699
    %1829 = vmatprep.subr.bf16.mxu0 %v1702
    %1830 = vmatpush1.bf16.msra.mxu0 %v1701
    %1831 = vmatprep.mubr.bf16.mxu0 %v1288
    %1832 = vmatmul.mubr.bf16.gmra.mrb[0].mxu0 %v1287
    %v1833 = vpop.f32.mrb[0].mxu0
    %v1834 = vadd.f32 0.0, %v1833
    %v1835 = vpop.f32.mrb[0].mxu0
    %v1836 = vadd.f32 0.0, %v1835
    %v1837 = vpop.f32.mrb[0].mxu0
    %v1838 = vadd.f32 0.0, %v1837
    %v1839 = vpop.f32.mrb[0].mxu0
    %v1840 = vadd.f32 0.0, %v1839
    %1841 = vmatprep.mubr.bf16.mxu0 %v1292
    %1842 = vmatmul.mubr.bf16.gmra.mrb[0].mxu0 %v1291
    %v1843 = vpop.f32.mrb[0].mxu0
    %v1844 = vadd.f32 0.0, %v1843
    %v1845 = vpop.f32.mrb[0].mxu0
    %v1846 = vadd.f32 0.0, %v1845
    %v1847 = vpop.f32.mrb[0].mxu0
    %v1848 = vadd.f32 0.0, %v1847
    %v1849 = vpop.f32.mrb[0].mxu0
    %v1850 = vadd.f32 0.0, %v1849
    %1851 = vmatprep.mubr.bf16.mxu0 %v1296
    %1852 = vmatmul.mubr.bf16.gmra.mrb[0].mxu0 %v1295
    %v1853 = vpop.f32.mrb[0].mxu0
    %v1854 = vadd.f32 0.0, %v1853
    %v1855 = vpop.f32.mrb[0].mxu0
    %v1856 = vadd.f32 0.0, %v1855
    %v1857 = vpop.f32.mrb[0].mxu0
    %v1858 = vadd.f32 0.0, %v1857
    %v1859 = vpop.f32.mrb[0].mxu0
    %v1860 = vadd.f32 0.0, %v1859
    %1861 = vmatprep.mubr.bf16.mxu0 %v1300
    %1862 = vmatmul.mubr.bf16.gmra.mrb[0].mxu0 %v1299
    %v1863 = vpop.f32.mrb[0].mxu0
    %v1864 = vadd.f32 0.0, %v1863
    %v1865 = vpop.f32.mrb[0].mxu0
    %v1866 = vadd.f32 0.0, %v1865
    %v1867 = vpop.f32.mrb[0].mxu0
    %v1868 = vadd.f32 0.0, %v1867
    %v1869 = vpop.f32.mrb[0].mxu0
    %v1870 = vadd.f32 0.0, %v1869
    %1871 = vmatprep.mubr.bf16.mxu0 %v1304
    %1872 = vmatmul.mubr.bf16.gmra.mrb[0].mxu0 %v1303
    %v1873 = vpop.f32.mrb[0].mxu0
    %v1874 = vadd.f32 0.0, %v1873
    %v1875 = vpop.f32.mrb[0].mxu0
    %v1876 = vadd.f32 0.0, %v1875
    %v1877 = vpop.f32.mrb[0].mxu0
    %v1878 = vadd.f32 0.0, %v1877
    %v1879 = vpop.f32.mrb[0].mxu0
    %v1880 = vadd.f32 0.0, %v1879
    %1881 = vmatprep.mubr.bf16.mxu0 %v1308
    %1882 = vmatmul.mubr.bf16.gmra.mrb[0].mxu0 %v1307
    %v1883 = vpop.f32.mrb[0].mxu0
    %v1884 = vadd.f32 0.0, %v1883
    %v1885 = vpop.f32.mrb[0].mxu0
    %v1886 = vadd.f32 0.0, %v1885
    %v1887 = vpop.f32.mrb[0].mxu0
    %v1888 = vadd.f32 0.0, %v1887
    %v1889 = vpop.f32.mrb[0].mxu0
    %v1890 = vadd.f32 0.0, %v1889
    %1891 = vmatprep.mubr.bf16.mxu0 %v1312
    %1892 = vmatmul.mubr.bf16.gmra.mrb[0].mxu0 %v1311
    %v1893 = vpop.f32.mrb[0].mxu0
    %v1894 = vadd.f32 0.0, %v1893
    %v1895 = vpop.f32.mrb[0].mxu0
    %v1896 = vadd.f32 0.0, %v1895
    %v1897 = vpop.f32.mrb[0].mxu0
    %v1898 = vadd.f32 0.0, %v1897
    %v1899 = vpop.f32.mrb[0].mxu0
    %v1900 = vadd.f32 0.0, %v1899
    %1901 = vmatprep.mubr.bf16.mxu0 %v1316
    %1902 = vmatmul.mubr.bf16.gmra.mrb[0].mxu0 %v1315
    %v1903 = vpop.f32.mrb[0].mxu0
    %v1904 = vadd.f32 0.0, %v1903
    %v1905 = vpop.f32.mrb[0].mxu0
    %v1906 = vadd.f32 0.0, %v1905
    %v1907 = vpop.f32.mrb[0].mxu0
    %v1908 = vadd.f32 0.0, %v1907
    %v1909 = vpop.f32.mrb[0].mxu0
    %v1910 = vadd.f32 0.0, %v1909
    %1911 = vmatprep.mubr.bf16.mxu0 %v1320
    %1912 = vmatmul.mubr.bf16.gmra.mrb[0].mxu0 %v1319
    %v1913 = vpop.f32.mrb[0].mxu0
    %v1914 = vadd.f32 0.0, %v1913
    %v1915 = vpop.f32.mrb[0].mxu0
    %v1916 = vadd.f32 0.0, %v1915
    %v1917 = vpop.f32.mrb[0].mxu0
    %v1918 = vadd.f32 0.0, %v1917
    %v1919 = vpop.f32.mrb[0].mxu0
    %v1920 = vadd.f32 0.0, %v1919
    %1921 = vmatprep.mubr.bf16.mxu0 %v1324
    %1922 = vmatmul.mubr.bf16.gmra.mrb[0].mxu0 %v1323
    %v1923 = vpop.f32.mrb[0].mxu0
    %v1924 = vadd.f32 0.0, %v1923
    %v1925 = vpop.f32.mrb[0].mxu0
    %v1926 = vadd.f32 0.0, %v1925
    %v1927 = vpop.f32.mrb[0].mxu0
    %v1928 = vadd.f32 0.0, %v1927
    %v1929 = vpop.f32.mrb[0].mxu0
    %v1930 = vadd.f32 0.0, %v1929
    %1931 = vmatprep.mubr.bf16.mxu0 %v1328
    %1932 = vmatmul.mubr.bf16.gmra.mrb[0].mxu0 %v1327
    %v1933 = vpop.f32.mrb[0].mxu0
    %v1934 = vadd.f32 0.0, %v1933
    %v1935 = vpop.f32.mrb[0].mxu0
    %v1936 = vadd.f32 0.0, %v1935
    %v1937 = vpop.f32.mrb[0].mxu0
    %v1938 = vadd.f32 0.0, %v1937
    %v1939 = vpop.f32.mrb[0].mxu0
    %v1940 = vadd.f32 0.0, %v1939
    %1941 = vmatprep.mubr.bf16.mxu0 %v1332
    %1942 = vmatmul.mubr.bf16.gmra.mrb[0].mxu0 %v1331
    %v1943 = vpop.f32.mrb[0].mxu0
    %v1944 = vadd.f32 0.0, %v1943
    %v1945 = vpop.f32.mrb[0].mxu0
    %v1946 = vadd.f32 0.0, %v1945
    %v1947 = vpop.f32.mrb[0].mxu0
    %v1948 = vadd.f32 0.0, %v1947
    %v1949 = vpop.f32.mrb[0].mxu0
    %v1950 = vadd.f32 0.0, %v1949
    %1951 = vmatprep.mubr.bf16.mxu0 %v1336
    %1952 = vmatmul.mubr.bf16.gmra.mrb[0].mxu0 %v1335
    %v1953 = vpop.f32.mrb[0].mxu0
    %v1954 = vadd.f32 0.0, %v1953
    %v1955 = vpop.f32.mrb[0].mxu0
    %v1956 = vadd.f32 0.0, %v1955
    %v1957 = vpop.f32.mrb[0].mxu0
    %v1958 = vadd.f32 0.0, %v1957
    %v1959 = vpop.f32.mrb[0].mxu0
    %v1960 = vadd.f32 0.0, %v1959
    %1961 = vmatprep.mubr.bf16.mxu0 %v1340
    %1962 = vmatmul.mubr.bf16.gmra.mrb[0].mxu0 %v1339
    %v1963 = vpop.f32.mrb[0].mxu0
    %v1964 = vadd.f32 0.0, %v1963
    %v1965 = vpop.f32.mrb[0].mxu0
    %v1966 = vadd.f32 0.0, %v1965
    %v1967 = vpop.f32.mrb[0].mxu0
    %v1968 = vadd.f32 0.0, %v1967
    %v1969 = vpop.f32.mrb[0].mxu0
    %v1970 = vadd.f32 0.0, %v1969
    %1971 = vmatprep.mubr.bf16.mxu0 %v1344
    %1972 = vmatmul.mubr.bf16.gmra.mrb[0].mxu0 %v1343
    %v1973 = vpop.f32.mrb[0].mxu0
    %v1974 = vadd.f32 0.0, %v1973
    %v1975 = vpop.f32.mrb[0].mxu0
    %v1976 = vadd.f32 0.0, %v1975
    %v1977 = vpop.f32.mrb[0].mxu0
    %v1978 = vadd.f32 0.0, %v1977
    %v1979 = vpop.f32.mrb[0].mxu0
    %v1980 = vadd.f32 0.0, %v1979
    %1981 = vmatprep.mubr.bf16.mxu0 %v1348
    %1982 = vmatmul.mubr.bf16.gmra.mrb[0].mxu0 %v1347
    %v1983 = vpop.f32.mrb[0].mxu0
    %v1984 = vadd.f32 0.0, %v1983
    %v1985 = vpop.f32.mrb[0].mxu0
    %v1986 = vadd.f32 0.0, %v1985
    %v1987 = vpop.f32.mrb[0].mxu0
    %v1988 = vadd.f32 0.0, %v1987
    %v1989 = vpop.f32.mrb[0].mxu0
    %v1990 = vadd.f32 0.0, %v1989
    %1991 = vdwg.mxu0
    %1992 = vmatprep.subr.bf16.mxu0 %v1704
    %1993 = vmatpush1.bf16.msra.mxu0 %v1703
    %1994 = vmatprep.subr.bf16.mxu0 %v1706
    %1995 = vmatpush1.bf16.msra.mxu0 %v1705
    %1996 = vmatprep.subr.bf16.mxu0 %v1708
    %1997 = vmatpush1.bf16.msra.mxu0 %v1707
    %1998 = vmatprep.subr.bf16.mxu0 %v1710
    %1999 = vmatpush1.bf16.msra.mxu0 %v1709
    %2000 = vmatprep.subr.bf16.mxu0 %v1712
    %2001 = vmatpush1.bf16.msra.mxu0 %v1711
    %2002 = vmatprep.subr.bf16.mxu0 %v1714
    %2003 = vmatpush1.bf16.msra.mxu0 %v1713
    %2004 = vmatprep.subr.bf16.mxu0 %v1716
    %2005 = vmatpush1.bf16.msra.mxu0 %v1715
    %2006 = vmatprep.subr.bf16.mxu0 %v1718
    %2007 = vmatpush1.bf16.msra.mxu0 %v1717
    %2008 = vmatprep.subr.bf16.mxu0 %v1720
    %2009 = vmatpush1.bf16.msra.mxu0 %v1719
    %2010 = vmatprep.subr.bf16.mxu0 %v1722
    %2011 = vmatpush1.bf16.msra.mxu0 %v1721
    %2012 = vmatprep.subr.bf16.mxu0 %v1724
    %2013 = vmatpush1.bf16.msra.mxu0 %v1723
    %2014 = vmatprep.subr.bf16.mxu0 %v1726
    %2015 = vmatpush1.bf16.msra.mxu0 %v1725
    %2016 = vmatprep.subr.bf16.mxu0 %v1728
    %2017 = vmatpush1.bf16.msra.mxu0 %v1727
    %2018 = vmatprep.subr.bf16.mxu0 %v1730
    %2019 = vmatpush1.bf16.msra.mxu0 %v1729
    %2020 = vmatprep.subr.bf16.mxu0 %v1732
    %2021 = vmatpush1.bf16.msra.mxu0 %v1731
    %2022 = vmatprep.subr.bf16.mxu0 %v1734
    %2023 = vmatpush1.bf16.msra.mxu0 %v1733
    %2024 = vmatprep.mubr.bf16.mxu0 %v1290
    %2025 = vmatmul.mubr.bf16.gmra.mrb[0].mxu0 %v1289
    %v2026 = vpop.f32.mrb[0].mxu0
    %v2027 = vadd.f32 %v1834, %v2026
    %v2028 = vpop.f32.mrb[0].mxu0
    %v2029 = vadd.f32 %v1836, %v2028
    %v2030 = vpop.f32.mrb[0].mxu0
    %v2031 = vadd.f32 %v1838, %v2030
    %v2032 = vpop.f32.mrb[0].mxu0
    %v2033 = vadd.f32 %v1840, %v2032
    %2034 = vmatprep.mubr.bf16.mxu0 %v1294
    %2035 = vmatmul.mubr.bf16.gmra.mrb[0].mxu0 %v1293
    %v2036 = vpop.f32.mrb[0].mxu0
    %v2037 = vadd.f32 %v1844, %v2036
    %v2038 = vpop.f32.mrb[0].mxu0
    %v2039 = vadd.f32 %v1846, %v2038
    %v2040 = vpop.f32.mrb[0].mxu0
    %v2041 = vadd.f32 %v1848, %v2040
    %v2042 = vpop.f32.mrb[0].mxu0
    %v2043 = vadd.f32 %v1850, %v2042
    %2044 = vmatprep.mubr.bf16.mxu0 %v1298
    %2045 = vmatmul.mubr.bf16.gmra.mrb[0].mxu0 %v1297
    %v2046 = vpop.f32.mrb[0].mxu0
    %v2047 = vadd.f32 %v1854, %v2046
    %v2048 = vpop.f32.mrb[0].mxu0
    %v2049 = vadd.f32 %v1856, %v2048
    %v2050 = vpop.f32.mrb[0].mxu0
    %v2051 = vadd.f32 %v1858, %v2050
    %v2052 = vpop.f32.mrb[0].mxu0
    %v2053 = vadd.f32 %v1860, %v2052
    %2054 = vmatprep.mubr.bf16.mxu0 %v1302
    %2055 = vmatmul.mubr.bf16.gmra.mrb[0].mxu0 %v1301
    %v2056 = vpop.f32.mrb[0].mxu0
    %v2057 = vadd.f32 %v1864, %v2056
    %v2058 = vpop.f32.mrb[0].mxu0
    %v2059 = vadd.f32 %v1866, %v2058
    %v2060 = vpop.f32.mrb[0].mxu0
    %v2061 = vadd.f32 %v1868, %v2060
    %v2062 = vpop.f32.mrb[0].mxu0
    %v2063 = vadd.f32 %v1870, %v2062
    %2064 = vmatprep.mubr.bf16.mxu0 %v1306
    %2065 = vmatmul.mubr.bf16.gmra.mrb[0].mxu0 %v1305
    %v2066 = vpop.f32.mrb[0].mxu0
    %v2067 = vadd.f32 %v1874, %v2066
    %v2068 = vpop.f32.mrb[0].mxu0
    %v2069 = vadd.f32 %v1876, %v2068
    %v2070 = vpop.f32.mrb[0].mxu0
    %v2071 = vadd.f32 %v1878, %v2070
    %v2072 = vpop.f32.mrb[0].mxu0
    %v2073 = vadd.f32 %v1880, %v2072
    %2074 = vmatprep.mubr.bf16.mxu0 %v1310
    %2075 = vmatmul.mubr.bf16.gmra.mrb[0].mxu0 %v1309
    %v2076 = vpop.f32.mrb[0].mxu0
    %v2077 = vadd.f32 %v1884, %v2076
    %v2078 = vpop.f32.mrb[0].mxu0
    %v2079 = vadd.f32 %v1886, %v2078
    %v2080 = vpop.f32.mrb[0].mxu0
    %v2081 = vadd.f32 %v1888, %v2080
    %v2082 = vpop.f32.mrb[0].mxu0
    %v2083 = vadd.f32 %v1890, %v2082
    %2084 = vmatprep.mubr.bf16.mxu0 %v1314
    %2085 = vmatmul.mubr.bf16.gmra.mrb[0].mxu0 %v1313
    %v2086 = vpop.f32.mrb[0].mxu0
    %v2087 = vadd.f32 %v1894, %v2086
    %v2088 = vpop.f32.mrb[0].mxu0
    %v2089 = vadd.f32 %v1896, %v2088
    %v2090 = vpop.f32.mrb[0].mxu0
    %v2091 = vadd.f32 %v1898, %v2090
    %v2092 = vpop.f32.mrb[0].mxu0
    %v2093 = vadd.f32 %v1900, %v2092
    %2094 = vmatprep.mubr.bf16.mxu0 %v1318
    %2095 = vmatmul.mubr.bf16.gmra.mrb[0].mxu0 %v1317
    %v2096 = vpop.f32.mrb[0].mxu0
    %v2097 = vadd.f32 %v1904, %v2096
    %v2098 = vpop.f32.mrb[0].mxu0
    %v2099 = vadd.f32 %v1906, %v2098
    %v2100 = vpop.f32.mrb[0].mxu0
    %v2101 = vadd.f32 %v1908, %v2100
    %v2102 = vpop.f32.mrb[0].mxu0
    %v2103 = vadd.f32 %v1910, %v2102
    %2104 = vmatprep.mubr.bf16.mxu0 %v1322
    %2105 = vmatmul.mubr.bf16.gmra.mrb[0].mxu0 %v1321
    %v2106 = vpop.f32.mrb[0].mxu0
    %v2107 = vadd.f32 %v1914, %v2106
    %v2108 = vpop.f32.mrb[0].mxu0
    %v2109 = vadd.f32 %v1916, %v2108
    %v2110 = vpop.f32.mrb[0].mxu0
    %v2111 = vadd.f32 %v1918, %v2110
    %v2112 = vpop.f32.mrb[0].mxu0
    %v2113 = vadd.f32 %v1920, %v2112
    %2114 = vmatprep.mubr.bf16.mxu0 %v1326
    %2115 = vmatmul.mubr.bf16.gmra.mrb[0].mxu0 %v1325
    %v2116 = vpop.f32.mrb[0].mxu0
    %v2117 = vadd.f32 %v1924, %v2116
    %v2118 = vpop.f32.mrb[0].mxu0
    %v2119 = vadd.f32 %v1926, %v2118
    %v2120 = vpop.f32.mrb[0].mxu0
    %v2121 = vadd.f32 %v1928, %v2120
    %v2122 = vpop.f32.mrb[0].mxu0
    %v2123 = vadd.f32 %v1930, %v2122
    %2124 = vmatprep.mubr.bf16.mxu0 %v1330
    %2125 = vmatmul.mubr.bf16.gmra.mrb[0].mxu0 %v1329
    %v2126 = vpop.f32.mrb[0].mxu0
    %v2127 = vadd.f32 %v1934, %v2126
    %v2128 = vpop.f32.mrb[0].mxu0
    %v2129 = vadd.f32 %v1936, %v2128
    %v2130 = vpop.f32.mrb[0].mxu0
    %v2131 = vadd.f32 %v1938, %v2130
    %v2132 = vpop.f32.mrb[0].mxu0
    %v2133 = vadd.f32 %v1940, %v2132
    %2134 = vmatprep.mubr.bf16.mxu0 %v1334
    %2135 = vmatmul.mubr.bf16.gmra.mrb[0].mxu0 %v1333
    %v2136 = vpop.f32.mrb[0].mxu0
    %v2137 = vadd.f32 %v1944, %v2136
    %v2138 = vpop.f32.mrb[0].mxu0
    %v2139 = vadd.f32 %v1946, %v2138
    %v2140 = vpop.f32.mrb[0].mxu0
    %v2141 = vadd.f32 %v1948, %v2140
    %v2142 = vpop.f32.mrb[0].mxu0
    %v2143 = vadd.f32 %v1950, %v2142
    %2144 = vmatprep.mubr.bf16.mxu0 %v1338
    %2145 = vmatmul.mubr.bf16.gmra.mrb[0].mxu0 %v1337
    %v2146 = vpop.f32.mrb[0].mxu0
    %v2147 = vadd.f32 %v1954, %v2146
    %v2148 = vpop.f32.mrb[0].mxu0
    %v2149 = vadd.f32 %v1956, %v2148
    %v2150 = vpop.f32.mrb[0].mxu0
    %v2151 = vadd.f32 %v1958, %v2150
    %v2152 = vpop.f32.mrb[0].mxu0
    %v2153 = vadd.f32 %v1960, %v2152
    %2154 = vmatprep.mubr.bf16.mxu0 %v1342
    %2155 = vmatmul.mubr.bf16.gmra.mrb[0].mxu0 %v1341
    %v2156 = vpop.f32.mrb[0].mxu0
    %v2157 = vadd.f32 %v1964, %v2156
    %v2158 = vpop.f32.mrb[0].mxu0
    %v2159 = vadd.f32 %v1966, %v2158
    %v2160 = vpop.f32.mrb[0].mxu0
    %v2161 = vadd.f32 %v1968, %v2160
    %v2162 = vpop.f32.mrb[0].mxu0
    %v2163 = vadd.f32 %v1970, %v2162
    %2164 = vmatprep.mubr.bf16.mxu0 %v1346
    %2165 = vmatmul.mubr.bf16.gmra.mrb[0].mxu0 %v1345
    %v2166 = vpop.f32.mrb[0].mxu0
    %v2167 = vadd.f32 %v1974, %v2166
    %v2168 = vpop.f32.mrb[0].mxu0
    %v2169 = vadd.f32 %v1976, %v2168
    %v2170 = vpop.f32.mrb[0].mxu0
    %v2171 = vadd.f32 %v1978, %v2170
    %v2172 = vpop.f32.mrb[0].mxu0
    %v2173 = vadd.f32 %v1980, %v2172
    %2174 = vmatprep.mubr.bf16.mxu0 %v1350
    %2175 = vmatmul.mubr.bf16.gmra.mrb[0].mxu0 %v1349
    %v2176 = vpop.f32.mrb[0].mxu0
    %v2177 = vadd.f32 %v1984, %v2176
    %v2178 = vpop.f32.mrb[0].mxu0
    %v2179 = vadd.f32 %v1986, %v2178
    %v2180 = vpop.f32.mrb[0].mxu0
    %v2181 = vadd.f32 %v1988, %v2180
    %v2182 = vpop.f32.mrb[0].mxu0
    %v2183 = vadd.f32 %v1990, %v2182
    %2184 = vdwg.mxu0
    %v2185 = vld [vmem:[#allocation7] sm:$0xff]
    %v2186 = vld [vmem:[#allocation7 + $0x8] sm:$0xff]
    %v2187 = vld [vmem:[#allocation7 + $0x10] sm:$0xff]
    %v2188 = vld [vmem:[#allocation7 + $0x18] sm:$0xff]
    %v2189 = vld [vmem:[#allocation7 + $0x20] sm:$0xff]
    %v2190 = vld [vmem:[#allocation7 + $0x28] sm:$0xff]
    %v2191 = vld [vmem:[#allocation7 + $0x30] sm:$0xff]
    %v2192 = vld [vmem:[#allocation7 + $0x38] sm:$0xff]
    %v2193 = vld [vmem:[#allocation7 + $0x40] sm:$0xff]
    %v2194 = vld [vmem:[#allocation7 + $0x48] sm:$0xff]
    %v2195 = vld [vmem:[#allocation7 + $0x50] sm:$0xff]
    %v2196 = vld [vmem:[#allocation7 + $0x58] sm:$0xff]
    %v2197 = vld [vmem:[#allocation7 + $0x60] sm:$0xff]
    %v2198 = vld [vmem:[#allocation7 + $0x68] sm:$0xff]
    %v2199 = vld [vmem:[#allocation7 + $0x70] sm:$0xff]
    %v2200 = vld [vmem:[#allocation7 + $0x78] sm:$0xff]
    %v2201 = vld [vmem:[#allocation7 + $0x80] sm:$0xff]
    %v2202 = vld [vmem:[#allocation7 + $0x88] sm:$0xff]
    %v2203 = vld [vmem:[#allocation7 + $0x90] sm:$0xff]
    %v2204 = vld [vmem:[#allocation7 + $0x98] sm:$0xff]
    %v2205 = vld [vmem:[#allocation7 + $0xa0] sm:$0xff]
    %v2206 = vld [vmem:[#allocation7 + $0xa8] sm:$0xff]
    %v2207 = vld [vmem:[#allocation7 + $0xb0] sm:$0xff]
    %v2208 = vld [vmem:[#allocation7 + $0xb8] sm:$0xff]
    %v2209 = vld [vmem:[#allocation7 + $0xc0] sm:$0xff]
    %v2210 = vld [vmem:[#allocation7 + $0xc8] sm:$0xff]
    %v2211 = vld [vmem:[#allocation7 + $0xd0] sm:$0xff]
    %v2212 = vld [vmem:[#allocation7 + $0xd8] sm:$0xff]
    %v2213 = vld [vmem:[#allocation7 + $0xe0] sm:$0xff]
    %v2214 = vld [vmem:[#allocation7 + $0xe8] sm:$0xff]
    %v2215 = vld [vmem:[#allocation7 + $0xf0] sm:$0xff]
    %v2216 = vld [vmem:[#allocation7 + $0xf8] sm:$0xff]
    %v2217 = vld [vmem:[#allocation7 + $0x100] sm:$0xff]
    %v2218 = vld [vmem:[#allocation7 + $0x108] sm:$0xff]
    %v2219 = vld [vmem:[#allocation7 + $0x110] sm:$0xff]
    %v2220 = vld [vmem:[#allocation7 + $0x118] sm:$0xff]
    %v2221 = vld [vmem:[#allocation7 + $0x120] sm:$0xff]
    %v2222 = vld [vmem:[#allocation7 + $0x128] sm:$0xff]
    %v2223 = vld [vmem:[#allocation7 + $0x130] sm:$0xff]
    %v2224 = vld [vmem:[#allocation7 + $0x138] sm:$0xff]
    %v2225 = vld [vmem:[#allocation7 + $0x140] sm:$0xff]
    %v2226 = vld [vmem:[#allocation7 + $0x148] sm:$0xff]
    %v2227 = vld [vmem:[#allocation7 + $0x150] sm:$0xff]
    %v2228 = vld [vmem:[#allocation7 + $0x158] sm:$0xff]
    %v2229 = vld [vmem:[#allocation7 + $0x160] sm:$0xff]
    %v2230 = vld [vmem:[#allocation7 + $0x168] sm:$0xff]
    %v2231 = vld [vmem:[#allocation7 + $0x170] sm:$0xff]
    %v2232 = vld [vmem:[#allocation7 + $0x178] sm:$0xff]
    %v2233 = vld [vmem:[#allocation7 + $0x180] sm:$0xff]
    %v2234 = vld [vmem:[#allocation7 + $0x188] sm:$0xff]
    %v2235 = vld [vmem:[#allocation7 + $0x190] sm:$0xff]
    %v2236 = vld [vmem:[#allocation7 + $0x198] sm:$0xff]
    %v2237 = vld [vmem:[#allocation7 + $0x1a0] sm:$0xff]
    %v2238 = vld [vmem:[#allocation7 + $0x1a8] sm:$0xff]
    %v2239 = vld [vmem:[#allocation7 + $0x1b0] sm:$0xff]
    %v2240 = vld [vmem:[#allocation7 + $0x1b8] sm:$0xff]
    %v2241 = vld [vmem:[#allocation7 + $0x1c0] sm:$0xff]
    %v2242 = vld [vmem:[#allocation7 + $0x1c8] sm:$0xff]
    %v2243 = vld [vmem:[#allocation7 + $0x1d0] sm:$0xff]
    %v2244 = vld [vmem:[#allocation7 + $0x1d8] sm:$0xff]
    %v2245 = vld [vmem:[#allocation7 + $0x1e0] sm:$0xff]
    %v2246 = vld [vmem:[#allocation7 + $0x1e8] sm:$0xff]
    %v2247 = vld [vmem:[#allocation7 + $0x1f0] sm:$0xff]
    %v2248 = vld [vmem:[#allocation7 + $0x1f8] sm:$0xff]
    %v2313 = vunpack.c.l.b16 %v2185
    %v2314 = vunpack.c.h.b16 %v2185
    %v2315 = vunpack.c.l.b16 %v2186
    %v2316 = vunpack.c.h.b16 %v2186
    %v2317 = vunpack.c.l.b16 %v2187
    %v2318 = vunpack.c.h.b16 %v2187
    %v2319 = vunpack.c.l.b16 %v2188
    %v2320 = vunpack.c.h.b16 %v2188
    %v2321 = vunpack.c.l.b16 %v2189
    %v2322 = vunpack.c.h.b16 %v2189
    %v2323 = vunpack.c.l.b16 %v2190
    %v2324 = vunpack.c.h.b16 %v2190
    %v2325 = vunpack.c.l.b16 %v2191
    %v2326 = vunpack.c.h.b16 %v2191
    %v2327 = vunpack.c.l.b16 %v2192
    %v2328 = vunpack.c.h.b16 %v2192
    %v2329 = vunpack.c.l.b16 %v2193
    %v2330 = vunpack.c.h.b16 %v2193
    %v2331 = vunpack.c.l.b16 %v2194
    %v2332 = vunpack.c.h.b16 %v2194
    %v2333 = vunpack.c.l.b16 %v2195
    %v2334 = vunpack.c.h.b16 %v2195
    %v2335 = vunpack.c.l.b16 %v2196
    %v2336 = vunpack.c.h.b16 %v2196
    %v2337 = vunpack.c.l.b16 %v2197
    %v2338 = vunpack.c.h.b16 %v2197
    %v2339 = vunpack.c.l.b16 %v2198
    %v2340 = vunpack.c.h.b16 %v2198
    %v2341 = vunpack.c.l.b16 %v2199
    %v2342 = vunpack.c.h.b16 %v2199
    %v2343 = vunpack.c.l.b16 %v2200
    %v2344 = vunpack.c.h.b16 %v2200
    %v2345 = vunpack.c.l.b16 %v2201
    %v2346 = vunpack.c.h.b16 %v2201
    %v2347 = vunpack.c.l.b16 %v2202
    %v2348 = vunpack.c.h.b16 %v2202
    %v2349 = vunpack.c.l.b16 %v2203
    %v2350 = vunpack.c.h.b16 %v2203
    %v2351 = vunpack.c.l.b16 %v2204
    %v2352 = vunpack.c.h.b16 %v2204
    %v2353 = vunpack.c.l.b16 %v2205
    %v2354 = vunpack.c.h.b16 %v2205
    %v2355 = vunpack.c.l.b16 %v2206
    %v2356 = vunpack.c.h.b16 %v2206
    %v2357 = vunpack.c.l.b16 %v2207
    %v2358 = vunpack.c.h.b16 %v2207
    %v2359 = vunpack.c.l.b16 %v2208
    %v2360 = vunpack.c.h.b16 %v2208
    %v2361 = vunpack.c.l.b16 %v2209
    %v2362 = vunpack.c.h.b16 %v2209
    %v2363 = vunpack.c.l.b16 %v2210
    %v2364 = vunpack.c.h.b16 %v2210
    %v2365 = vunpack.c.l.b16 %v2211
    %v2366 = vunpack.c.h.b16 %v2211
    %v2367 = vunpack.c.l.b16 %v2212
    %v2368 = vunpack.c.h.b16 %v2212
    %v2369 = vunpack.c.l.b16 %v2213
    %v2370 = vunpack.c.h.b16 %v2213
    %v2371 = vunpack.c.l.b16 %v2214
    %v2372 = vunpack.c.h.b16 %v2214
    %v2373 = vunpack.c.l.b16 %v2215
    %v2374 = vunpack.c.h.b16 %v2215
    %v2375 = vunpack.c.l.b16 %v2216
    %v2376 = vunpack.c.h.b16 %v2216
    %v2377 = vunpack.c.l.b16 %v2217
    %v2378 = vunpack.c.h.b16 %v2217
    %v2379 = vunpack.c.l.b16 %v2218
    %v2380 = vunpack.c.h.b16 %v2218
    %v2381 = vunpack.c.l.b16 %v2219
    %v2382 = vunpack.c.h.b16 %v2219
    %v2383 = vunpack.c.l.b16 %v2220
    %v2384 = vunpack.c.h.b16 %v2220
    %v2385 = vunpack.c.l.b16 %v2221
    %v2386 = vunpack.c.h.b16 %v2221
    %v2387 = vunpack.c.l.b16 %v2222
    %v2388 = vunpack.c.h.b16 %v2222
    %v2389 = vunpack.c.l.b16 %v2223
    %v2390 = vunpack.c.h.b16 %v2223
    %v2391 = vunpack.c.l.b16 %v2224
    %v2392 = vunpack.c.h.b16 %v2224
    %v2393 = vunpack.c.l.b16 %v2225
    %v2394 = vunpack.c.h.b16 %v2225
    %v2395 = vunpack.c.l.b16 %v2226
    %v2396 = vunpack.c.h.b16 %v2226
    %v2397 = vunpack.c.l.b16 %v2227
    %v2398 = vunpack.c.h.b16 %v2227
    %v2399 = vunpack.c.l.b16 %v2228
    %v2400 = vunpack.c.h.b16 %v2228
    %v2401 = vunpack.c.l.b16 %v2229
    %v2402 = vunpack.c.h.b16 %v2229
    %v2403 = vunpack.c.l.b16 %v2230
    %v2404 = vunpack.c.h.b16 %v2230
    %v2405 = vunpack.c.l.b16 %v2231
    %v2406 = vunpack.c.h.b16 %v2231
    %v2407 = vunpack.c.l.b16 %v2232
    %v2408 = vunpack.c.h.b16 %v2232
    %v2409 = vunpack.c.l.b16 %v2233
    %v2410 = vunpack.c.h.b16 %v2233
    %v2411 = vunpack.c.l.b16 %v2234
    %v2412 = vunpack.c.h.b16 %v2234
    %v2413 = vunpack.c.l.b16 %v2235
    %v2414 = vunpack.c.h.b16 %v2235
    %v2415 = vunpack.c.l.b16 %v2236
    %v2416 = vunpack.c.h.b16 %v2236
    %v2417 = vunpack.c.l.b16 %v2237
    %v2418 = vunpack.c.h.b16 %v2237
    %v2419 = vunpack.c.l.b16 %v2238
    %v2420 = vunpack.c.h.b16 %v2238
    %v2421 = vunpack.c.l.b16 %v2239
    %v2422 = vunpack.c.h.b16 %v2239
    %v2423 = vunpack.c.l.b16 %v2240
    %v2424 = vunpack.c.h.b16 %v2240
    %v2425 = vunpack.c.l.b16 %v2241
    %v2426 = vunpack.c.h.b16 %v2241
    %v2427 = vunpack.c.l.b16 %v2242
    %v2428 = vunpack.c.h.b16 %v2242
    %v2429 = vunpack.c.l.b16 %v2243
    %v2430 = vunpack.c.h.b16 %v2243
    %v2431 = vunpack.c.l.b16 %v2244
    %v2432 = vunpack.c.h.b16 %v2244
    %v2433 = vunpack.c.l.b16 %v2245
    %v2434 = vunpack.c.h.b16 %v2245
    %v2435 = vunpack.c.l.b16 %v2246
    %v2436 = vunpack.c.h.b16 %v2246
    %v2437 = vunpack.c.l.b16 %v2247
    %v2438 = vunpack.c.h.b16 %v2247
    %v2439 = vunpack.c.l.b16 %v2248
    %v2440 = vunpack.c.h.b16 %v2248
    %v2441 = vpack.c.b16 %v2315, %v2313
    %v2442 = vpack.c.b16 %v2316, %v2314
    %v2443 = vpack.c.b16 %v2319, %v2317
    %v2444 = vpack.c.b16 %v2320, %v2318
    %v2445 = vpack.c.b16 %v2323, %v2321
    %v2446 = vpack.c.b16 %v2324, %v2322
    %v2447 = vpack.c.b16 %v2327, %v2325
    %v2448 = vpack.c.b16 %v2328, %v2326
    %v2449 = vpack.c.b16 %v2331, %v2329
    %v2450 = vpack.c.b16 %v2332, %v2330
    %v2451 = vpack.c.b16 %v2335, %v2333
    %v2452 = vpack.c.b16 %v2336, %v2334
    %v2453 = vpack.c.b16 %v2339, %v2337
    %v2454 = vpack.c.b16 %v2340, %v2338
    %v2455 = vpack.c.b16 %v2343, %v2341
    %v2456 = vpack.c.b16 %v2344, %v2342
    %v2457 = vpack.c.b16 %v2347, %v2345
    %v2458 = vpack.c.b16 %v2348, %v2346
    %v2459 = vpack.c.b16 %v2351, %v2349
    %v2460 = vpack.c.b16 %v2352, %v2350
    %v2461 = vpack.c.b16 %v2355, %v2353
    %v2462 = vpack.c.b16 %v2356, %v2354
    %v2463 = vpack.c.b16 %v2359, %v2357
    %v2464 = vpack.c.b16 %v2360, %v2358
    %v2465 = vpack.c.b16 %v2363, %v2361
    %v2466 = vpack.c.b16 %v2364, %v2362
    %v2467 = vpack.c.b16 %v2367, %v2365
    %v2468 = vpack.c.b16 %v2368, %v2366
    %v2469 = vpack.c.b16 %v2371, %v2369
    %v2470 = vpack.c.b16 %v2372, %v2370
    %v2471 = vpack.c.b16 %v2375, %v2373
    %v2472 = vpack.c.b16 %v2376, %v2374
    %v2473 = vpack.c.b16 %v2379, %v2377
    %v2474 = vpack.c.b16 %v2380, %v2378
    %v2475 = vpack.c.b16 %v2383, %v2381
    %v2476 = vpack.c.b16 %v2384, %v2382
    %v2477 = vpack.c.b16 %v2387, %v2385
    %v2478 = vpack.c.b16 %v2388, %v2386
    %v2479 = vpack.c.b16 %v2391, %v2389
    %v2480 = vpack.c.b16 %v2392, %v2390
    %v2481 = vpack.c.b16 %v2395, %v2393
    %v2482 = vpack.c.b16 %v2396, %v2394
    %v2483 = vpack.c.b16 %v2399, %v2397
    %v2484 = vpack.c.b16 %v2400, %v2398
    %v2485 = vpack.c.b16 %v2403, %v2401
    %v2486 = vpack.c.b16 %v2404, %v2402
    %v2487 = vpack.c.b16 %v2407, %v2405
    %v2488 = vpack.c.b16 %v2408, %v2406
    %v2489 = vpack.c.b16 %v2411, %v2409
    %v2490 = vpack.c.b16 %v2412, %v2410
    %v2491 = vpack.c.b16 %v2415, %v2413
    %v2492 = vpack.c.b16 %v2416, %v2414
    %v2493 = vpack.c.b16 %v2419, %v2417
    %v2494 = vpack.c.b16 %v2420, %v2418
    %v2495 = vpack.c.b16 %v2423, %v2421
    %v2496 = vpack.c.b16 %v2424, %v2422
    %v2497 = vpack.c.b16 %v2427, %v2425
    %v2498 = vpack.c.b16 %v2428, %v2426
    %v2499 = vpack.c.b16 %v2431, %v2429
    %v2500 = vpack.c.b16 %v2432, %v2430
    %v2501 = vpack.c.b16 %v2435, %v2433
    %v2502 = vpack.c.b16 %v2436, %v2434
    %v2503 = vpack.c.b16 %v2439, %v2437
    %v2504 = vpack.c.b16 %v2440, %v2438
    %2569 = vmatprep.subr.bf16.mxu0 %v2442
    %2570 = vmatpush1.bf16.msra.mxu0 %v2441
    %2571 = vmatprep.subr.bf16.mxu0 %v2444
    %2572 = vmatpush1.bf16.msra.mxu0 %v2443
    %2573 = vmatprep.subr.bf16.mxu0 %v2446
    %2574 = vmatpush1.bf16.msra.mxu0 %v2445
    %2575 = vmatprep.subr.bf16.mxu0 %v2448
    %2576 = vmatpush1.bf16.msra.mxu0 %v2447
    %2577 = vmatprep.subr.bf16.mxu0 %v2450
    %2578 = vmatpush1.bf16.msra.mxu0 %v2449
    %2579 = vmatprep.subr.bf16.mxu0 %v2452
    %2580 = vmatpush1.bf16.msra.mxu0 %v2451
    %2581 = vmatprep.subr.bf16.mxu0 %v2454
    %2582 = vmatpush1.bf16.msra.mxu0 %v2453
    %2583 = vmatprep.subr.bf16.mxu0 %v2456
    %2584 = vmatpush1.bf16.msra.mxu0 %v2455
    %2585 = vmatprep.subr.bf16.mxu0 %v2458
    %2586 = vmatpush1.bf16.msra.mxu0 %v2457
    %2587 = vmatprep.subr.bf16.mxu0 %v2460
    %2588 = vmatpush1.bf16.msra.mxu0 %v2459
    %2589 = vmatprep.subr.bf16.mxu0 %v2462
    %2590 = vmatpush1.bf16.msra.mxu0 %v2461
    %2591 = vmatprep.subr.bf16.mxu0 %v2464
    %2592 = vmatpush1.bf16.msra.mxu0 %v2463
    %2593 = vmatprep.subr.bf16.mxu0 %v2466
    %2594 = vmatpush1.bf16.msra.mxu0 %v2465
    %2595 = vmatprep.subr.bf16.mxu0 %v2468
    %2596 = vmatpush1.bf16.msra.mxu0 %v2467
    %2597 = vmatprep.subr.bf16.mxu0 %v2470
    %2598 = vmatpush1.bf16.msra.mxu0 %v2469
    %2599 = vmatprep.subr.bf16.mxu0 %v2472
    %2600 = vmatpush1.bf16.msra.mxu0 %v2471
    %2601 = vmatprep.mubr.bf16.mxu0 %v1352
    %2602 = vmatmul.mubr.bf16.gmra.mrb[0].mxu0 %v1351
    %v2603 = vpop.f32.mrb[0].mxu0
    %v2604 = vadd.f32 0.0, %v2603
    %v2605 = vpop.f32.mrb[0].mxu0
    %v2606 = vadd.f32 0.0, %v2605
    %v2607 = vpop.f32.mrb[0].mxu0
    %v2608 = vadd.f32 0.0, %v2607
    %v2609 = vpop.f32.mrb[0].mxu0
    %v2610 = vadd.f32 0.0, %v2609
    %2611 = vmatprep.mubr.bf16.mxu0 %v1356
    %2612 = vmatmul.mubr.bf16.gmra.mrb[0].mxu0 %v1355
    %v2613 = vpop.f32.mrb[0].mxu0
    %v2614 = vadd.f32 0.0, %v2613
    %v2615 = vpop.f32.mrb[0].mxu0
    %v2616 = vadd.f32 0.0, %v2615
    %v2617 = vpop.f32.mrb[0].mxu0
    %v2618 = vadd.f32 0.0, %v2617
    %v2619 = vpop.f32.mrb[0].mxu0
    %v2620 = vadd.f32 0.0, %v2619
    %2621 = vmatprep.mubr.bf16.mxu0 %v1360
    %2622 = vmatmul.mubr.bf16.gmra.mrb[0].mxu0 %v1359
    %v2623 = vpop.f32.mrb[0].mxu0
    %v2624 = vadd.f32 0.0, %v2623
    %v2625 = vpop.f32.mrb[0].mxu0
    %v2626 = vadd.f32 0.0, %v2625
    %v2627 = vpop.f32.mrb[0].mxu0
    %v2628 = vadd.f32 0.0, %v2627
    %v2629 = vpop.f32.mrb[0].mxu0
    %v2630 = vadd.f32 0.0, %v2629
    %2631 = vmatprep.mubr.bf16.mxu0 %v1364
    %2632 = vmatmul.mubr.bf16.gmra.mrb[0].mxu0 %v1363
    %v2633 = vpop.f32.mrb[0].mxu0
    %v2634 = vadd.f32 0.0, %v2633
    %v2635 = vpop.f32.mrb[0].mxu0
    %v2636 = vadd.f32 0.0, %v2635
    %v2637 = vpop.f32.mrb[0].mxu0
    %v2638 = vadd.f32 0.0, %v2637
    %v2639 = vpop.f32.mrb[0].mxu0
    %v2640 = vadd.f32 0.0, %v2639
    %2641 = vmatprep.mubr.bf16.mxu0 %v1368
    %2642 = vmatmul.mubr.bf16.gmra.mrb[0].mxu0 %v1367
    %v2643 = vpop.f32.mrb[0].mxu0
    %v2644 = vadd.f32 0.0, %v2643
    %v2645 = vpop.f32.mrb[0].mxu0
    %v2646 = vadd.f32 0.0, %v2645
    %v2647 = vpop.f32.mrb[0].mxu0
    %v2648 = vadd.f32 0.0, %v2647
    %v2649 = vpop.f32.mrb[0].mxu0
    %v2650 = vadd.f32 0.0, %v2649
    %2651 = vmatprep.mubr.bf16.mxu0 %v1372
    %2652 = vmatmul.mubr.bf16.gmra.mrb[0].mxu0 %v1371
    %v2653 = vpop.f32.mrb[0].mxu0
    %v2654 = vadd.f32 0.0, %v2653
    %v2655 = vpop.f32.mrb[0].mxu0
    %v2656 = vadd.f32 0.0, %v2655
    %v2657 = vpop.f32.mrb[0].mxu0
    %v2658 = vadd.f32 0.0, %v2657
    %v2659 = vpop.f32.mrb[0].mxu0
    %v2660 = vadd.f32 0.0, %v2659
    %2661 = vmatprep.mubr.bf16.mxu0 %v1376
    %2662 = vmatmul.mubr.bf16.gmra.mrb[0].mxu0 %v1375
    %v2663 = vpop.f32.mrb[0].mxu0
    %v2664 = vadd.f32 0.0, %v2663
    %v2665 = vpop.f32.mrb[0].mxu0
    %v2666 = vadd.f32 0.0, %v2665
    %v2667 = vpop.f32.mrb[0].mxu0
    %v2668 = vadd.f32 0.0, %v2667
    %v2669 = vpop.f32.mrb[0].mxu0
    %v2670 = vadd.f32 0.0, %v2669
    %2671 = vmatprep.mubr.bf16.mxu0 %v1380
    %2672 = vmatmul.mubr.bf16.gmra.mrb[0].mxu0 %v1379
    %v2673 = vpop.f32.mrb[0].mxu0
    %v2674 = vadd.f32 0.0, %v2673
    %v2675 = vpop.f32.mrb[0].mxu0
    %v2676 = vadd.f32 0.0, %v2675
    %v2677 = vpop.f32.mrb[0].mxu0
    %v2678 = vadd.f32 0.0, %v2677
    %v2679 = vpop.f32.mrb[0].mxu0
    %v2680 = vadd.f32 0.0, %v2679
    %2681 = vmatprep.mubr.bf16.mxu0 %v1384
    %2682 = vmatmul.mubr.bf16.gmra.mrb[0].mxu0 %v1383
    %v2683 = vpop.f32.mrb[0].mxu0
    %v2684 = vadd.f32 0.0, %v2683
    %v2685 = vpop.f32.mrb[0].mxu0
    %v2686 = vadd.f32 0.0, %v2685
    %v2687 = vpop.f32.mrb[0].mxu0
    %v2688 = vadd.f32 0.0, %v2687
    %v2689 = vpop.f32.mrb[0].mxu0
    %v2690 = vadd.f32 0.0, %v2689
    %2691 = vmatprep.mubr.bf16.mxu0 %v1388
    %2692 = vmatmul.mubr.bf16.gmra.mrb[0].mxu0 %v1387
    %v2693 = vpop.f32.mrb[0].mxu0
    %v2694 = vadd.f32 0.0, %v2693
    %v2695 = vpop.f32.mrb[0].mxu0
    %v2696 = vadd.f32 0.0, %v2695
    %v2697 = vpop.f32.mrb[0].mxu0
    %v2698 = vadd.f32 0.0, %v2697
    %v2699 = vpop.f32.mrb[0].mxu0
    %v2700 = vadd.f32 0.0, %v2699
    %2701 = vmatprep.mubr.bf16.mxu0 %v1392
    %2702 = vmatmul.mubr.bf16.gmra.mrb[0].mxu0 %v1391
    %v2703 = vpop.f32.mrb[0].mxu0
    %v2704 = vadd.f32 0.0, %v2703
    %v2705 = vpop.f32.mrb[0].mxu0
    %v2706 = vadd.f32 0.0, %v2705
    %v2707 = vpop.f32.mrb[0].mxu0
    %v2708 = vadd.f32 0.0, %v2707
    %v2709 = vpop.f32.mrb[0].mxu0
    %v2710 = vadd.f32 0.0, %v2709
    %2711 = vmatprep.mubr.bf16.mxu0 %v1396
    %2712 = vmatmul.mubr.bf16.gmra.mrb[0].mxu0 %v1395
    %v2713 = vpop.f32.mrb[0].mxu0
    %v2714 = vadd.f32 0.0, %v2713
    %v2715 = vpop.f32.mrb[0].mxu0
    %v2716 = vadd.f32 0.0, %v2715
    %v2717 = vpop.f32.mrb[0].mxu0
    %v2718 = vadd.f32 0.0, %v2717
    %v2719 = vpop.f32.mrb[0].mxu0
    %v2720 = vadd.f32 0.0, %v2719
    %2721 = vmatprep.mubr.bf16.mxu0 %v1400
    %2722 = vmatmul.mubr.bf16.gmra.mrb[0].mxu0 %v1399
    %v2723 = vpop.f32.mrb[0].mxu0
    %v2724 = vadd.f32 0.0, %v2723
    %v2725 = vpop.f32.mrb[0].mxu0
    %v2726 = vadd.f32 0.0, %v2725
    %v2727 = vpop.f32.mrb[0].mxu0
    %v2728 = vadd.f32 0.0, %v2727
    %v2729 = vpop.f32.mrb[0].mxu0
    %v2730 = vadd.f32 0.0, %v2729
    %2731 = vmatprep.mubr.bf16.mxu0 %v1404
    %2732 = vmatmul.mubr.bf16.gmra.mrb[0].mxu0 %v1403
    %v2733 = vpop.f32.mrb[0].mxu0
    %v2734 = vadd.f32 0.0, %v2733
    %v2735 = vpop.f32.mrb[0].mxu0
    %v2736 = vadd.f32 0.0, %v2735
    %v2737 = vpop.f32.mrb[0].mxu0
    %v2738 = vadd.f32 0.0, %v2737
    %v2739 = vpop.f32.mrb[0].mxu0
    %v2740 = vadd.f32 0.0, %v2739
    %2741 = vmatprep.mubr.bf16.mxu0 %v1408
    %2742 = vmatmul.mubr.bf16.gmra.mrb[0].mxu0 %v1407
    %v2743 = vpop.f32.mrb[0].mxu0
    %v2744 = vadd.f32 0.0, %v2743
    %v2745 = vpop.f32.mrb[0].mxu0
    %v2746 = vadd.f32 0.0, %v2745
    %v2747 = vpop.f32.mrb[0].mxu0
    %v2748 = vadd.f32 0.0, %v2747
    %v2749 = vpop.f32.mrb[0].mxu0
    %v2750 = vadd.f32 0.0, %v2749
    %2751 = vmatprep.mubr.bf16.mxu0 %v1412
    %2752 = vmatmul.mubr.bf16.gmra.mrb[0].mxu0 %v1411
    %v2753 = vpop.f32.mrb[0].mxu0
    %v2754 = vadd.f32 0.0, %v2753
    %v2755 = vpop.f32.mrb[0].mxu0
    %v2756 = vadd.f32 0.0, %v2755
    %v2757 = vpop.f32.mrb[0].mxu0
    %v2758 = vadd.f32 0.0, %v2757
    %v2759 = vpop.f32.mrb[0].mxu0
    %v2760 = vadd.f32 0.0, %v2759
    %2761 = vdwg.mxu0
    %2762 = vmatprep.subr.bf16.mxu0 %v2474
    %2763 = vmatpush1.bf16.msra.mxu0 %v2473
    %2764 = vmatprep.subr.bf16.mxu0 %v2476
    %2765 = vmatpush1.bf16.msra.mxu0 %v2475
    %2766 = vmatprep.subr.bf16.mxu0 %v2478
    %2767 = vmatpush1.bf16.msra.mxu0 %v2477
    %2768 = vmatprep.subr.bf16.mxu0 %v2480
    %2769 = vmatpush1.bf16.msra.mxu0 %v2479
    %2770 = vmatprep.subr.bf16.mxu0 %v2482
    %2771 = vmatpush1.bf16.msra.mxu0 %v2481
    %2772 = vmatprep.subr.bf16.mxu0 %v2484
    %2773 = vmatpush1.bf16.msra.mxu0 %v2483
    %2774 = vmatprep.subr.bf16.mxu0 %v2486
    %2775 = vmatpush1.bf16.msra.mxu0 %v2485
    %2776 = vmatprep.subr.bf16.mxu0 %v2488
    %2777 = vmatpush1.bf16.msra.mxu0 %v2487
    %2778 = vmatprep.subr.bf16.mxu0 %v2490
    %2779 = vmatpush1.bf16.msra.mxu0 %v2489
    %2780 = vmatprep.subr.bf16.mxu0 %v2492
    %2781 = vmatpush1.bf16.msra.mxu0 %v2491
    %2782 = vmatprep.subr.bf16.mxu0 %v2494
    %2783 = vmatpush1.bf16.msra.mxu0 %v2493
    %2784 = vmatprep.subr.bf16.mxu0 %v2496
    %2785 = vmatpush1.bf16.msra.mxu0 %v2495
    %2786 = vmatprep.subr.bf16.mxu0 %v2498
    %2787 = vmatpush1.bf16.msra.mxu0 %v2497
    %2788 = vmatprep.subr.bf16.mxu0 %v2500
    %2789 = vmatpush1.bf16.msra.mxu0 %v2499
    %2790 = vmatprep.subr.bf16.mxu0 %v2502
    %2791 = vmatpush1.bf16.msra.mxu0 %v2501
    %2792 = vmatprep.subr.bf16.mxu0 %v2504
    %2793 = vmatpush1.bf16.msra.mxu0 %v2503
    %2794 = vmatprep.mubr.bf16.mxu0 %v1354
    %2795 = vmatmul.mubr.bf16.gmra.mrb[0].mxu0 %v1353
    %v2796 = vpop.f32.mrb[0].mxu0
    %v2797 = vadd.f32 %v2604, %v2796
    %v2798 = vpop.f32.mrb[0].mxu0
    %v2799 = vadd.f32 %v2606, %v2798
    %v2800 = vpop.f32.mrb[0].mxu0
    %v2801 = vadd.f32 %v2608, %v2800
    %v2802 = vpop.f32.mrb[0].mxu0
    %v2803 = vadd.f32 %v2610, %v2802
    %2804 = vmatprep.mubr.bf16.mxu0 %v1358
    %2805 = vmatmul.mubr.bf16.gmra.mrb[0].mxu0 %v1357
    %v2806 = vpop.f32.mrb[0].mxu0
    %v2807 = vadd.f32 %v2614, %v2806
    %v2808 = vpop.f32.mrb[0].mxu0
    %v2809 = vadd.f32 %v2616, %v2808
    %v2810 = vpop.f32.mrb[0].mxu0
    %v2811 = vadd.f32 %v2618, %v2810
    %v2812 = vpop.f32.mrb[0].mxu0
    %v2813 = vadd.f32 %v2620, %v2812
    %2814 = vmatprep.mubr.bf16.mxu0 %v1362
    %2815 = vmatmul.mubr.bf16.gmra.mrb[0].mxu0 %v1361
    %v2816 = vpop.f32.mrb[0].mxu0
    %v2817 = vadd.f32 %v2624, %v2816
    %v2818 = vpop.f32.mrb[0].mxu0
    %v2819 = vadd.f32 %v2626, %v2818
    %v2820 = vpop.f32.mrb[0].mxu0
    %v2821 = vadd.f32 %v2628, %v2820
    %v2822 = vpop.f32.mrb[0].mxu0
    %v2823 = vadd.f32 %v2630, %v2822
    %2824 = vmatprep.mubr.bf16.mxu0 %v1366
    %2825 = vmatmul.mubr.bf16.gmra.mrb[0].mxu0 %v1365
    %v2826 = vpop.f32.mrb[0].mxu0
    %v2827 = vadd.f32 %v2634, %v2826
    %v2828 = vpop.f32.mrb[0].mxu0
    %v2829 = vadd.f32 %v2636, %v2828
    %v2830 = vpop.f32.mrb[0].mxu0
    %v2831 = vadd.f32 %v2638, %v2830
    %v2832 = vpop.f32.mrb[0].mxu0
    %v2833 = vadd.f32 %v2640, %v2832
    %2834 = vmatprep.mubr.bf16.mxu0 %v1370
    %2835 = vmatmul.mubr.bf16.gmra.mrb[0].mxu0 %v1369
    %v2836 = vpop.f32.mrb[0].mxu0
    %v2837 = vadd.f32 %v2644, %v2836
    %v2838 = vpop.f32.mrb[0].mxu0
    %v2839 = vadd.f32 %v2646, %v2838
    %v2840 = vpop.f32.mrb[0].mxu0
    %v2841 = vadd.f32 %v2648, %v2840
    %v2842 = vpop.f32.mrb[0].mxu0
    %v2843 = vadd.f32 %v2650, %v2842
    %2844 = vmatprep.mubr.bf16.mxu0 %v1374
    %2845 = vmatmul.mubr.bf16.gmra.mrb[0].mxu0 %v1373
    %v2846 = vpop.f32.mrb[0].mxu0
    %v2847 = vadd.f32 %v2654, %v2846
    %v2848 = vpop.f32.mrb[0].mxu0
    %v2849 = vadd.f32 %v2656, %v2848
    %v2850 = vpop.f32.mrb[0].mxu0
    %v2851 = vadd.f32 %v2658, %v2850
    %v2852 = vpop.f32.mrb[0].mxu0
    %v2853 = vadd.f32 %v2660, %v2852
    %2854 = vmatprep.mubr.bf16.mxu0 %v1378
    %2855 = vmatmul.mubr.bf16.gmra.mrb[0].mxu0 %v1377
    %v2856 = vpop.f32.mrb[0].mxu0
    %v2857 = vadd.f32 %v2664, %v2856
    %v2858 = vpop.f32.mrb[0].mxu0
    %v2859 = vadd.f32 %v2666, %v2858
    %v2860 = vpop.f32.mrb[0].mxu0
    %v2861 = vadd.f32 %v2668, %v2860
    %v2862 = vpop.f32.mrb[0].mxu0
    %v2863 = vadd.f32 %v2670, %v2862
    %2864 = vmatprep.mubr.bf16.mxu0 %v1382
    %2865 = vmatmul.mubr.bf16.gmra.mrb[0].mxu0 %v1381
    %v2866 = vpop.f32.mrb[0].mxu0
    %v2867 = vadd.f32 %v2674, %v2866
    %v2868 = vpop.f32.mrb[0].mxu0
    %v2869 = vadd.f32 %v2676, %v2868
    %v2870 = vpop.f32.mrb[0].mxu0
    %v2871 = vadd.f32 %v2678, %v2870
    %v2872 = vpop.f32.mrb[0].mxu0
    %v2873 = vadd.f32 %v2680, %v2872
    %2874 = vmatprep.mubr.bf16.mxu0 %v1386
    %2875 = vmatmul.mubr.bf16.gmra.mrb[0].mxu0 %v1385
    %v2876 = vpop.f32.mrb[0].mxu0
    %v2877 = vadd.f32 %v2684, %v2876
    %v2878 = vpop.f32.mrb[0].mxu0
    %v2879 = vadd.f32 %v2686, %v2878
    %v2880 = vpop.f32.mrb[0].mxu0
    %v2881 = vadd.f32 %v2688, %v2880
    %v2882 = vpop.f32.mrb[0].mxu0
    %v2883 = vadd.f32 %v2690, %v2882
    %2884 = vmatprep.mubr.bf16.mxu0 %v1390
    %2885 = vmatmul.mubr.bf16.gmra.mrb[0].mxu0 %v1389
    %v2886 = vpop.f32.mrb[0].mxu0
    %v2887 = vadd.f32 %v2694, %v2886
    %v2888 = vpop.f32.mrb[0].mxu0
    %v2889 = vadd.f32 %v2696, %v2888
    %v2890 = vpop.f32.mrb[0].mxu0
    %v2891 = vadd.f32 %v2698, %v2890
    %v2892 = vpop.f32.mrb[0].mxu0
    %v2893 = vadd.f32 %v2700, %v2892
    %2894 = vmatprep.mubr.bf16.mxu0 %v1394
    %2895 = vmatmul.mubr.bf16.gmra.mrb[0].mxu0 %v1393
    %v2896 = vpop.f32.mrb[0].mxu0
    %v2897 = vadd.f32 %v2704, %v2896
    %v2898 = vpop.f32.mrb[0].mxu0
    %v2899 = vadd.f32 %v2706, %v2898
    %v2900 = vpop.f32.mrb[0].mxu0
    %v2901 = vadd.f32 %v2708, %v2900
    %v2902 = vpop.f32.mrb[0].mxu0
    %v2903 = vadd.f32 %v2710, %v2902
    %2904 = vmatprep.mubr.bf16.mxu0 %v1398
    %2905 = vmatmul.mubr.bf16.gmra.mrb[0].mxu0 %v1397
    %v2906 = vpop.f32.mrb[0].mxu0
    %v2907 = vadd.f32 %v2714, %v2906
    %v2908 = vpop.f32.mrb[0].mxu0
    %v2909 = vadd.f32 %v2716, %v2908
    %v2910 = vpop.f32.mrb[0].mxu0
    %v2911 = vadd.f32 %v2718, %v2910
    %v2912 = vpop.f32.mrb[0].mxu0
    %v2913 = vadd.f32 %v2720, %v2912
    %2914 = vmatprep.mubr.bf16.mxu0 %v1402
    %2915 = vmatmul.mubr.bf16.gmra.mrb[0].mxu0 %v1401
    %v2916 = vpop.f32.mrb[0].mxu0
    %v2917 = vadd.f32 %v2724, %v2916
    %v2918 = vpop.f32.mrb[0].mxu0
    %v2919 = vadd.f32 %v2726, %v2918
    %v2920 = vpop.f32.mrb[0].mxu0
    %v2921 = vadd.f32 %v2728, %v2920
    %v2922 = vpop.f32.mrb[0].mxu0
    %v2923 = vadd.f32 %v2730, %v2922
    %2924 = vmatprep.mubr.bf16.mxu0 %v1406
    %2925 = vmatmul.mubr.bf16.gmra.mrb[0].mxu0 %v1405
    %v2926 = vpop.f32.mrb[0].mxu0
    %v2927 = vadd.f32 %v2734, %v2926
    %v2928 = vpop.f32.mrb[0].mxu0
    %v2929 = vadd.f32 %v2736, %v2928
    %v2930 = vpop.f32.mrb[0].mxu0
    %v2931 = vadd.f32 %v2738, %v2930
    %v2932 = vpop.f32.mrb[0].mxu0
    %v2933 = vadd.f32 %v2740, %v2932
    %2934 = vmatprep.mubr.bf16.mxu0 %v1410
    %2935 = vmatmul.mubr.bf16.gmra.mrb[0].mxu0 %v1409
    %v2936 = vpop.f32.mrb[0].mxu0
    %v2937 = vadd.f32 %v2744, %v2936
    %v2938 = vpop.f32.mrb[0].mxu0
    %v2939 = vadd.f32 %v2746, %v2938
    %v2940 = vpop.f32.mrb[0].mxu0
    %v2941 = vadd.f32 %v2748, %v2940
    %v2942 = vpop.f32.mrb[0].mxu0
    %v2943 = vadd.f32 %v2750, %v2942
    %2944 = vmatprep.mubr.bf16.mxu0 %v1414
    %2945 = vmatmul.mubr.bf16.gmra.mrb[0].mxu0 %v1413
    %v2946 = vpop.f32.mrb[0].mxu0
    %v2947 = vadd.f32 %v2754, %v2946
    %v2948 = vpop.f32.mrb[0].mxu0
    %v2949 = vadd.f32 %v2756, %v2948
    %v2950 = vpop.f32.mrb[0].mxu0
    %v2951 = vadd.f32 %v2758, %v2950
    %v2952 = vpop.f32.mrb[0].mxu0
    %v2953 = vadd.f32 %v2760, %v2952
    %2954 = vdwg.mxu0
    %v2955 = vld [vmem:[%s5] sm:$0xf]
    %v2957 = vlaneseq
    %v2958 = vshrl.u32 %v2957, 7
    %v2959 = vsub.s32 0, %v2958
    %v2960 = vrot.slane %v2955, %v2959
    %v2961 = vlaneseq
    %v2962 = vshrl.u32 %v2961, 7
    %v2963 = vsub.s32 1, %v2962
    %v2964 = vrot.slane %v2955, %v2963
    %v2965 = vlaneseq
    %v2966 = vshrl.u32 %v2965, 7
    %v2967 = vsub.s32 2, %v2966
    %v2968 = vrot.slane %v2955, %v2967
    %v2969 = vlaneseq
    %v2970 = vshrl.u32 %v2969, 7
    %v2971 = vsub.s32 3, %v2970
    %v2972 = vrot.slane %v2955, %v2971
    %v2977 = vadd.f32 %v2027, %v2960
    %v2978 = vadd.f32 %v2029, %v2964
    %v2979 = vadd.f32 %v2797, %v2968
    %v2980 = vadd.f32 %v2799, %v2972
    %v2981 = vadd.f32 %v2031, %v2960
    %v2982 = vadd.f32 %v2033, %v2964
    %v2983 = vadd.f32 %v2801, %v2968
    %v2984 = vadd.f32 %v2803, %v2972
    %v2985 = vadd.f32 %v2037, %v2960
    %v2986 = vadd.f32 %v2039, %v2964
    %v2987 = vadd.f32 %v2807, %v2968
    %v2988 = vadd.f32 %v2809, %v2972
    %v2989 = vadd.f32 %v2041, %v2960
    %v2990 = vadd.f32 %v2043, %v2964
    %v2991 = vadd.f32 %v2811, %v2968
    %v2992 = vadd.f32 %v2813, %v2972
    %v2993 = vadd.f32 %v2047, %v2960
    %v2994 = vadd.f32 %v2049, %v2964
    %v2995 = vadd.f32 %v2817, %v2968
    %v2996 = vadd.f32 %v2819, %v2972
    %v2997 = vadd.f32 %v2051, %v2960
    %v2998 = vadd.f32 %v2053, %v2964
    %v2999 = vadd.f32 %v2821, %v2968
    %v3000 = vadd.f32 %v2823, %v2972
    %v3001 = vadd.f32 %v2057, %v2960
    %v3002 = vadd.f32 %v2059, %v2964
    %v3003 = vadd.f32 %v2827, %v2968
    %v3004 = vadd.f32 %v2829, %v2972
    %v3005 = vadd.f32 %v2061, %v2960
    %v3006 = vadd.f32 %v2063, %v2964
    %v3007 = vadd.f32 %v2831, %v2968
    %v3008 = vadd.f32 %v2833, %v2972
    %v3009 = vadd.f32 %v2067, %v2960
    %v3010 = vadd.f32 %v2069, %v2964
    %v3011 = vadd.f32 %v2837, %v2968
    %v3012 = vadd.f32 %v2839, %v2972
    %v3013 = vadd.f32 %v2071, %v2960
    %v3014 = vadd.f32 %v2073, %v2964
    %v3015 = vadd.f32 %v2841, %v2968
    %v3016 = vadd.f32 %v2843, %v2972
    %v3017 = vadd.f32 %v2077, %v2960
    %v3018 = vadd.f32 %v2079, %v2964
    %v3019 = vadd.f32 %v2847, %v2968
    %v3020 = vadd.f32 %v2849, %v2972
    %v3021 = vadd.f32 %v2081, %v2960
    %v3022 = vadd.f32 %v2083, %v2964
    %v3023 = vadd.f32 %v2851, %v2968
    %v3024 = vadd.f32 %v2853, %v2972
    %v3025 = vadd.f32 %v2087, %v2960
    %v3026 = vadd.f32 %v2089, %v2964
    %v3027 = vadd.f32 %v2857, %v2968
    %v3028 = vadd.f32 %v2859, %v2972
    %v3029 = vadd.f32 %v2091, %v2960
    %v3030 = vadd.f32 %v2093, %v2964
    %v3031 = vadd.f32 %v2861, %v2968
    %v3032 = vadd.f32 %v2863, %v2972
    %v3033 = vadd.f32 %v2097, %v2960
    %v3034 = vadd.f32 %v2099, %v2964
    %v3035 = vadd.f32 %v2867, %v2968
    %v3036 = vadd.f32 %v2869, %v2972
    %v3037 = vadd.f32 %v2101, %v2960
    %v3038 = vadd.f32 %v2103, %v2964
    %v3039 = vadd.f32 %v2871, %v2968
    %v3040 = vadd.f32 %v2873, %v2972
    %v3041 = vadd.f32 %v2107, %v2960
    %v3042 = vadd.f32 %v2109, %v2964
    %v3043 = vadd.f32 %v2877, %v2968
    %v3044 = vadd.f32 %v2879, %v2972
    %v3045 = vadd.f32 %v2111, %v2960
    %v3046 = vadd.f32 %v2113, %v2964
    %v3047 = vadd.f32 %v2881, %v2968
    %v3048 = vadd.f32 %v2883, %v2972
    %v3049 = vadd.f32 %v2117, %v2960
    %v3050 = vadd.f32 %v2119, %v2964
    %v3051 = vadd.f32 %v2887, %v2968
    %v3052 = vadd.f32 %v2889, %v2972
    %v3053 = vadd.f32 %v2121, %v2960
    %v3054 = vadd.f32 %v2123, %v2964
    %v3055 = vadd.f32 %v2891, %v2968
    %v3056 = vadd.f32 %v2893, %v2972
    %v3057 = vadd.f32 %v2127, %v2960
    %v3058 = vadd.f32 %v2129, %v2964
    %v3059 = vadd.f32 %v2897, %v2968
    %v3060 = vadd.f32 %v2899, %v2972
    %v3061 = vadd.f32 %v2131, %v2960
    %v3062 = vadd.f32 %v2133, %v2964
    %v3063 = vadd.f32 %v2901, %v2968
    %v3064 = vadd.f32 %v2903, %v2972
    %v3065 = vadd.f32 %v2137, %v2960
    %v3066 = vadd.f32 %v2139, %v2964
    %v3067 = vadd.f32 %v2907, %v2968
    %v3068 = vadd.f32 %v2909, %v2972
    %v3069 = vadd.f32 %v2141, %v2960
    %v3070 = vadd.f32 %v2143, %v2964
    %v3071 = vadd.f32 %v2911, %v2968
    %v3072 = vadd.f32 %v2913, %v2972
    %v3073 = vadd.f32 %v2147, %v2960
    %v3074 = vadd.f32 %v2149, %v2964
    %v3075 = vadd.f32 %v2917, %v2968
    %v3076 = vadd.f32 %v2919, %v2972
    %v3077 = vadd.f32 %v2151, %v2960
    %v3078 = vadd.f32 %v2153, %v2964
    %v3079 = vadd.f32 %v2921, %v2968
    %v3080 = vadd.f32 %v2923, %v2972
    %v3081 = vadd.f32 %v2157, %v2960
    %v3082 = vadd.f32 %v2159, %v2964
    %v3083 = vadd.f32 %v2927, %v2968
    %v3084 = vadd.f32 %v2929, %v2972
    %v3085 = vadd.f32 %v2161, %v2960
    %v3086 = vadd.f32 %v2163, %v2964
    %v3087 = vadd.f32 %v2931, %v2968
    %v3088 = vadd.f32 %v2933, %v2972
    %v3089 = vadd.f32 %v2167, %v2960
    %v3090 = vadd.f32 %v2169, %v2964
    %v3091 = vadd.f32 %v2937, %v2968
    %v3092 = vadd.f32 %v2939, %v2972
    %v3093 = vadd.f32 %v2171, %v2960
    %v3094 = vadd.f32 %v2173, %v2964
    %v3095 = vadd.f32 %v2941, %v2968
    %v3096 = vadd.f32 %v2943, %v2972
    %v3097 = vadd.f32 %v2177, %v2960
    %v3098 = vadd.f32 %v2179, %v2964
    %v3099 = vadd.f32 %v2947, %v2968
    %v3100 = vadd.f32 %v2949, %v2972
    %v3101 = vadd.f32 %v2181, %v2960
    %v3102 = vadd.f32 %v2183, %v2964
    %v3103 = vadd.f32 %v2951, %v2968
    %v3104 = vadd.f32 %v2953, %v2972
    %v3105 = vtanh.pop %v2977
    %v3106 = vtanh.pop %v2978
    %v3107 = vtanh.pop %v2979
    %v3108 = vtanh.pop %v2980
    %v3109 = vtanh.pop %v2981
    %v3110 = vtanh.pop %v2982
    %v3111 = vtanh.pop %v2983
    %v3112 = vtanh.pop %v2984
    %v3113 = vtanh.pop %v2985
    %v3114 = vtanh.pop %v2986
    %v3115 = vtanh.pop %v2987
    %v3116 = vtanh.pop %v2988
    %v3117 = vtanh.pop %v2989
    %v3118 = vtanh.pop %v2990
    %v3119 = vtanh.pop %v2991
    %v3120 = vtanh.pop %v2992
    %v3121 = vtanh.pop %v2993
    %v3122 = vtanh.pop %v2994
    %v3123 = vtanh.pop %v2995
    %v3124 = vtanh.pop %v2996
    %v3125 = vtanh.pop %v2997
    %v3126 = vtanh.pop %v2998
    %v3127 = vtanh.pop %v2999
    %v3128 = vtanh.pop %v3000
    %v3129 = vtanh.pop %v3001
    %v3130 = vtanh.pop %v3002
    %v3131 = vtanh.pop %v3003
    %v3132 = vtanh.pop %v3004
    %v3133 = vtanh.pop %v3005
    %v3134 = vtanh.pop %v3006
    %v3135 = vtanh.pop %v3007
    %v3136 = vtanh.pop %v3008
    %v3137 = vtanh.pop %v3009
    %v3138 = vtanh.pop %v3010
    %v3139 = vtanh.pop %v3011
    %v3140 = vtanh.pop %v3012
    %v3141 = vtanh.pop %v3013
    %v3142 = vtanh.pop %v3014
    %v3143 = vtanh.pop %v3015
    %v3144 = vtanh.pop %v3016
    %v3145 = vtanh.pop %v3017
    %v3146 = vtanh.pop %v3018
    %v3147 = vtanh.pop %v3019
    %v3148 = vtanh.pop %v3020
    %v3149 = vtanh.pop %v3021
    %v3150 = vtanh.pop %v3022
    %v3151 = vtanh.pop %v3023
    %v3152 = vtanh.pop %v3024
    %v3153 = vtanh.pop %v3025
    %v3154 = vtanh.pop %v3026
    %v3155 = vtanh.pop %v3027
    %v3156 = vtanh.pop %v3028
    %v3157 = vtanh.pop %v3029
    %v3158 = vtanh.pop %v3030
    %v3159 = vtanh.pop %v3031
    %v3160 = vtanh.pop %v3032
    %v3161 = vtanh.pop %v3033
    %v3162 = vtanh.pop %v3034
    %v3163 = vtanh.pop %v3035
    %v3164 = vtanh.pop %v3036
    %v3165 = vtanh.pop %v3037
    %v3166 = vtanh.pop %v3038
    %v3167 = vtanh.pop %v3039
    %v3168 = vtanh.pop %v3040
    %v3169 = vtanh.pop %v3041
    %v3170 = vtanh.pop %v3042
    %v3171 = vtanh.pop %v3043
    %v3172 = vtanh.pop %v3044
    %v3173 = vtanh.pop %v3045
    %v3174 = vtanh.pop %v3046
    %v3175 = vtanh.pop %v3047
    %v3176 = vtanh.pop %v3048
    %v3177 = vtanh.pop %v3049
    %v3178 = vtanh.pop %v3050
    %v3179 = vtanh.pop %v3051
    %v3180 = vtanh.pop %v3052
    %v3181 = vtanh.pop %v3053
    %v3182 = vtanh.pop %v3054
    %v3183 = vtanh.pop %v3055
    %v3184 = vtanh.pop %v3056
    %v3185 = vtanh.pop %v3057
    %v3186 = vtanh.pop %v3058
    %v3187 = vtanh.pop %v3059
    %v3188 = vtanh.pop %v3060
    %v3189 = vtanh.pop %v3061
    %v3190 = vtanh.pop %v3062
    %v3191 = vtanh.pop %v3063
    %v3192 = vtanh.pop %v3064
    %v3193 = vtanh.pop %v3065
    %v3194 = vtanh.pop %v3066
    %v3195 = vtanh.pop %v3067
    %v3196 = vtanh.pop %v3068
    %v3197 = vtanh.pop %v3069
    %v3198 = vtanh.pop %v3070
    %v3199 = vtanh.pop %v3071
    %v3200 = vtanh.pop %v3072
    %v3201 = vtanh.pop %v3073
    %v3202 = vtanh.pop %v3074
    %v3203 = vtanh.pop %v3075
    %v3204 = vtanh.pop %v3076
    %v3205 = vtanh.pop %v3077
    %v3206 = vtanh.pop %v3078
    %v3207 = vtanh.pop %v3079
    %v3208 = vtanh.pop %v3080
    %v3209 = vtanh.pop %v3081
    %v3210 = vtanh.pop %v3082
    %v3211 = vtanh.pop %v3083
    %v3212 = vtanh.pop %v3084
    %v3213 = vtanh.pop %v3085
    %v3214 = vtanh.pop %v3086
    %v3215 = vtanh.pop %v3087
    %v3216 = vtanh.pop %v3088
    %v3217 = vtanh.pop %v3089
    %v3218 = vtanh.pop %v3090
    %v3219 = vtanh.pop %v3091
    %v3220 = vtanh.pop %v3092
    %v3221 = vtanh.pop %v3093
    %v3222 = vtanh.pop %v3094
    %v3223 = vtanh.pop %v3095
    %v3224 = vtanh.pop %v3096
    %v3225 = vtanh.pop %v3097
    %v3226 = vtanh.pop %v3098
    %v3227 = vtanh.pop %v3099
    %v3228 = vtanh.pop %v3100
    %v3229 = vtanh.pop %v3101
    %v3230 = vtanh.pop %v3102
    %v3231 = vtanh.pop %v3103
    %v3232 = vtanh.pop %v3104
    %v3233 = vpack.c.bf16 %v3109, %v3105
    %v3234 = vpack.c.bf16 %v3110, %v3106
    %v3235 = vpack.c.bf16 %v3111, %v3107
    %v3236 = vpack.c.bf16 %v3112, %v3108
    %v3237 = vpack.c.bf16 %v3117, %v3113
    %v3238 = vpack.c.bf16 %v3118, %v3114
    %v3239 = vpack.c.bf16 %v3119, %v3115
    %v3240 = vpack.c.bf16 %v3120, %v3116
    %v3241 = vpack.c.bf16 %v3125, %v3121
    %v3242 = vpack.c.bf16 %v3126, %v3122
    %v3243 = vpack.c.bf16 %v3127, %v3123
    %v3244 = vpack.c.bf16 %v3128, %v3124
    %v3245 = vpack.c.bf16 %v3133, %v3129
    %v3246 = vpack.c.bf16 %v3134, %v3130
    %v3247 = vpack.c.bf16 %v3135, %v3131
    %v3248 = vpack.c.bf16 %v3136, %v3132
    %v3249 = vpack.c.bf16 %v3141, %v3137
    %v3250 = vpack.c.bf16 %v3142, %v3138
    %v3251 = vpack.c.bf16 %v3143, %v3139
    %v3252 = vpack.c.bf16 %v3144, %v3140
    %v3253 = vpack.c.bf16 %v3149, %v3145
    %v3254 = vpack.c.bf16 %v3150, %v3146
    %v3255 = vpack.c.bf16 %v3151, %v3147
    %v3256 = vpack.c.bf16 %v3152, %v3148
    %v3257 = vpack.c.bf16 %v3157, %v3153
    %v3258 = vpack.c.bf16 %v3158, %v3154
    %v3259 = vpack.c.bf16 %v3159, %v3155
    %v3260 = vpack.c.bf16 %v3160, %v3156
    %v3261 = vpack.c.bf16 %v3165, %v3161
    %v3262 = vpack.c.bf16 %v3166, %v3162
    %v3263 = vpack.c.bf16 %v3167, %v3163
    %v3264 = vpack.c.bf16 %v3168, %v3164
    %v3265 = vpack.c.bf16 %v3173, %v3169
    %v3266 = vpack.c.bf16 %v3174, %v3170
    %v3267 = vpack.c.bf16 %v3175, %v3171
    %v3268 = vpack.c.bf16 %v3176, %v3172
    %v3269 = vpack.c.bf16 %v3181, %v3177
    %v3270 = vpack.c.bf16 %v3182, %v3178
    %v3271 = vpack.c.bf16 %v3183, %v3179
    %v3272 = vpack.c.bf16 %v3184, %v3180
    %v3273 = vpack.c.bf16 %v3189, %v3185
    %v3274 = vpack.c.bf16 %v3190, %v3186
    %v3275 = vpack.c.bf16 %v3191, %v3187
    %v3276 = vpack.c.bf16 %v3192, %v3188
    %v3277 = vpack.c.bf16 %v3197, %v3193
    %v3278 = vpack.c.bf16 %v3198, %v3194
    %v3279 = vpack.c.bf16 %v3199, %v3195
    %v3280 = vpack.c.bf16 %v3200, %v3196
    %v3281 = vpack.c.bf16 %v3205, %v3201
    %v3282 = vpack.c.bf16 %v3206, %v3202
    %v3283 = vpack.c.bf16 %v3207, %v3203
    %v3284 = vpack.c.bf16 %v3208, %v3204
    %v3285 = vpack.c.bf16 %v3213, %v3209
    %v3286 = vpack.c.bf16 %v3214, %v3210
    %v3287 = vpack.c.bf16 %v3215, %v3211
    %v3288 = vpack.c.bf16 %v3216, %v3212
    %v3289 = vpack.c.bf16 %v3221, %v3217
    %v3290 = vpack.c.bf16 %v3222, %v3218
    %v3291 = vpack.c.bf16 %v3223, %v3219
    %v3292 = vpack.c.bf16 %v3224, %v3220
    %v3293 = vpack.c.bf16 %v3229, %v3225
    %v3294 = vpack.c.bf16 %v3230, %v3226
    %v3295 = vpack.c.bf16 %v3231, %v3227
    %v3296 = vpack.c.bf16 %v3232, %v3228
    %v3297 = vld [vmem:[%s6] sm:$0xf]
    %v3298 = vld [vmem:[%s6 + $0x4] sm:$0xf]
    %v3299 = vld [vmem:[%s6 + $0x8] sm:$0xf]
    %v3300 = vld [vmem:[%s6 + $0xc] sm:$0xf]
    %v3301 = vld [vmem:[%s6 + $0x10] sm:$0xf]
    %v3302 = vld [vmem:[%s6 + $0x14] sm:$0xf]
    %v3303 = vld [vmem:[%s6 + $0x18] sm:$0xf]
    %v3304 = vld [vmem:[%s6 + $0x1c] sm:$0xf]
    %v3305 = vld [vmem:[%s6 + $0x20] sm:$0xf]
    %v3306 = vld [vmem:[%s6 + $0x24] sm:$0xf]
    %v3307 = vld [vmem:[%s6 + $0x28] sm:$0xf]
    %v3308 = vld [vmem:[%s6 + $0x2c] sm:$0xf]
    %v3309 = vld [vmem:[%s6 + $0x30] sm:$0xf]
    %v3310 = vld [vmem:[%s6 + $0x34] sm:$0xf]
    %v3311 = vld [vmem:[%s6 + $0x38] sm:$0xf]
    %v3312 = vld [vmem:[%s6 + $0x3c] sm:$0xf]
    %v3313 = vld [vmem:[%s6 + $0x40] sm:$0xf]
    %v3314 = vld [vmem:[%s6 + $0x44] sm:$0xf]
    %v3315 = vld [vmem:[%s6 + $0x48] sm:$0xf]
    %v3316 = vld [vmem:[%s6 + $0x4c] sm:$0xf]
    %v3317 = vld [vmem:[%s6 + $0x50] sm:$0xf]
    %v3318 = vld [vmem:[%s6 + $0x54] sm:$0xf]
    %v3319 = vld [vmem:[%s6 + $0x58] sm:$0xf]
    %v3320 = vld [vmem:[%s6 + $0x5c] sm:$0xf]
    %v3321 = vld [vmem:[%s6 + $0x60] sm:$0xf]
    %v3322 = vld [vmem:[%s6 + $0x64] sm:$0xf]
    %v3323 = vld [vmem:[%s6 + $0x68] sm:$0xf]
    %v3324 = vld [vmem:[%s6 + $0x6c] sm:$0xf]
    %v3325 = vld [vmem:[%s6 + $0x70] sm:$0xf]
    %v3326 = vld [vmem:[%s6 + $0x74] sm:$0xf]
    %v3327 = vld [vmem:[%s6 + $0x78] sm:$0xf]
    %v3328 = vld [vmem:[%s6 + $0x7c] sm:$0xf]
    %v3329 = vld [vmem:[%s6 + $0x80] sm:$0xf]
    %v3330 = vld [vmem:[%s6 + $0x84] sm:$0xf]
    %v3331 = vld [vmem:[%s6 + $0x88] sm:$0xf]
    %v3332 = vld [vmem:[%s6 + $0x8c] sm:$0xf]
    %v3333 = vld [vmem:[%s6 + $0x90] sm:$0xf]
    %v3334 = vld [vmem:[%s6 + $0x94] sm:$0xf]
    %v3335 = vld [vmem:[%s6 + $0x98] sm:$0xf]
    %v3336 = vld [vmem:[%s6 + $0x9c] sm:$0xf]
    %v3337 = vld [vmem:[%s6 + $0xa0] sm:$0xf]
    %v3338 = vld [vmem:[%s6 + $0xa4] sm:$0xf]
    %v3339 = vld [vmem:[%s6 + $0xa8] sm:$0xf]
    %v3340 = vld [vmem:[%s6 + $0xac] sm:$0xf]
    %v3341 = vld [vmem:[%s6 + $0xb0] sm:$0xf]
    %v3342 = vld [vmem:[%s6 + $0xb4] sm:$0xf]
    %v3343 = vld [vmem:[%s6 + $0xb8] sm:$0xf]
    %v3344 = vld [vmem:[%s6 + $0xbc] sm:$0xf]
    %v3345 = vld [vmem:[%s6 + $0xc0] sm:$0xf]
    %v3346 = vld [vmem:[%s6 + $0xc4] sm:$0xf]
    %v3347 = vld [vmem:[%s6 + $0xc8] sm:$0xf]
    %v3348 = vld [vmem:[%s6 + $0xcc] sm:$0xf]
    %v3349 = vld [vmem:[%s6 + $0xd0] sm:$0xf]
    %v3350 = vld [vmem:[%s6 + $0xd4] sm:$0xf]
    %v3351 = vld [vmem:[%s6 + $0xd8] sm:$0xf]
    %v3352 = vld [vmem:[%s6 + $0xdc] sm:$0xf]
    %v3353 = vld [vmem:[%s6 + $0xe0] sm:$0xf]
    %v3354 = vld [vmem:[%s6 + $0xe4] sm:$0xf]
    %v3355 = vld [vmem:[%s6 + $0xe8] sm:$0xf]
    %v3356 = vld [vmem:[%s6 + $0xec] sm:$0xf]
    %v3357 = vld [vmem:[%s6 + $0xf0] sm:$0xf]
    %v3358 = vld [vmem:[%s6 + $0xf4] sm:$0xf]
    %v3359 = vld [vmem:[%s6 + $0xf8] sm:$0xf]
    %v3360 = vld [vmem:[%s6 + $0xfc] sm:$0xf]
    %v3361 = vld [vmem:[%s7] sm:$0x1]
    %v3363 = vlaneseq
    %v3364 = vshrl.u32 %v3363, 7
    %v3365 = vsub.s32 0, %v3364
    %v3366 = vrot.slane %v3361, %v3365
    %v3432 = vunpack.c.l.b16 %v3297
    %v3433 = vunpack.c.l.b16 %v3298
    %v3434 = vunpack.c.l.b16 %v3299
    %v3435 = vunpack.c.l.b16 %v3300
    %v3436 = vunpack.c.l.b16 %v3301
    %v3437 = vunpack.c.l.b16 %v3302
    %v3438 = vunpack.c.l.b16 %v3303
    %v3439 = vunpack.c.l.b16 %v3304
    %v3440 = vunpack.c.l.b16 %v3305
    %v3441 = vunpack.c.l.b16 %v3306
    %v3442 = vunpack.c.l.b16 %v3307
    %v3443 = vunpack.c.l.b16 %v3308
    %v3444 = vunpack.c.l.b16 %v3309
    %v3445 = vunpack.c.l.b16 %v3310
    %v3446 = vunpack.c.l.b16 %v3311
    %v3447 = vunpack.c.l.b16 %v3312
    %v3448 = vunpack.c.l.b16 %v3313
    %v3449 = vunpack.c.l.b16 %v3314
    %v3450 = vunpack.c.l.b16 %v3315
    %v3451 = vunpack.c.l.b16 %v3316
    %v3452 = vunpack.c.l.b16 %v3317
    %v3453 = vunpack.c.l.b16 %v3318
    %v3454 = vunpack.c.l.b16 %v3319
    %v3455 = vunpack.c.l.b16 %v3320
    %v3456 = vunpack.c.l.b16 %v3321
    %v3457 = vunpack.c.l.b16 %v3322
    %v3458 = vunpack.c.l.b16 %v3323
    %v3459 = vunpack.c.l.b16 %v3324
    %v3460 = vunpack.c.l.b16 %v3325
    %v3461 = vunpack.c.l.b16 %v3326
    %v3462 = vunpack.c.l.b16 %v3327
    %v3463 = vunpack.c.l.b16 %v3328
    %v3464 = vunpack.c.l.b16 %v3329
    %v3465 = vunpack.c.l.b16 %v3330
    %v3466 = vunpack.c.l.b16 %v3331
    %v3467 = vunpack.c.l.b16 %v3332
    %v3468 = vunpack.c.l.b16 %v3333
    %v3469 = vunpack.c.l.b16 %v3334
    %v3470 = vunpack.c.l.b16 %v3335
    %v3471 = vunpack.c.l.b16 %v3336
    %v3472 = vunpack.c.l.b16 %v3337
    %v3473 = vunpack.c.l.b16 %v3338
    %v3474 = vunpack.c.l.b16 %v3339
    %v3475 = vunpack.c.l.b16 %v3340
    %v3476 = vunpack.c.l.b16 %v3341
    %v3477 = vunpack.c.l.b16 %v3342
    %v3478 = vunpack.c.l.b16 %v3343
    %v3479 = vunpack.c.l.b16 %v3344
    %v3480 = vunpack.c.l.b16 %v3345
    %v3481 = vunpack.c.l.b16 %v3346
    %v3482 = vunpack.c.l.b16 %v3347
    %v3483 = vunpack.c.l.b16 %v3348
    %v3484 = vunpack.c.l.b16 %v3349
    %v3485 = vunpack.c.l.b16 %v3350
    %v3486 = vunpack.c.l.b16 %v3351
    %v3487 = vunpack.c.l.b16 %v3352
    %v3488 = vunpack.c.l.b16 %v3353
    %v3489 = vunpack.c.l.b16 %v3354
    %v3490 = vunpack.c.l.b16 %v3355
    %v3491 = vunpack.c.l.b16 %v3356
    %v3492 = vunpack.c.l.b16 %v3357
    %v3493 = vunpack.c.l.b16 %v3358
    %v3494 = vunpack.c.l.b16 %v3359
    %v3495 = vunpack.c.l.b16 %v3360
    %v3496 = vpack.c.b16 %v3433, %v3432
    %v3497 = vpack.c.b16 %v3435, %v3434
    %v3498 = vpack.c.b16 %v3437, %v3436
    %v3499 = vpack.c.b16 %v3439, %v3438
    %v3500 = vpack.c.b16 %v3441, %v3440
    %v3501 = vpack.c.b16 %v3443, %v3442
    %v3502 = vpack.c.b16 %v3445, %v3444
    %v3503 = vpack.c.b16 %v3447, %v3446
    %v3504 = vpack.c.b16 %v3449, %v3448
    %v3505 = vpack.c.b16 %v3451, %v3450
    %v3506 = vpack.c.b16 %v3453, %v3452
    %v3507 = vpack.c.b16 %v3455, %v3454
    %v3508 = vpack.c.b16 %v3457, %v3456
    %v3509 = vpack.c.b16 %v3459, %v3458
    %v3510 = vpack.c.b16 %v3461, %v3460
    %v3511 = vpack.c.b16 %v3463, %v3462
    %v3512 = vpack.c.b16 %v3465, %v3464
    %v3513 = vpack.c.b16 %v3467, %v3466
    %v3514 = vpack.c.b16 %v3469, %v3468
    %v3515 = vpack.c.b16 %v3471, %v3470
    %v3516 = vpack.c.b16 %v3473, %v3472
    %v3517 = vpack.c.b16 %v3475, %v3474
    %v3518 = vpack.c.b16 %v3477, %v3476
    %v3519 = vpack.c.b16 %v3479, %v3478
    %v3520 = vpack.c.b16 %v3481, %v3480
    %v3521 = vpack.c.b16 %v3483, %v3482
    %v3522 = vpack.c.b16 %v3485, %v3484
    %v3523 = vpack.c.b16 %v3487, %v3486
    %v3524 = vpack.c.b16 %v3489, %v3488
    %v3525 = vpack.c.b16 %v3491, %v3490
    %v3526 = vpack.c.b16 %v3493, %v3492
    %v3527 = vpack.c.b16 %v3495, %v3494
    %3560 = vmatprep.subr.bf16.mxu0 0
    %3561 = vmatpush1.bf16.msra.mxu0 %v3496
    %3562 = vmatprep.subr.bf16.mxu0 0
    %3563 = vmatpush1.bf16.msra.mxu0 %v3497
    %3564 = vmatprep.subr.bf16.mxu0 0
    %3565 = vmatpush1.bf16.msra.mxu0 %v3498
    %3566 = vmatprep.subr.bf16.mxu0 0
    %3567 = vmatpush1.bf16.msra.mxu0 %v3499
    %3568 = vmatprep.subr.bf16.mxu0 0
    %3569 = vmatpush1.bf16.msra.mxu0 %v3500
    %3570 = vmatprep.subr.bf16.mxu0 0
    %3571 = vmatpush1.bf16.msra.mxu0 %v3501
    %3572 = vmatprep.subr.bf16.mxu0 0
    %3573 = vmatpush1.bf16.msra.mxu0 %v3502
    %3574 = vmatprep.subr.bf16.mxu0 0
    %3575 = vmatpush1.bf16.msra.mxu0 %v3503
    %3576 = vmatprep.subr.bf16.mxu0 0
    %3577 = vmatpush1.bf16.msra.mxu0 %v3504
    %3578 = vmatprep.subr.bf16.mxu0 0
    %3579 = vmatpush1.bf16.msra.mxu0 %v3505
    %3580 = vmatprep.subr.bf16.mxu0 0
    %3581 = vmatpush1.bf16.msra.mxu0 %v3506
    %3582 = vmatprep.subr.bf16.mxu0 0
    %3583 = vmatpush1.bf16.msra.mxu0 %v3507
    %3584 = vmatprep.subr.bf16.mxu0 0
    %3585 = vmatpush1.bf16.msra.mxu0 %v3508
    %3586 = vmatprep.subr.bf16.mxu0 0
    %3587 = vmatpush1.bf16.msra.mxu0 %v3509
    %3588 = vmatprep.subr.bf16.mxu0 0
    %3589 = vmatpush1.bf16.msra.mxu0 %v3510
    %3590 = vmatprep.subr.bf16.mxu0 0
    %3591 = vmatpush1.bf16.msra.mxu0 %v3511
    %3592 = vmatprep.mubr.bf16.mxu0 %v3234
    %3593 = vmatmul.mubr.bf16.gmra.mrb[0].mxu0 %v3233
    %v3594 = vpop.f32.mrb[0].mxu0
    %v3595 = vadd.f32 %v3366, %v3594
    %v3596 = vpop.f32.mrb[0].mxu0
    %v3597 = vpop.f32.mrb[0].mxu0
    %v3598 = vadd.f32 %v3366, %v3597
    %v3599 = vpop.f32.mrb[0].mxu0
    %3600 = vmatprep.mubr.bf16.mxu0 %v3238
    %3601 = vmatmul.mubr.bf16.gmra.mrb[0].mxu0 %v3237
    %v3602 = vpop.f32.mrb[0].mxu0
    %v3603 = vadd.f32 %v3366, %v3602
    %v3604 = vpop.f32.mrb[0].mxu0
    %v3605 = vpop.f32.mrb[0].mxu0
    %v3606 = vadd.f32 %v3366, %v3605
    %v3607 = vpop.f32.mrb[0].mxu0
    %3608 = vmatprep.mubr.bf16.mxu0 %v3242
    %3609 = vmatmul.mubr.bf16.gmra.mrb[0].mxu0 %v3241
    %v3610 = vpop.f32.mrb[0].mxu0
    %v3611 = vadd.f32 %v3366, %v3610
    %v3612 = vpop.f32.mrb[0].mxu0
    %v3613 = vpop.f32.mrb[0].mxu0
    %v3614 = vadd.f32 %v3366, %v3613
    %v3615 = vpop.f32.mrb[0].mxu0
    %3616 = vmatprep.mubr.bf16.mxu0 %v3246
    %3617 = vmatmul.mubr.bf16.gmra.mrb[0].mxu0 %v3245
    %v3618 = vpop.f32.mrb[0].mxu0
    %v3619 = vadd.f32 %v3366, %v3618
    %v3620 = vpop.f32.mrb[0].mxu0
    %v3621 = vpop.f32.mrb[0].mxu0
    %v3622 = vadd.f32 %v3366, %v3621
    %v3623 = vpop.f32.mrb[0].mxu0
    %3624 = vmatprep.mubr.bf16.mxu0 %v3250
    %3625 = vmatmul.mubr.bf16.gmra.mrb[0].mxu0 %v3249
    %v3626 = vpop.f32.mrb[0].mxu0
    %v3627 = vadd.f32 %v3366, %v3626
    %v3628 = vpop.f32.mrb[0].mxu0
    %v3629 = vpop.f32.mrb[0].mxu0
    %v3630 = vadd.f32 %v3366, %v3629
    %v3631 = vpop.f32.mrb[0].mxu0
    %3632 = vmatprep.mubr.bf16.mxu0 %v3254
    %3633 = vmatmul.mubr.bf16.gmra.mrb[0].mxu0 %v3253
    %v3634 = vpop.f32.mrb[0].mxu0
    %v3635 = vadd.f32 %v3366, %v3634
    %v3636 = vpop.f32.mrb[0].mxu0
    %v3637 = vpop.f32.mrb[0].mxu0
    %v3638 = vadd.f32 %v3366, %v3637
    %v3639 = vpop.f32.mrb[0].mxu0
    %3640 = vmatprep.mubr.bf16.mxu0 %v3258
    %3641 = vmatmul.mubr.bf16.gmra.mrb[0].mxu0 %v3257
    %v3642 = vpop.f32.mrb[0].mxu0
    %v3643 = vadd.f32 %v3366, %v3642
    %v3644 = vpop.f32.mrb[0].mxu0
    %v3645 = vpop.f32.mrb[0].mxu0
    %v3646 = vadd.f32 %v3366, %v3645
    %v3647 = vpop.f32.mrb[0].mxu0
    %3648 = vmatprep.mubr.bf16.mxu0 %v3262
    %3649 = vmatmul.mubr.bf16.gmra.mrb[0].mxu0 %v3261
    %v3650 = vpop.f32.mrb[0].mxu0
    %v3651 = vadd.f32 %v3366, %v3650
    %v3652 = vpop.f32.mrb[0].mxu0
    %v3653 = vpop.f32.mrb[0].mxu0
    %v3654 = vadd.f32 %v3366, %v3653
    %v3655 = vpop.f32.mrb[0].mxu0
    %3656 = vmatprep.mubr.bf16.mxu0 %v3266
    %3657 = vmatmul.mubr.bf16.gmra.mrb[0].mxu0 %v3265
    %v3658 = vpop.f32.mrb[0].mxu0
    %v3659 = vadd.f32 %v3366, %v3658
    %v3660 = vpop.f32.mrb[0].mxu0
    %v3661 = vpop.f32.mrb[0].mxu0
    %v3662 = vadd.f32 %v3366, %v3661
    %v3663 = vpop.f32.mrb[0].mxu0
    %3664 = vmatprep.mubr.bf16.mxu0 %v3270
    %3665 = vmatmul.mubr.bf16.gmra.mrb[0].mxu0 %v3269
    %v3666 = vpop.f32.mrb[0].mxu0
    %v3667 = vadd.f32 %v3366, %v3666
    %v3668 = vpop.f32.mrb[0].mxu0
    %v3669 = vpop.f32.mrb[0].mxu0
    %v3670 = vadd.f32 %v3366, %v3669
    %v3671 = vpop.f32.mrb[0].mxu0
    %3672 = vmatprep.mubr.bf16.mxu0 %v3274
    %3673 = vmatmul.mubr.bf16.gmra.mrb[0].mxu0 %v3273
    %v3674 = vpop.f32.mrb[0].mxu0
    %v3675 = vadd.f32 %v3366, %v3674
    %v3676 = vpop.f32.mrb[0].mxu0
    %v3677 = vpop.f32.mrb[0].mxu0
    %v3678 = vadd.f32 %v3366, %v3677
    %v3679 = vpop.f32.mrb[0].mxu0
    %3680 = vmatprep.mubr.bf16.mxu0 %v3278
    %3681 = vmatmul.mubr.bf16.gmra.mrb[0].mxu0 %v3277
    %v3682 = vpop.f32.mrb[0].mxu0
    %v3683 = vadd.f32 %v3366, %v3682
    %v3684 = vpop.f32.mrb[0].mxu0
    %v3685 = vpop.f32.mrb[0].mxu0
    %v3686 = vadd.f32 %v3366, %v3685
    %v3687 = vpop.f32.mrb[0].mxu0
    %3688 = vmatprep.mubr.bf16.mxu0 %v3282
    %3689 = vmatmul.mubr.bf16.gmra.mrb[0].mxu0 %v3281
    %v3690 = vpop.f32.mrb[0].mxu0
    %v3691 = vadd.f32 %v3366, %v3690
    %v3692 = vpop.f32.mrb[0].mxu0
    %v3693 = vpop.f32.mrb[0].mxu0
    %v3694 = vadd.f32 %v3366, %v3693
    %v3695 = vpop.f32.mrb[0].mxu0
    %3696 = vmatprep.mubr.bf16.mxu0 %v3286
    %3697 = vmatmul.mubr.bf16.gmra.mrb[0].mxu0 %v3285
    %v3698 = vpop.f32.mrb[0].mxu0
    %v3699 = vadd.f32 %v3366, %v3698
    %v3700 = vpop.f32.mrb[0].mxu0
    %v3701 = vpop.f32.mrb[0].mxu0
    %v3702 = vadd.f32 %v3366, %v3701
    %v3703 = vpop.f32.mrb[0].mxu0
    %3704 = vmatprep.mubr.bf16.mxu0 %v3290
    %3705 = vmatmul.mubr.bf16.gmra.mrb[0].mxu0 %v3289
    %v3706 = vpop.f32.mrb[0].mxu0
    %v3707 = vadd.f32 %v3366, %v3706
    %v3708 = vpop.f32.mrb[0].mxu0
    %v3709 = vpop.f32.mrb[0].mxu0
    %v3710 = vadd.f32 %v3366, %v3709
    %v3711 = vpop.f32.mrb[0].mxu0
    %3712 = vmatprep.mubr.bf16.mxu0 %v3294
    %3713 = vmatmul.mubr.bf16.gmra.mrb[0].mxu0 %v3293
    %v3714 = vpop.f32.mrb[0].mxu0
    %v3715 = vadd.f32 %v3366, %v3714
    %v3716 = vpop.f32.mrb[0].mxu0
    %v3717 = vpop.f32.mrb[0].mxu0
    %v3718 = vadd.f32 %v3366, %v3717
    %v3719 = vpop.f32.mrb[0].mxu0
    %3720 = vdwg.mxu0
    %3721 = vmatprep.subr.bf16.mxu0 0
    %3722 = vmatpush1.bf16.msra.mxu0 %v3512
    %3723 = vmatprep.subr.bf16.mxu0 0
    %3724 = vmatpush1.bf16.msra.mxu0 %v3513
    %3725 = vmatprep.subr.bf16.mxu0 0
    %3726 = vmatpush1.bf16.msra.mxu0 %v3514
    %3727 = vmatprep.subr.bf16.mxu0 0
    %3728 = vmatpush1.bf16.msra.mxu0 %v3515
    %3729 = vmatprep.subr.bf16.mxu0 0
    %3730 = vmatpush1.bf16.msra.mxu0 %v3516
    %3731 = vmatprep.subr.bf16.mxu0 0
    %3732 = vmatpush1.bf16.msra.mxu0 %v3517
    %3733 = vmatprep.subr.bf16.mxu0 0
    %3734 = vmatpush1.bf16.msra.mxu0 %v3518
    %3735 = vmatprep.subr.bf16.mxu0 0
    %3736 = vmatpush1.bf16.msra.mxu0 %v3519
    %3737 = vmatprep.subr.bf16.mxu0 0
    %3738 = vmatpush1.bf16.msra.mxu0 %v3520
    %3739 = vmatprep.subr.bf16.mxu0 0
    %3740 = vmatpush1.bf16.msra.mxu0 %v3521
    %3741 = vmatprep.subr.bf16.mxu0 0
    %3742 = vmatpush1.bf16.msra.mxu0 %v3522
    %3743 = vmatprep.subr.bf16.mxu0 0
    %3744 = vmatpush1.bf16.msra.mxu0 %v3523
    %3745 = vmatprep.subr.bf16.mxu0 0
    %3746 = vmatpush1.bf16.msra.mxu0 %v3524
    %3747 = vmatprep.subr.bf16.mxu0 0
    %3748 = vmatpush1.bf16.msra.mxu0 %v3525
    %3749 = vmatprep.subr.bf16.mxu0 0
    %3750 = vmatpush1.bf16.msra.mxu0 %v3526
    %3751 = vmatprep.subr.bf16.mxu0 0
    %3752 = vmatpush1.bf16.msra.mxu0 %v3527
    %3753 = vmatprep.mubr.bf16.mxu0 %v3236
    %3754 = vmatmul.mubr.bf16.gmra.mrb[0].mxu0 %v3235
    %v3755 = vpop.f32.mrb[0].mxu0
    %v3756 = vadd.f32 %v3595, %v3755
    %v3757 = vpop.f32.mrb[0].mxu0
    %v3758 = vpop.f32.mrb[0].mxu0
    %v3759 = vadd.f32 %v3598, %v3758
    %v3760 = vpop.f32.mrb[0].mxu0
    %3761 = vmatprep.mubr.bf16.mxu0 %v3240
    %3762 = vmatmul.mubr.bf16.gmra.mrb[0].mxu0 %v3239
    %v3763 = vpop.f32.mrb[0].mxu0
    %v3764 = vadd.f32 %v3603, %v3763
    %v3765 = vpop.f32.mrb[0].mxu0
    %v3766 = vpop.f32.mrb[0].mxu0
    %v3767 = vadd.f32 %v3606, %v3766
    %v3768 = vpop.f32.mrb[0].mxu0
    %3769 = vmatprep.mubr.bf16.mxu0 %v3244
    %3770 = vmatmul.mubr.bf16.gmra.mrb[0].mxu0 %v3243
    %v3771 = vpop.f32.mrb[0].mxu0
    %v3772 = vadd.f32 %v3611, %v3771
    %v3773 = vpop.f32.mrb[0].mxu0
    %v3774 = vpop.f32.mrb[0].mxu0
    %v3775 = vadd.f32 %v3614, %v3774
    %v3776 = vpop.f32.mrb[0].mxu0
    %3777 = vmatprep.mubr.bf16.mxu0 %v3248
    %3778 = vmatmul.mubr.bf16.gmra.mrb[0].mxu0 %v3247
    %v3779 = vpop.f32.mrb[0].mxu0
    %v3780 = vadd.f32 %v3619, %v3779
    %v3781 = vpop.f32.mrb[0].mxu0
    %v3782 = vpop.f32.mrb[0].mxu0
    %v3783 = vadd.f32 %v3622, %v3782
    %v3784 = vpop.f32.mrb[0].mxu0
    %3785 = vmatprep.mubr.bf16.mxu0 %v3252
    %3786 = vmatmul.mubr.bf16.gmra.mrb[0].mxu0 %v3251
    %v3787 = vpop.f32.mrb[0].mxu0
    %v3788 = vadd.f32 %v3627, %v3787
    %v3789 = vpop.f32.mrb[0].mxu0
    %v3790 = vpop.f32.mrb[0].mxu0
    %v3791 = vadd.f32 %v3630, %v3790
    %v3792 = vpop.f32.mrb[0].mxu0
    %3793 = vmatprep.mubr.bf16.mxu0 %v3256
    %3794 = vmatmul.mubr.bf16.gmra.mrb[0].mxu0 %v3255
    %v3795 = vpop.f32.mrb[0].mxu0
    %v3796 = vadd.f32 %v3635, %v3795
    %v3797 = vpop.f32.mrb[0].mxu0
    %v3798 = vpop.f32.mrb[0].mxu0
    %v3799 = vadd.f32 %v3638, %v3798
    %v3800 = vpop.f32.mrb[0].mxu0
    %3801 = vmatprep.mubr.bf16.mxu0 %v3260
    %3802 = vmatmul.mubr.bf16.gmra.mrb[0].mxu0 %v3259
    %v3803 = vpop.f32.mrb[0].mxu0
    %v3804 = vadd.f32 %v3643, %v3803
    %v3805 = vpop.f32.mrb[0].mxu0
    %v3806 = vpop.f32.mrb[0].mxu0
    %v3807 = vadd.f32 %v3646, %v3806
    %v3808 = vpop.f32.mrb[0].mxu0
    %3809 = vmatprep.mubr.bf16.mxu0 %v3264
    %3810 = vmatmul.mubr.bf16.gmra.mrb[0].mxu0 %v3263
    %v3811 = vpop.f32.mrb[0].mxu0
    %v3812 = vadd.f32 %v3651, %v3811
    %v3813 = vpop.f32.mrb[0].mxu0
    %v3814 = vpop.f32.mrb[0].mxu0
    %v3815 = vadd.f32 %v3654, %v3814
    %v3816 = vpop.f32.mrb[0].mxu0
    %3817 = vmatprep.mubr.bf16.mxu0 %v3268
    %3818 = vmatmul.mubr.bf16.gmra.mrb[0].mxu0 %v3267
    %v3819 = vpop.f32.mrb[0].mxu0
    %v3820 = vadd.f32 %v3659, %v3819
    %v3821 = vpop.f32.mrb[0].mxu0
    %v3822 = vpop.f32.mrb[0].mxu0
    %v3823 = vadd.f32 %v3662, %v3822
    %v3824 = vpop.f32.mrb[0].mxu0
    %3825 = vmatprep.mubr.bf16.mxu0 %v3272
    %3826 = vmatmul.mubr.bf16.gmra.mrb[0].mxu0 %v3271
    %v3827 = vpop.f32.mrb[0].mxu0
    %v3828 = vadd.f32 %v3667, %v3827
    %v3829 = vpop.f32.mrb[0].mxu0
    %v3830 = vpop.f32.mrb[0].mxu0
    %v3831 = vadd.f32 %v3670, %v3830
    %v3832 = vpop.f32.mrb[0].mxu0
    %3833 = vmatprep.mubr.bf16.mxu0 %v3276
    %3834 = vmatmul.mubr.bf16.gmra.mrb[0].mxu0 %v3275
    %v3835 = vpop.f32.mrb[0].mxu0
    %v3836 = vadd.f32 %v3675, %v3835
    %v3837 = vpop.f32.mrb[0].mxu0
    %v3838 = vpop.f32.mrb[0].mxu0
    %v3839 = vadd.f32 %v3678, %v3838
    %v3840 = vpop.f32.mrb[0].mxu0
    %3841 = vmatprep.mubr.bf16.mxu0 %v3280
    %3842 = vmatmul.mubr.bf16.gmra.mrb[0].mxu0 %v3279
    %v3843 = vpop.f32.mrb[0].mxu0
    %v3844 = vadd.f32 %v3683, %v3843
    %v3845 = vpop.f32.mrb[0].mxu0
    %v3846 = vpop.f32.mrb[0].mxu0
    %v3847 = vadd.f32 %v3686, %v3846
    %v3848 = vpop.f32.mrb[0].mxu0
    %3849 = vmatprep.mubr.bf16.mxu0 %v3284
    %3850 = vmatmul.mubr.bf16.gmra.mrb[0].mxu0 %v3283
    %v3851 = vpop.f32.mrb[0].mxu0
    %v3852 = vadd.f32 %v3691, %v3851
    %v3853 = vpop.f32.mrb[0].mxu0
    %v3854 = vpop.f32.mrb[0].mxu0
    %v3855 = vadd.f32 %v3694, %v3854
    %v3856 = vpop.f32.mrb[0].mxu0
    %3857 = vmatprep.mubr.bf16.mxu0 %v3288
    %3858 = vmatmul.mubr.bf16.gmra.mrb[0].mxu0 %v3287
    %v3859 = vpop.f32.mrb[0].mxu0
    %v3860 = vadd.f32 %v3699, %v3859
    %v3861 = vpop.f32.mrb[0].mxu0
    %v3862 = vpop.f32.mrb[0].mxu0
    %v3863 = vadd.f32 %v3702, %v3862
    %v3864 = vpop.f32.mrb[0].mxu0
    %3865 = vmatprep.mubr.bf16.mxu0 %v3292
    %3866 = vmatmul.mubr.bf16.gmra.mrb[0].mxu0 %v3291
    %v3867 = vpop.f32.mrb[0].mxu0
    %v3868 = vadd.f32 %v3707, %v3867
    %v3869 = vpop.f32.mrb[0].mxu0
    %v3870 = vpop.f32.mrb[0].mxu0
    %v3871 = vadd.f32 %v3710, %v3870
    %v3872 = vpop.f32.mrb[0].mxu0
    %3873 = vmatprep.mubr.bf16.mxu0 %v3296
    %3874 = vmatmul.mubr.bf16.gmra.mrb[0].mxu0 %v3295
    %v3875 = vpop.f32.mrb[0].mxu0
    %v3876 = vadd.f32 %v3715, %v3875
    %v3877 = vpop.f32.mrb[0].mxu0
    %v3878 = vpop.f32.mrb[0].mxu0
    %v3879 = vadd.f32 %v3718, %v3878
    %v3880 = vpop.f32.mrb[0].mxu0
    %3881 = vdwg.mxu0
    %v3882 = vlaneseq
    %v3883 = vand.u32 %v3882, 127
    %vm3884 = vcmp.lt.s32.totalorder %v3883, 5
    %v3885 = vsel %vm3884, %v3756, -1e+30
    %v3886 = vsel %vm3884, %v3759, -1e+30
    %v3887 = vsel %vm3884, %v3764, -1e+30
    %v3888 = vsel %vm3884, %v3767, -1e+30
    %v3889 = vsel %vm3884, %v3772, -1e+30
    %v3890 = vsel %vm3884, %v3775, -1e+30
    %v3891 = vsel %vm3884, %v3780, -1e+30
    %v3892 = vsel %vm3884, %v3783, -1e+30
    %v3893 = vsel %vm3884, %v3788, -1e+30
    %v3894 = vsel %vm3884, %v3791, -1e+30
    %v3895 = vsel %vm3884, %v3796, -1e+30
    %v3896 = vsel %vm3884, %v3799, -1e+30
    %v3897 = vsel %vm3884, %v3804, -1e+30
    %v3898 = vsel %vm3884, %v3807, -1e+30
    %v3899 = vsel %vm3884, %v3812, -1e+30
    %v3900 = vsel %vm3884, %v3815, -1e+30
    %v3901 = vsel %vm3884, %v3820, -1e+30
    %v3902 = vsel %vm3884, %v3823, -1e+30
    %v3903 = vsel %vm3884, %v3828, -1e+30
    %v3904 = vsel %vm3884, %v3831, -1e+30
    %v3905 = vsel %vm3884, %v3836, -1e+30
    %v3906 = vsel %vm3884, %v3839, -1e+30
    %v3907 = vsel %vm3884, %v3844, -1e+30
    %v3908 = vsel %vm3884, %v3847, -1e+30
    %v3909 = vsel %vm3884, %v3852, -1e+30
    %v3910 = vsel %vm3884, %v3855, -1e+30
    %v3911 = vsel %vm3884, %v3860, -1e+30
    %v3912 = vsel %vm3884, %v3863, -1e+30
    %v3913 = vsel %vm3884, %v3868, -1e+30
    %v3914 = vsel %vm3884, %v3871, -1e+30
    %v3915 = vsel %vm3884, %v3876, -1e+30
    %v3916 = vsel %vm3884, %v3879, -1e+30
    %3917 = vmax.xlane.f32.xlu0 %v3885
    %v3918 = vpop.xlane.xlu0 %3917
    %3919 = vmax.xlane.f32.xlu0 %v3886
    %v3920 = vpop.xlane.xlu0 %3919
    %3921 = vmax.xlane.f32.xlu0 %v3887
    %v3922 = vpop.xlane.xlu0 %3921
    %3923 = vmax.xlane.f32.xlu0 %v3888
    %v3924 = vpop.xlane.xlu0 %3923
    %3925 = vmax.xlane.f32.xlu0 %v3889
    %v3926 = vpop.xlane.xlu0 %3925
    %3927 = vmax.xlane.f32.xlu0 %v3890
    %v3928 = vpop.xlane.xlu0 %3927
    %3929 = vmax.xlane.f32.xlu0 %v3891
    %v3930 = vpop.xlane.xlu0 %3929
    %3931 = vmax.xlane.f32.xlu0 %v3892
    %v3932 = vpop.xlane.xlu0 %3931
    %3933 = vmax.xlane.f32.xlu0 %v3893
    %v3934 = vpop.xlane.xlu0 %3933
    %3935 = vmax.xlane.f32.xlu0 %v3894
    %v3936 = vpop.xlane.xlu0 %3935
    %3937 = vmax.xlane.f32.xlu0 %v3895
    %v3938 = vpop.xlane.xlu0 %3937
    %3939 = vmax.xlane.f32.xlu0 %v3896
    %v3940 = vpop.xlane.xlu0 %3939
    %3941 = vmax.xlane.f32.xlu0 %v3897
    %v3942 = vpop.xlane.xlu0 %3941
    %3943 = vmax.xlane.f32.xlu0 %v3898
    %v3944 = vpop.xlane.xlu0 %3943
    %3945 = vmax.xlane.f32.xlu0 %v3899
    %v3946 = vpop.xlane.xlu0 %3945
    %3947 = vmax.xlane.f32.xlu0 %v3900
    %v3948 = vpop.xlane.xlu0 %3947
    %3949 = vmax.xlane.f32.xlu0 %v3901
    %v3950 = vpop.xlane.xlu0 %3949
    %3951 = vmax.xlane.f32.xlu0 %v3902
    %v3952 = vpop.xlane.xlu0 %3951
    %3953 = vmax.xlane.f32.xlu0 %v3903
    %v3954 = vpop.xlane.xlu0 %3953
    %3955 = vmax.xlane.f32.xlu0 %v3904
    %v3956 = vpop.xlane.xlu0 %3955
    %3957 = vmax.xlane.f32.xlu0 %v3905
    %v3958 = vpop.xlane.xlu0 %3957
    %3959 = vmax.xlane.f32.xlu0 %v3906
    %v3960 = vpop.xlane.xlu0 %3959
    %3961 = vmax.xlane.f32.xlu0 %v3907
    %v3962 = vpop.xlane.xlu0 %3961
    %3963 = vmax.xlane.f32.xlu0 %v3908
    %v3964 = vpop.xlane.xlu0 %3963
    %3965 = vmax.xlane.f32.xlu0 %v3909
    %v3966 = vpop.xlane.xlu0 %3965
    %3967 = vmax.xlane.f32.xlu0 %v3910
    %v3968 = vpop.xlane.xlu0 %3967
    %3969 = vmax.xlane.f32.xlu0 %v3911
    %v3970 = vpop.xlane.xlu0 %3969
    %3971 = vmax.xlane.f32.xlu0 %v3912
    %v3972 = vpop.xlane.xlu0 %3971
    %3973 = vmax.xlane.f32.xlu0 %v3913
    %v3974 = vpop.xlane.xlu0 %3973
    %3975 = vmax.xlane.f32.xlu0 %v3914
    %v3976 = vpop.xlane.xlu0 %3975
    %3977 = vmax.xlane.f32.xlu0 %v3915
    %v3978 = vpop.xlane.xlu0 %3977
    %3979 = vmax.xlane.f32.xlu0 %v3916
    %v3980 = vpop.xlane.xlu0 %3979
    %v3981 = vsub.f32 %v3885, %v3918
    %v3982 = vsub.f32 %v3886, %v3920
    %v3983 = vsub.f32 %v3887, %v3922
    %v3984 = vsub.f32 %v3888, %v3924
    %v3985 = vsub.f32 %v3889, %v3926
    %v3986 = vsub.f32 %v3890, %v3928
    %v3987 = vsub.f32 %v3891, %v3930
    %v3988 = vsub.f32 %v3892, %v3932
    %v3989 = vsub.f32 %v3893, %v3934
    %v3990 = vsub.f32 %v3894, %v3936
    %v3991 = vsub.f32 %v3895, %v3938
    %v3992 = vsub.f32 %v3896, %v3940
    %v3993 = vsub.f32 %v3897, %v3942
    %v3994 = vsub.f32 %v3898, %v3944
    %v3995 = vsub.f32 %v3899, %v3946
    %v3996 = vsub.f32 %v3900, %v3948
    %v3997 = vsub.f32 %v3901, %v3950
    %v3998 = vsub.f32 %v3902, %v3952
    %v3999 = vsub.f32 %v3903, %v3954
    %v4000 = vsub.f32 %v3904, %v3956
    %v4001 = vsub.f32 %v3905, %v3958
    %v4002 = vsub.f32 %v3906, %v3960
    %v4003 = vsub.f32 %v3907, %v3962
    %v4004 = vsub.f32 %v3908, %v3964
    %v4005 = vsub.f32 %v3909, %v3966
    %v4006 = vsub.f32 %v3910, %v3968
    %v4007 = vsub.f32 %v3911, %v3970
    %v4008 = vsub.f32 %v3912, %v3972
    %v4009 = vsub.f32 %v3913, %v3974
    %v4010 = vsub.f32 %v3914, %v3976
    %v4011 = vsub.f32 %v3915, %v3978
    %v4012 = vsub.f32 %v3916, %v3980
    %v4013 = vmul.f32 %v3981, 1.442695
    %v4014 = vpow.pop %v4013
    %v4015 = vmul.f32 %v3982, 1.442695
    %v4016 = vpow.pop %v4015
    %v4017 = vmul.f32 %v3983, 1.442695
    %v4018 = vpow.pop %v4017
    %v4019 = vmul.f32 %v3984, 1.442695
    %v4020 = vpow.pop %v4019
    %v4021 = vmul.f32 %v3985, 1.442695
    %v4022 = vpow.pop %v4021
    %v4023 = vmul.f32 %v3986, 1.442695
    %v4024 = vpow.pop %v4023
    %v4025 = vmul.f32 %v3987, 1.442695
    %v4026 = vpow.pop %v4025
    %v4027 = vmul.f32 %v3988, 1.442695
    %v4028 = vpow.pop %v4027
    %v4029 = vmul.f32 %v3989, 1.442695
    %v4030 = vpow.pop %v4029
    %v4031 = vmul.f32 %v3990, 1.442695
    %v4032 = vpow.pop %v4031
    %v4033 = vmul.f32 %v3991, 1.442695
    %v4034 = vpow.pop %v4033
    %v4035 = vmul.f32 %v3992, 1.442695
    %v4036 = vpow.pop %v4035
    %v4037 = vmul.f32 %v3993, 1.442695
    %v4038 = vpow.pop %v4037
    %v4039 = vmul.f32 %v3994, 1.442695
    %v4040 = vpow.pop %v4039
    %v4041 = vmul.f32 %v3995, 1.442695
    %v4042 = vpow.pop %v4041
    %v4043 = vmul.f32 %v3996, 1.442695
    %v4044 = vpow.pop %v4043
    %v4045 = vmul.f32 %v3997, 1.442695
    %v4046 = vpow.pop %v4045
    %v4047 = vmul.f32 %v3998, 1.442695
    %v4048 = vpow.pop %v4047
    %v4049 = vmul.f32 %v3999, 1.442695
    %v4050 = vpow.pop %v4049
    %v4051 = vmul.f32 %v4000, 1.442695
    %v4052 = vpow.pop %v4051
    %v4053 = vmul.f32 %v4001, 1.442695
    %v4054 = vpow.pop %v4053
    %v4055 = vmul.f32 %v4002, 1.442695
    %v4056 = vpow.pop %v4055
    %v4057 = vmul.f32 %v4003, 1.442695
    %v4058 = vpow.pop %v4057
    %v4059 = vmul.f32 %v4004, 1.442695
    %v4060 = vpow.pop %v4059
    %v4061 = vmul.f32 %v4005, 1.442695
    %v4062 = vpow.pop %v4061
    %v4063 = vmul.f32 %v4006, 1.442695
    %v4064 = vpow.pop %v4063
    %v4065 = vmul.f32 %v4007, 1.442695
    %v4066 = vpow.pop %v4065
    %v4067 = vmul.f32 %v4008, 1.442695
    %v4068 = vpow.pop %v4067
    %v4069 = vmul.f32 %v4009, 1.442695
    %v4070 = vpow.pop %v4069
    %v4071 = vmul.f32 %v4010, 1.442695
    %v4072 = vpow.pop %v4071
    %v4073 = vmul.f32 %v4011, 1.442695
    %v4074 = vpow.pop %v4073
    %v4075 = vmul.f32 %v4012, 1.442695
    %v4076 = vpow.pop %v4075
    %4077 = vadd.xlane.f32.xlu0 %v4014
    %v4078 = vpop.xlane.xlu0 %4077
    %4079 = vadd.xlane.f32.xlu0 %v4016
    %v4080 = vpop.xlane.xlu0 %4079
    %4081 = vadd.xlane.f32.xlu0 %v4018
    %v4082 = vpop.xlane.xlu0 %4081
    %4083 = vadd.xlane.f32.xlu0 %v4020
    %v4084 = vpop.xlane.xlu0 %4083
    %4085 = vadd.xlane.f32.xlu0 %v4022
    %v4086 = vpop.xlane.xlu0 %4085
    %4087 = vadd.xlane.f32.xlu0 %v4024
    %v4088 = vpop.xlane.xlu0 %4087
    %4089 = vadd.xlane.f32.xlu0 %v4026
    %v4090 = vpop.xlane.xlu0 %4089
    %4091 = vadd.xlane.f32.xlu0 %v4028
    %v4092 = vpop.xlane.xlu0 %4091
    %4093 = vadd.xlane.f32.xlu0 %v4030
    %v4094 = vpop.xlane.xlu0 %4093
    %4095 = vadd.xlane.f32.xlu0 %v4032
    %v4096 = vpop.xlane.xlu0 %4095
    %4097 = vadd.xlane.f32.xlu0 %v4034
    %v4098 = vpop.xlane.xlu0 %4097
    %4099 = vadd.xlane.f32.xlu0 %v4036
    %v4100 = vpop.xlane.xlu0 %4099
    %4101 = vadd.xlane.f32.xlu0 %v4038
    %v4102 = vpop.xlane.xlu0 %4101
    %4103 = vadd.xlane.f32.xlu0 %v4040
    %v4104 = vpop.xlane.xlu0 %4103
    %4105 = vadd.xlane.f32.xlu0 %v4042
    %v4106 = vpop.xlane.xlu0 %4105
    %4107 = vadd.xlane.f32.xlu0 %v4044
    %v4108 = vpop.xlane.xlu0 %4107
    %4109 = vadd.xlane.f32.xlu0 %v4046
    %v4110 = vpop.xlane.xlu0 %4109
    %4111 = vadd.xlane.f32.xlu0 %v4048
    %v4112 = vpop.xlane.xlu0 %4111
    %4113 = vadd.xlane.f32.xlu0 %v4050
    %v4114 = vpop.xlane.xlu0 %4113
    %4115 = vadd.xlane.f32.xlu0 %v4052
    %v4116 = vpop.xlane.xlu0 %4115
    %4117 = vadd.xlane.f32.xlu0 %v4054
    %v4118 = vpop.xlane.xlu0 %4117
    %4119 = vadd.xlane.f32.xlu0 %v4056
    %v4120 = vpop.xlane.xlu0 %4119
    %4121 = vadd.xlane.f32.xlu0 %v4058
    %v4122 = vpop.xlane.xlu0 %4121
    %4123 = vadd.xlane.f32.xlu0 %v4060
    %v4124 = vpop.xlane.xlu0 %4123
    %4125 = vadd.xlane.f32.xlu0 %v4062
    %v4126 = vpop.xlane.xlu0 %4125
    %4127 = vadd.xlane.f32.xlu0 %v4064
    %v4128 = vpop.xlane.xlu0 %4127
    %4129 = vadd.xlane.f32.xlu0 %v4066
    %v4130 = vpop.xlane.xlu0 %4129
    %4131 = vadd.xlane.f32.xlu0 %v4068
    %v4132 = vpop.xlane.xlu0 %4131
    %4133 = vadd.xlane.f32.xlu0 %v4070
    %v4134 = vpop.xlane.xlu0 %4133
    %4135 = vadd.xlane.f32.xlu0 %v4072
    %v4136 = vpop.xlane.xlu0 %4135
    %4137 = vadd.xlane.f32.xlu0 %v4074
    %v4138 = vpop.xlane.xlu0 %4137
    %4139 = vadd.xlane.f32.xlu0 %v4076
    %v4140 = vpop.xlane.xlu0 %4139
    %v4141 = vrcp.pop %v4078
    %v4142 = vrcp.pop %v4080
    %v4143 = vrcp.pop %v4082
    %v4144 = vrcp.pop %v4084
    %v4145 = vrcp.pop %v4086
    %v4146 = vrcp.pop %v4088
    %v4147 = vrcp.pop %v4090
    %v4148 = vrcp.pop %v4092
    %v4149 = vrcp.pop %v4094
    %v4150 = vrcp.pop %v4096
    %v4151 = vrcp.pop %v4098
    %v4152 = vrcp.pop %v4100
    %v4153 = vrcp.pop %v4102
    %v4154 = vrcp.pop %v4104
    %v4155 = vrcp.pop %v4106
    %v4156 = vrcp.pop %v4108
    %v4157 = vrcp.pop %v4110
    %v4158 = vrcp.pop %v4112
    %v4159 = vrcp.pop %v4114
    %v4160 = vrcp.pop %v4116
    %v4161 = vrcp.pop %v4118
    %v4162 = vrcp.pop %v4120
    %v4163 = vrcp.pop %v4122
    %v4164 = vrcp.pop %v4124
    %v4165 = vrcp.pop %v4126
    %v4166 = vrcp.pop %v4128
    %v4167 = vrcp.pop %v4130
    %v4168 = vrcp.pop %v4132
    %v4169 = vrcp.pop %v4134
    %v4170 = vrcp.pop %v4136
    %v4171 = vrcp.pop %v4138
    %v4172 = vrcp.pop %v4140
    %v4173 = vmul.f32 %v4014, %v4141
    %v4174 = vmul.f32 %v4016, %v4142
    %v4175 = vmul.f32 %v4018, %v4143
    %v4176 = vmul.f32 %v4020, %v4144
    %v4177 = vmul.f32 %v4022, %v4145
    %v4178 = vmul.f32 %v4024, %v4146
    %v4179 = vmul.f32 %v4026, %v4147
    %v4180 = vmul.f32 %v4028, %v4148
    %v4181 = vmul.f32 %v4030, %v4149
    %v4182 = vmul.f32 %v4032, %v4150
    %v4183 = vmul.f32 %v4034, %v4151
    %v4184 = vmul.f32 %v4036, %v4152
    %v4185 = vmul.f32 %v4038, %v4153
    %v4186 = vmul.f32 %v4040, %v4154
    %v4187 = vmul.f32 %v4042, %v4155
    %v4188 = vmul.f32 %v4044, %v4156
    %v4189 = vmul.f32 %v4046, %v4157
    %v4190 = vmul.f32 %v4048, %v4158
    %v4191 = vmul.f32 %v4050, %v4159
    %v4192 = vmul.f32 %v4052, %v4160
    %v4193 = vmul.f32 %v4054, %v4161
    %v4194 = vmul.f32 %v4056, %v4162
    %v4195 = vmul.f32 %v4058, %v4163
    %v4196 = vmul.f32 %v4060, %v4164
    %v4197 = vmul.f32 %v4062, %v4165
    %v4198 = vmul.f32 %v4064, %v4166
    %v4199 = vmul.f32 %v4066, %v4167
    %v4200 = vmul.f32 %v4068, %v4168
    %v4201 = vmul.f32 %v4070, %v4169
    %v4202 = vmul.f32 %v4072, %v4170
    %v4203 = vmul.f32 %v4074, %v4171
    %v4204 = vmul.f32 %v4076, %v4172
    %vm4205 = vcmp.eq.s32.totalorder %v3883, 5
    %v4206 = vsel %vm4205, %v3756, 0.0
    %v4207 = vsel %vm4205, %v3759, 0.0
    %v4208 = vsel %vm4205, %v3764, 0.0
    %v4209 = vsel %vm4205, %v3767, 0.0
    %v4210 = vsel %vm4205, %v3772, 0.0
    %v4211 = vsel %vm4205, %v3775, 0.0
    %v4212 = vsel %vm4205, %v3780, 0.0
    %v4213 = vsel %vm4205, %v3783, 0.0
    %v4214 = vsel %vm4205, %v3788, 0.0
    %v4215 = vsel %vm4205, %v3791, 0.0
    %v4216 = vsel %vm4205, %v3796, 0.0
    %v4217 = vsel %vm4205, %v3799, 0.0
    %v4218 = vsel %vm4205, %v3804, 0.0
    %v4219 = vsel %vm4205, %v3807, 0.0
    %v4220 = vsel %vm4205, %v3812, 0.0
    %v4221 = vsel %vm4205, %v3815, 0.0
    %v4222 = vsel %vm4205, %v3820, 0.0
    %v4223 = vsel %vm4205, %v3823, 0.0
    %v4224 = vsel %vm4205, %v3828, 0.0
    %v4225 = vsel %vm4205, %v3831, 0.0
    %v4226 = vsel %vm4205, %v3836, 0.0
    %v4227 = vsel %vm4205, %v3839, 0.0
    %v4228 = vsel %vm4205, %v3844, 0.0
    %v4229 = vsel %vm4205, %v3847, 0.0
    %v4230 = vsel %vm4205, %v3852, 0.0
    %v4231 = vsel %vm4205, %v3855, 0.0
    %v4232 = vsel %vm4205, %v3860, 0.0
    %v4233 = vsel %vm4205, %v3863, 0.0
    %v4234 = vsel %vm4205, %v3868, 0.0
    %v4235 = vsel %vm4205, %v3871, 0.0
    %v4236 = vsel %vm4205, %v3876, 0.0
    %v4237 = vsel %vm4205, %v3879, 0.0
    %v4238 = vsel %vm3884, %v4173, %v4206
    %v4239 = vsel %vm3884, %v4174, %v4207
    %v4240 = vsel %vm3884, %v4175, %v4208
    %v4241 = vsel %vm3884, %v4176, %v4209
    %v4242 = vsel %vm3884, %v4177, %v4210
    %v4243 = vsel %vm3884, %v4178, %v4211
    %v4244 = vsel %vm3884, %v4179, %v4212
    %v4245 = vsel %vm3884, %v4180, %v4213
    %v4246 = vsel %vm3884, %v4181, %v4214
    %v4247 = vsel %vm3884, %v4182, %v4215
    %v4248 = vsel %vm3884, %v4183, %v4216
    %v4249 = vsel %vm3884, %v4184, %v4217
    %v4250 = vsel %vm3884, %v4185, %v4218
    %v4251 = vsel %vm3884, %v4186, %v4219
    %v4252 = vsel %vm3884, %v4187, %v4220
    %v4253 = vsel %vm3884, %v4188, %v4221
    %v4254 = vsel %vm3884, %v4189, %v4222
    %v4255 = vsel %vm3884, %v4190, %v4223
    %v4256 = vsel %vm3884, %v4191, %v4224
    %v4257 = vsel %vm3884, %v4192, %v4225
    %v4258 = vsel %vm3884, %v4193, %v4226
    %v4259 = vsel %vm3884, %v4194, %v4227
    %v4260 = vsel %vm3884, %v4195, %v4228
    %v4261 = vsel %vm3884, %v4196, %v4229
    %v4262 = vsel %vm3884, %v4197, %v4230
    %v4263 = vsel %vm3884, %v4198, %v4231
    %v4264 = vsel %vm3884, %v4199, %v4232
    %v4265 = vsel %vm3884, %v4200, %v4233
    %v4266 = vsel %vm3884, %v4201, %v4234
    %v4267 = vsel %vm3884, %v4202, %v4235
    %v4268 = vsel %vm3884, %v4203, %v4236
    %v4269 = vsel %vm3884, %v4204, %v4237
    %4270 = vst [vmem:[#allocation8] sm:$0xff] %v4238
    %4271 = vst [vmem:[#allocation8 + $0x8] sm:$0xff] %v4239
    %4272 = vst [vmem:[#allocation8 + $0x10] sm:$0xff] %v4240
    %4273 = vst [vmem:[#allocation8 + $0x18] sm:$0xff] %v4241
    %4274 = vst [vmem:[#allocation8 + $0x20] sm:$0xff] %v4242
    %4275 = vst [vmem:[#allocation8 + $0x28] sm:$0xff] %v4243
    %4276 = vst [vmem:[#allocation8 + $0x30] sm:$0xff] %v4244
    %4277 = vst [vmem:[#allocation8 + $0x38] sm:$0xff] %v4245
    %4278 = vst [vmem:[#allocation8 + $0x40] sm:$0xff] %v4246
    %4279 = vst [vmem:[#allocation8 + $0x48] sm:$0xff] %v4247
    %4280 = vst [vmem:[#allocation8 + $0x50] sm:$0xff] %v4248
    %4281 = vst [vmem:[#allocation8 + $0x58] sm:$0xff] %v4249
    %4282 = vst [vmem:[#allocation8 + $0x60] sm:$0xff] %v4250
    %4283 = vst [vmem:[#allocation8 + $0x68] sm:$0xff] %v4251
    %4284 = vst [vmem:[#allocation8 + $0x70] sm:$0xff] %v4252
    %4285 = vst [vmem:[#allocation8 + $0x78] sm:$0xff] %v4253
    %4286 = vst [vmem:[#allocation8 + $0x80] sm:$0xff] %v4254
    %4287 = vst [vmem:[#allocation8 + $0x88] sm:$0xff] %v4255
    %4288 = vst [vmem:[#allocation8 + $0x90] sm:$0xff] %v4256
    %4289 = vst [vmem:[#allocation8 + $0x98] sm:$0xff] %v4257
    %4290 = vst [vmem:[#allocation8 + $0xa0] sm:$0xff] %v4258
    %4291 = vst [vmem:[#allocation8 + $0xa8] sm:$0xff] %v4259
    %4292 = vst [vmem:[#allocation8 + $0xb0] sm:$0xff] %v4260
    %4293 = vst [vmem:[#allocation8 + $0xb8] sm:$0xff] %v4261
    %4294 = vst [vmem:[#allocation8 + $0xc0] sm:$0xff] %v4262
    %4295 = vst [vmem:[#allocation8 + $0xc8] sm:$0xff] %v4263
    %4296 = vst [vmem:[#allocation8 + $0xd0] sm:$0xff] %v4264
    %4297 = vst [vmem:[#allocation8 + $0xd8] sm:$0xff] %v4265
    %4298 = vst [vmem:[#allocation8 + $0xe0] sm:$0xff] %v4266
    %4299 = vst [vmem:[#allocation8 + $0xe8] sm:$0xff] %v4267
    %4300 = vst [vmem:[#allocation8 + $0xf0] sm:$0xff] %v4268
    %4301 = vst [vmem:[#allocation8 + $0xf8] sm:$0xff] %v4269
    // Predicated region
    $region46: #{tpu_custom_call.1} parent=1 // pred_check
      _
    $region47: #{tpu_custom_call.1} parent=1 // pred_check_branch
      %4303 = sbr.rel (0) target = $region49
    $region48: #{tpu_custom_call.1} parent=1 // pred_region
      %s4305 = ssub.s32 4096, 4096
      %4306 = vsyncadd [#allocation4], %s4305
      %s4307 = sshll.u32 [#allocation8], 4
      %s4308 = int_to_ptr.vmem [resolvable:$true] %s4307
      %4313 = dma.vmem_to_hbm [thread:$0]  %s4308, 4096, %s8, [#allocation4], 128, 128, 8
    $region49: #{tpu_custom_call.1} parent=1 // pred_fallthru
      _
    // Predicated region
    $region50: #{tpu_custom_call.1} parent=1 // pred_check
      _
    $region51: #{tpu_custom_call.1} parent=1 // pred_check_branch
      %4315 = sbr.rel (0) target = $region53
    $region52: #{tpu_custom_call.1} parent=1 // pred_region
      %4316 = dma.done [#allocation4], 4096
    $region53: #{tpu_custom_call.1} parent=1 // pred_fallthru
      _
    %4317 = vsyncpa [#allocation3], 1
    %4318 = vsyncpa [#allocation6], 1
    %4319 = vsyncpa [#allocation4], 1

</llo_original>
